<compile_context>
chip_gen: v6e
topology: v6e:2x2x1
jax: 0.10.0
libtpu: 0.0.40
codegen_flags: <defaults>
</compile_context>

<pallas_src>
import functools

import jax
import jax.numpy as jnp
from jax.experimental import pallas as pl
from jax.experimental.pallas import tpu as pltpu


def _round_up(x, m):
    return ((x + m - 1) // m) * m


def _vmem_limit_bytes():
    """Per-generation VMEM budget: ~75% of physical, capped, safe fallback."""
    try:
        cap = pltpu.get_tpu_info().vmem_capacity_bytes
        return int(min(0.75 * cap, 96 * 1024 * 1024))
    except Exception:
        return 32 * 1024 * 1024   # conservative (fits every generation)


# ----------------------------- Pallas kernels --------------------------------
def edge_update_kernel(ef_ref, w_e_ref, b_e_ref, msg_ref):
    """msg = relu(concat(src, dst) @ W_e + b_e) for one edge tile."""
    m = jnp.dot(ef_ref[...], w_e_ref[...], preferred_element_type=jnp.float32)
    msg_ref[...] = jnp.maximum(m + b_e_ref[...], 0.0).astype(msg_ref.dtype)


def reduce_node_update_kernel(a_ref, msg_ref, inv_deg_ref, w_n_ref, b_n_ref,
                              out_ref, acc_ref):
    """acc += A_tile @ msg_tile; at last edge tile: relu((acc*inv_deg)@W_n+b_n)."""
    k = pl.program_id(1)

    @pl.when(k == 0)
    def _init():
        acc_ref[...] = jnp.zeros_like(acc_ref)

    acc_ref[...] += jnp.dot(a_ref[...], msg_ref[...],
                            preferred_element_type=jnp.float32)   # [TN, Hp] f32

    @pl.when(k == pl.num_programs(1) - 1)
    def _finalize():
        agg = acc_ref[...] * inv_deg_ref[...]                      # f32 mean reduce
        out = jnp.dot(agg.astype(w_n_ref.dtype), w_n_ref[...],
                      preferred_element_type=jnp.float32)
        out_ref[...] = jnp.maximum(out + b_n_ref[...], 0.0).astype(out_ref.dtype)


# ------------------------------ Layer wrapper ---------------------------------
def gnn_layer(nf_p, src_idx, dst_idx, a_onehot, inv_deg, layer_params, *,
              tile_n=128, tile_e=512, out_dtype=jnp.float32):
    """One GNNLayer forward on padded inputs.

    nf_p:     [N_pad, Din_p]   node features (padded cols are zero)
    a_onehot: [N_pad, E_pad]   bf16, A[n, e] = 1.0 iff dst[e] == n (unnormalized)
    inv_deg:  [N_pad, 1]       f32, 1/in_degree (0 for zero in-degree nodes)
    layer_params: padded (w_e [2*Din_p, Hp] bf16, b_e [1, Hp] f32,
                          w_n [Hp, Hop]   bf16, b_n [1, Hop] f32)
    NOTE: padded edge rows of ef_in hold real node-0 features; correctness
    relies on the corresponding A columns being zero.
    """
    w_e, b_e, w_n, b_n = layer_params
    n_pad, e_pad = a_onehot.shape
    d2, hp = w_e.shape
    hop = w_n.shape[1]
    assert nf_p.shape == (n_pad, d2 // 2)
    assert n_pad % tile_n == 0 and e_pad % tile_e == 0

    # Gather + concat edge endpoint features (XLA glue; see TODO above),
    # cast to bf16 for the MXU.
    ef_in = jnp.concatenate([nf_p[src_idx], nf_p[dst_idx]],
                            axis=-1).astype(jnp.bfloat16)          # [E_pad, 2*Din_p]

    vmem_limit = _vmem_limit_bytes()

    # ----- pass 1: edge_update over an edge-only grid (msg computed once) ----
    msg = pl.pallas_call(
        edge_update_kernel,
        out_shape=jax.ShapeDtypeStruct((e_pad, hp), jnp.bfloat16),
        grid_spec=pltpu.PrefetchScalarGridSpec(
            num_scalar_prefetch=0,
            grid=(e_pad // tile_e,),
            in_specs=[
                pl.BlockSpec((tile_e, d2), lambda k: (k, 0)),
                pl.BlockSpec((d2, hp), lambda k: (0, 0)),   # resident weights
                pl.BlockSpec((1, hp), lambda k: (0, 0)),
            ],
            out_specs=pl.BlockSpec((tile_e, hp), lambda k: (k, 0)),
        ),
        compiler_params=pltpu.CompilerParams(
            dimension_semantics=("parallel",),
            vmem_limit_bytes=vmem_limit,
        ),
    )(ef_in, w_e, b_e)

    # ----- pass 2: mean-reduce to dst nodes + node_update --------------------
    out = pl.pallas_call(
        reduce_node_update_kernel,
        out_shape=jax.ShapeDtypeStruct((n_pad, hop), out_dtype),
        grid_spec=pltpu.PrefetchScalarGridSpec(
            num_scalar_prefetch=0,
            grid=(n_pad // tile_n, e_pad // tile_e),
            in_specs=[
                # one-hot dst assignment: (node tile, edge tile)
                pl.BlockSpec((tile_n, tile_e), lambda i, k: (i, k)),
                # edge messages: new block per edge step
                pl.BlockSpec((tile_e, hp), lambda i, k: (k, 0)),
                # f32 inverse in-degree per node tile
                pl.BlockSpec((tile_n, 1), lambda i, k: (i, 0)),
                # node_update weights / bias: VMEM-resident
                pl.BlockSpec((hp, hop), lambda i, k: (0, 0)),
                pl.BlockSpec((1, hop), lambda i, k: (0, 0)),
            ],
            out_specs=pl.BlockSpec((tile_n, hop), lambda i, k: (i, 0)),
            scratch_shapes=[pltpu.VMEM((tile_n, hp), jnp.float32)],
        ),
        compiler_params=pltpu.CompilerParams(
            dimension_semantics=("parallel", "arbitrary"),
            vmem_limit_bytes=vmem_limit,
        ),
    )(a_onehot, msg, inv_deg, w_n, b_n)
    return out


def gnn_forward(nf_p, src_idx, dst_idx, a_onehot, inv_deg, params_p, *,
                tile_n=128, tile_e=512):
    n_layers = len(params_p)
    for li, lp in enumerate(params_p):
        # bf16 intermediate node features halve HBM writeback + next-layer
        # gather traffic; final layer output stays f32.
        out_dtype = jnp.float32 if li == n_layers - 1 else jnp.bfloat16
        nf_p = gnn_layer(nf_p, src_idx, dst_idx, a_onehot, inv_deg, lp,
                         tile_n=tile_n, tile_e=tile_e, out_dtype=out_dtype)
    return nf_p


# ------------------------------ Parameter init --------------------------------
def init_linear(key, fan_in, fan_out):
    """Deterministic init mimicking nn.Linear's U(-1/sqrt(fan_in), +...)."""
    kw, kb = jax.random.split(key)
    bound = 1.0 / jnp.sqrt(jnp.float32(fan_in))
    W = jax.random.uniform(kw, (fan_in, fan_out), jnp.float32, -bound, bound)
    b = jax.random.uniform(kb, (1, fan_out), jnp.float32, -bound, bound)
    return W, b


def init_gnn_params(key, in_dim, out_dim, embedding_dim=64, n_layers=1):
    in_dims = [in_dim] + [embedding_dim] * n_layers
    out_dims = [embedding_dim] * n_layers + [out_dim]
    params = []
    for d_in, d_out in zip(in_dims, out_dims):
        key, k1, k2 = jax.random.split(key, 3)
        w_e, b_e = init_linear(k1, 2 * d_in, d_out)  # edge_update Linear(2*in, out)
        w_n, b_n = init_linear(k2, d_out, d_out)     # node_update Linear(out, out)
        params.append((w_e, b_e, w_n, b_n))
    return params


def pad_gnn_params(raw_params, lane=128):
    """Pad weights to lane-dense (multiple-of-128) feature dims, bf16 weights."""
    padded = []
    for (w_e, b_e, w_n, b_n) in raw_params:
        d_in = w_e.shape[0] // 2
        d_out = w_e.shape[1]
        din_p = _round_up(d_in, lane)
        dout_p = _round_up(d_out, lane)
        w_e_p = jnp.zeros((2 * din_p, dout_p), jnp.float32)
        w_e_p = w_e_p.at[:d_in, :d_out].set(w_e[:d_in])
        w_e_p = w_e_p.at[din_p:din_p + d_in, :d_out].set(w_e[d_in:])
        b_e_p = jnp.zeros((1, dout_p), jnp.float32).at[:, :d_out].set(b_e)
        w_n_p = jnp.zeros((dout_p, dout_p), jnp.float32).at[:d_out, :d_out].set(w_n)
        b_n_p = jnp.zeros((1, dout_p), jnp.float32).at[:, :d_out].set(b_n)
        padded.append((w_e_p.astype(jnp.bfloat16), b_e_p,
                       w_n_p.astype(jnp.bfloat16), b_n_p))
    return padded


# ------------------------------- References ------------------------------------
def gnn_forward_ref_padded(nf_p, src_idx, dst_idx, a_onehot, inv_deg, params_p):
    """Pure-JAX reference with identical bf16 casts / f32 accumulation."""
    n_layers = len(params_p)
    for li, (w_e, b_e, w_n, b_n) in enumerate(params_p):
        ef = jnp.concatenate([nf_p[src_idx], nf_p[dst_idx]], -1).astype(jnp.bfloat16)
        msg = jnp.maximum(
            jnp.dot(ef, w_e, preferred_element_type=jnp.float32) + b_e,
            0.0).astype(jnp.bfloat16)
        agg = jnp.dot(a_onehot, msg, preferred_element_type=jnp.float32) * inv_deg
        out = jnp.maximum(
            jnp.dot(agg.astype(jnp.bfloat16), w_n,
                    preferred_element_type=jnp.float32) + b_n, 0.0)
        nf_p = out if li == n_layers - 1 else out.astype(jnp.bfloat16)
    return nf_p


def gnn_forward_ref_f32(nf, src_idx, dst_idx, A_real, inv_deg, raw_params):
    """Exact f32, un-padded reference matching the PyTorch/DGL semantics."""
    for (w_e, b_e, w_n, b_n) in raw_params:
        ef = jnp.concatenate([nf[src_idx], nf[dst_idx]], -1)
        msg = jax.nn.relu(ef @ w_e + b_e)
        agg = (A_real @ msg) * inv_deg          # zero-in-degree nodes -> 0 (DGL)
        nf = jax.nn.relu(agg @ w_n + b_n)
    return nf


# --------------------------------- Driver --------------------------------------
if __name__ == "__main__":
    # Small shapes, but big enough that both grids actually iterate
    # (3 node tiles x 3 edge tiles after padding).
    N, E = 300, 1200
    in_dim, out_dim, embedding_dim, n_layers = 4, 8, 32, 1
    TILE_N, TILE_E, LANE = 128, 512, 128

    key = jax.random.PRNGKey(0)
    k_nf, k_params = jax.random.split(key)

    nf = jax.random.normal(k_nf, (N, in_dim), jnp.float32)

    # Deterministic edge list; node N-1 has zero in-degree (exercises the
    # DGL "no incoming edges -> zero-initialized reduce output" path).
    src_idx = jnp.arange(E, dtype=jnp.int32) % N
    dst_idx = (jnp.arange(E, dtype=jnp.int32) * 7 + 3) % (N - 1)

    # Padded sizes.
    N_pad = _round_up(N, TILE_N)
    E_pad = _round_up(E, TILE_E)
    D_pad = _round_up(in_dim, LANE)

    # Padded node features / edge lists (padded rows & cols are zero / inert).
    nf_p = jnp.zeros((N_pad, D_pad), jnp.float32).at[:N, :in_dim].set(nf)
    src_p = jnp.zeros((E_pad,), jnp.int32).at[:E].set(src_idx)
    dst_p = jnp.zeros((E_pad,), jnp.int32).at[:E].set(dst_idx)

    # Unnormalized one-hot dst assignment (bf16, exact) + f32 inverse degree
    # (applied in-kernel at finalize for tighter numerics).
    A = jnp.zeros((N_pad, E_pad), jnp.float32).at[dst_idx, jnp.arange(E)].set(1.0)
    deg = A.sum(axis=1, keepdims=True)
    inv_deg = jnp.where(deg > 0, 1.0 / jnp.maximum(deg, 1.0), 0.0)   # [N_pad, 1]
    A_onehot = A.astype(jnp.bfloat16)

    raw_params = init_gnn_params(k_params, in_dim, out_dim, embedding_dim, n_layers)
    params_p = pad_gnn_params(raw_params, LANE)

    fwd = jax.jit(functools.partial(gnn_forward, tile_n=TILE_N, tile_e=TILE_E))
    out_p = fwd(nf_p, src_p, dst_p, A_onehot, inv_deg, params_p)
    out_p = jax.block_until_ready(out_p)
    out = out_p[:N, :out_dim]

    assert out.shape == (N, out_dim)

    # Tight check against a reference with identical bf16/f32 arithmetic.
    ref_b = gnn_forward_ref_padded(nf_p, src_p, dst_p, A_onehot, inv_deg,
                                   params_p)[:N, :out_dim]
    assert jnp.allclose(out, ref_b, atol=2e-3, rtol=2e-3), \
        f"bf16-matched ref mismatch: {jnp.max(jnp.abs(out - ref_b))}"

    # Loose check against the exact f32 module semantics (bf16 rounding only).
    ref_f = gnn_forward_ref_f32(nf, src_idx, dst_idx, A[:N, :E], inv_deg[:N],
                                raw_params)
    assert jnp.allclose(out, ref_f, atol=1e-1, rtol=1e-1), \
        f"f32 ref mismatch: {jnp.max(jnp.abs(out - ref_f))}"

    print("KERNEL_OK")
</pallas_src>

<mosaic_0001>
module attributes {stable_mosaic.version = 11 : i64} {
  func.func @edge_update_kernel(%arg0: i32, %arg1: memref<512x256xbf16, #tpu.memory_space<vmem>>, %arg2: memref<256x128xbf16, #tpu.memory_space<vmem>>, %arg3: memref<1x128xf32, #tpu.memory_space<vmem>>, %arg4: memref<512x128xbf16, #tpu.memory_space<vmem>>) attributes {dimension_semantics = [#tpu.dimension_semantics<parallel>], iteration_bounds = array<i64: 3>, scalar_prefetch = 0 : i64, scratch_operands = 0 : i64, tpu.core_type = #tpu.core_type<tc>, window_params = [{transform_indices = @transform_0, window_bounds = array<i64: 512, 256>}, {pipeline_mode = #tpu.pipeline_mode<synchronous>, transform_indices = @transform_1, window_bounds = array<i64: 256, 128>}, {pipeline_mode = #tpu.pipeline_mode<synchronous>, transform_indices = @transform_2, window_bounds = array<i64: 1, 128>}, {transform_indices = @transform_3, window_bounds = array<i64: 512, 128>}]} {
    %c0 = arith.constant 0 : index
    %c0_0 = arith.constant 0 : index
    %0 = vector.load %arg1[%c0, %c0_0] : memref<512x256xbf16, #tpu.memory_space<vmem>>, vector<512x256xbf16>
    %c0_1 = arith.constant 0 : index
    %c0_2 = arith.constant 0 : index
    %1 = vector.load %arg2[%c0_1, %c0_2] : memref<256x128xbf16, #tpu.memory_space<vmem>>, vector<256x128xbf16>
    %cst = arith.constant dense<0.000000e+00> : vector<512x128xf32>
    %2 = tpu.matmul %0, %1, %cst {dimension_numbers = #tpu.dot_dimension_numbers<[1], [0], [0], [1], [0, 0, 1, 1], [], []>} : vector<512x256xbf16>, vector<256x128xbf16>, vector<512x128xf32> -> vector<512x128xf32>
    %c0_3 = arith.constant 0 : index
    %c0_4 = arith.constant 0 : index
    %3 = vector.load %arg3[%c0_3, %c0_4] : memref<1x128xf32, #tpu.memory_space<vmem>>, vector<1x128xf32>
    %4 = vector.broadcast %3 : vector<1x128xf32> to vector<512x128xf32>
    %5 = arith.addf %2, %4 : vector<512x128xf32>
    %cst_5 = arith.constant 0.000000e+00 : f32
    %6 = vector.broadcast %cst_5 : f32 to vector<512x128xf32>
    %7 = arith.maximumf %5, %6 : vector<512x128xf32>
    %8 = arith.truncf %7 : vector<512x128xf32> to vector<512x128xbf16>
    %c0_6 = arith.constant 0 : index
    %c0_7 = arith.constant 0 : index
    %9 = vector.load %arg4[%c0_6, %c0_7] : memref<512x128xbf16, #tpu.memory_space<vmem>>, vector<512x128xbf16>
    tpu.vector_store %arg4[%c0_6, %c0_7], %8 {strides = array<i32>} : memref<512x128xbf16, #tpu.memory_space<vmem>>, vector<512x128xbf16>,
    return
  }
  func.func @transform_0(%arg0: i32) -> (i32, i32) {
    %c0_i32 = arith.constant 0 : i32
    %c0_i32_0 = arith.constant 0 : i32
    return %arg0, %c0_i32 : i32, i32
  }
  func.func @transform_1(%arg0: i32) -> (i32, i32) {
    %c0_i32 = arith.constant 0 : i32
    %c0_i32_0 = arith.constant 0 : i32
    %c0_i32_1 = arith.constant 0 : i32
    return %c0_i32, %c0_i32_0 : i32, i32
  }
  func.func @transform_2(%arg0: i32) -> (i32, i32) {
    %c0_i32 = arith.constant 0 : i32
    %c0_i32_0 = arith.constant 0 : i32
    %c0_i32_1 = arith.constant 0 : i32
    return %c0_i32, %c0_i32_0 : i32, i32
  }
  func.func @transform_3(%arg0: i32) -> (i32, i32) {
    %c0_i32 = arith.constant 0 : i32
    %c0_i32_0 = arith.constant 0 : i32
    return %arg0, %c0_i32 : i32, i32
  }
}

module attributes {stable_mosaic.version = 11 : i64} {
  func.func @reduce_node_update_kernel(%arg0: i32, %arg1: i32, %arg2: memref<128x512xbf16, #tpu.memory_space<vmem>>, %arg3: memref<512x128xbf16, #tpu.memory_space<vmem>>, %arg4: memref<128x1xf32, #tpu.memory_space<vmem>>, %arg5: memref<128x128xbf16, #tpu.memory_space<vmem>>, %arg6: memref<1x128xf32, #tpu.memory_space<vmem>>, %arg7: memref<128x128xbf16, #tpu.memory_space<vmem>>, %arg8: memref<128x128xf32, #tpu.memory_space<vmem>>) attributes {dimension_semantics = [#tpu.dimension_semantics<parallel>, #tpu.dimension_semantics<arbitrary>], iteration_bounds = array<i64: 3, 3>, scalar_prefetch = 0 : i64, scratch_operands = 1 : i64, tpu.core_type = #tpu.core_type<tc>, window_params = [{transform_indices = @transform_0, window_bounds = array<i64: 128, 512>}, {transform_indices = @transform_1, window_bounds = array<i64: 512, 128>}, {transform_indices = @transform_2, window_bounds = array<i64: 128, 1>}, {pipeline_mode = #tpu.pipeline_mode<synchronous>, transform_indices = @transform_3, window_bounds = array<i64: 128, 128>}, {pipeline_mode = #tpu.pipeline_mode<synchronous>, transform_indices = @transform_4, window_bounds = array<i64: 1, 128>}, {transform_indices = @transform_5, window_bounds = array<i64: 128, 128>}]} {
    %c0_i32 = arith.constant 0 : i32
    %0 = arith.cmpi eq, %arg1, %c0_i32 : i32
    %1 = arith.extui %0 : i1 to i32
    %c0_i32_0 = arith.constant 0 : i32
    %2 = arith.cmpi ne, %1, %c0_i32_0 : i32
    scf.if %2 {
      %cst_9 = arith.constant 0.000000e+00 : f32
      %12 = vector.broadcast %cst_9 : f32 to vector<128x128xf32>
      %c0_10 = arith.constant 0 : index
      %c0_11 = arith.constant 0 : index
      %13 = vector.load %arg8[%c0_10, %c0_11] : memref<128x128xf32, #tpu.memory_space<vmem>>, vector<128x128xf32>
      tpu.vector_store %arg8[%c0_10, %c0_11], %12 {strides = array<i32>} : memref<128x128xf32, #tpu.memory_space<vmem>>, vector<128x128xf32>,
    } else {
    }
    %c0 = arith.constant 0 : index
    %c0_1 = arith.constant 0 : index
    %3 = vector.load %arg8[%c0, %c0_1] : memref<128x128xf32, #tpu.memory_space<vmem>>, vector<128x128xf32>
    %c0_2 = arith.constant 0 : index
    %c0_3 = arith.constant 0 : index
    %4 = vector.load %arg2[%c0_2, %c0_3] : memref<128x512xbf16, #tpu.memory_space<vmem>>, vector<128x512xbf16>
    %c0_4 = arith.constant 0 : index
    %c0_5 = arith.constant 0 : index
    %5 = vector.load %arg3[%c0_4, %c0_5] : memref<512x128xbf16, #tpu.memory_space<vmem>>, vector<512x128xbf16>
    %cst = arith.constant dense<0.000000e+00> : vector<128x128xf32>
    %6 = tpu.matmul %4, %5, %cst {dimension_numbers = #tpu.dot_dimension_numbers<[1], [0], [0], [1], [0, 0, 1, 1], [], []>} : vector<128x512xbf16>, vector<512x128xbf16>, vector<128x128xf32> -> vector<128x128xf32>
    %7 = arith.addf %3, %6 : vector<128x128xf32>
    %c0_6 = arith.constant 0 : index
    %c0_7 = arith.constant 0 : index
    %8 = vector.load %arg8[%c0_6, %c0_7] : memref<128x128xf32, #tpu.memory_space<vmem>>, vector<128x128xf32>
    tpu.vector_store %arg8[%c0_6, %c0_7], %7 {strides = array<i32>} : memref<128x128xf32, #tpu.memory_space<vmem>>, vector<128x128xf32>,
    %c2_i32 = arith.constant 2 : i32
    %9 = arith.cmpi eq, %arg1, %c2_i32 : i32
    %10 = arith.extui %9 : i1 to i32
    %c0_i32_8 = arith.constant 0 : i32
    %11 = arith.cmpi ne, %10, %c0_i32_8 : i32
    scf.if %11 {
      %c0_9 = arith.constant 0 : index
      %c0_10 = arith.constant 0 : index
      %12 = vector.load %arg8[%c0_9, %c0_10] : memref<128x128xf32, #tpu.memory_space<vmem>>, vector<128x128xf32>
      %c0_11 = arith.constant 0 : index
      %c0_12 = arith.constant 0 : index
      %13 = vector.load %arg4[%c0_11, %c0_12] : memref<128x1xf32, #tpu.memory_space<vmem>>, vector<128x1xf32>
      %14 = vector.broadcast %13 : vector<128x1xf32> to vector<128x128xf32>
      %15 = arith.mulf %12, %14 : vector<128x128xf32>
      %16 = arith.truncf %15 : vector<128x128xf32> to vector<128x128xbf16>
      %c0_13 = arith.constant 0 : index
      %c0_14 = arith.constant 0 : index
      %17 = vector.load %arg5[%c0_13, %c0_14] : memref<128x128xbf16, #tpu.memory_space<vmem>>, vector<128x128xbf16>
      %cst_15 = arith.constant dense<0.000000e+00> : vector<128x128xf32>
      %18 = tpu.matmul %16, %17, %cst_15 {dimension_numbers = #tpu.dot_dimension_numbers<[1], [0], [0], [1], [0, 0, 1, 1], [], []>} : vector<128x128xbf16>, vector<128x128xbf16>, vector<128x128xf32> -> vector<128x128xf32>
      %c0_16 = arith.constant 0 : index
      %c0_17 = arith.constant 0 : index
      %19 = vector.load %arg6[%c0_16, %c0_17] : memref<1x128xf32, #tpu.memory_space<vmem>>, vector<1x128xf32>
      %20 = vector.broadcast %19 : vector<1x128xf32> to vector<128x128xf32>
      %21 = arith.addf %18, %20 : vector<128x128xf32>
      %cst_18 = arith.constant 0.000000e+00 : f32
      %22 = vector.broadcast %cst_18 : f32 to vector<128x128xf32>
      %23 = arith.maximumf %21, %22 : vector<128x128xf32>
      %24 = arith.truncf %23 : vector<128x128xf32> to vector<128x128xbf16>
      %c0_19 = arith.constant 0 : index
      %c0_20 = arith.constant 0 : index
      %25 = vector.load %arg7[%c0_19, %c0_20] : memref<128x128xbf16, #tpu.memory_space<vmem>>, vector<128x128xbf16>
      tpu.vector_store %arg7[%c0_19, %c0_20], %24 {strides = array<i32>} : memref<128x128xbf16, #tpu.memory_space<vmem>>, vector<128x128xbf16>,
    } else {
    }
    return
  }
  func.func @transform_0(%arg0: i32, %arg1: i32) -> (i32, i32) {
    %c0_i32 = arith.constant 0 : i32
    return %arg0, %arg1 : i32, i32
  }
  func.func @transform_1(%arg0: i32, %arg1: i32) -> (i32, i32) {
    %c0_i32 = arith.constant 0 : i32
    %c0_i32_0 = arith.constant 0 : i32
    return %arg1, %c0_i32 : i32, i32
  }
  func.func @transform_2(%arg0: i32, %arg1: i32) -> (i32, i32) {
    %c0_i32 = arith.constant 0 : i32
    %c0_i32_0 = arith.constant 0 : i32
    return %arg0, %c0_i32 : i32, i32
  }
  func.func @transform_3(%arg0: i32, %arg1: i32) -> (i32, i32) {
    %c0_i32 = arith.constant 0 : i32
    %c0_i32_0 = arith.constant 0 : i32
    %c0_i32_1 = arith.constant 0 : i32
    return %c0_i32, %c0_i32_0 : i32, i32
  }
  func.func @transform_4(%arg0: i32, %arg1: i32) -> (i32, i32) {
    %c0_i32 = arith.constant 0 : i32
    %c0_i32_0 = arith.constant 0 : i32
    %c0_i32_1 = arith.constant 0 : i32
    return %c0_i32, %c0_i32_0 : i32, i32
  }
  func.func @transform_5(%arg0: i32, %arg1: i32) -> (i32, i32) {
    %c0_i32 = arith.constant 0 : i32
    %c0_i32_0 = arith.constant 0 : i32
    return %arg0, %c0_i32 : i32, i32
  }
}

module attributes {stable_mosaic.version = 11 : i64} {
  func.func @reduce_node_update_kernel(%arg0: i32, %arg1: i32, %arg2: memref<128x512xbf16, #tpu.memory_space<vmem>>, %arg3: memref<512x128xbf16, #tpu.memory_space<vmem>>, %arg4: memref<128x1xf32, #tpu.memory_space<vmem>>, %arg5: memref<128x128xbf16, #tpu.memory_space<vmem>>, %arg6: memref<1x128xf32, #tpu.memory_space<vmem>>, %arg7: memref<128x128xf32, #tpu.memory_space<vmem>>, %arg8: memref<128x128xf32, #tpu.memory_space<vmem>>) attributes {dimension_semantics = [#tpu.dimension_semantics<parallel>, #tpu.dimension_semantics<arbitrary>], iteration_bounds = array<i64: 3, 3>, scalar_prefetch = 0 : i64, scratch_operands = 1 : i64, tpu.core_type = #tpu.core_type<tc>, window_params = [{transform_indices = @transform_0, window_bounds = array<i64: 128, 512>}, {transform_indices = @transform_1, window_bounds = array<i64: 512, 128>}, {transform_indices = @transform_2, window_bounds = array<i64: 128, 1>}, {pipeline_mode = #tpu.pipeline_mode<synchronous>, transform_indices = @transform_3, window_bounds = array<i64: 128, 128>}, {pipeline_mode = #tpu.pipeline_mode<synchronous>, transform_indices = @transform_4, window_bounds = array<i64: 1, 128>}, {transform_indices = @transform_5, window_bounds = array<i64: 128, 128>}]} {
    %c0_i32 = arith.constant 0 : i32
    %0 = arith.cmpi eq, %arg1, %c0_i32 : i32
    %1 = arith.extui %0 : i1 to i32
    %c0_i32_0 = arith.constant 0 : i32
    %2 = arith.cmpi ne, %1, %c0_i32_0 : i32
    scf.if %2 {
      %cst_9 = arith.constant 0.000000e+00 : f32
      %12 = vector.broadcast %cst_9 : f32 to vector<128x128xf32>
      %c0_10 = arith.constant 0 : index
      %c0_11 = arith.constant 0 : index
      %13 = vector.load %arg8[%c0_10, %c0_11] : memref<128x128xf32, #tpu.memory_space<vmem>>, vector<128x128xf32>
      tpu.vector_store %arg8[%c0_10, %c0_11], %12 {strides = array<i32>} : memref<128x128xf32, #tpu.memory_space<vmem>>, vector<128x128xf32>,
    } else {
    }
    %c0 = arith.constant 0 : index
    %c0_1 = arith.constant 0 : index
    %3 = vector.load %arg8[%c0, %c0_1] : memref<128x128xf32, #tpu.memory_space<vmem>>, vector<128x128xf32>
    %c0_2 = arith.constant 0 : index
    %c0_3 = arith.constant 0 : index
    %4 = vector.load %arg2[%c0_2, %c0_3] : memref<128x512xbf16, #tpu.memory_space<vmem>>, vector<128x512xbf16>
    %c0_4 = arith.constant 0 : index
    %c0_5 = arith.constant 0 : index
    %5 = vector.load %arg3[%c0_4, %c0_5] : memref<512x128xbf16, #tpu.memory_space<vmem>>, vector<512x128xbf16>
    %cst = arith.constant dense<0.000000e+00> : vector<128x128xf32>
    %6 = tpu.matmul %4, %5, %cst {dimension_numbers = #tpu.dot_dimension_numbers<[1], [0], [0], [1], [0, 0, 1, 1], [], []>} : vector<128x512xbf16>, vector<512x128xbf16>, vector<128x128xf32> -> vector<128x128xf32>
    %7 = arith.addf %3, %6 : vector<128x128xf32>
    %c0_6 = arith.constant 0 : index
    %c0_7 = arith.constant 0 : index
    %8 = vector.load %arg8[%c0_6, %c0_7] : memref<128x128xf32, #tpu.memory_space<vmem>>, vector<128x128xf32>
    tpu.vector_store %arg8[%c0_6, %c0_7], %7 {strides = array<i32>} : memref<128x128xf32, #tpu.memory_space<vmem>>, vector<128x128xf32>,
    %c2_i32 = arith.constant 2 : i32
    %9 = arith.cmpi eq, %arg1, %c2_i32 : i32
    %10 = arith.extui %9 : i1 to i32
    %c0_i32_8 = arith.constant 0 : i32
    %11 = arith.cmpi ne, %10, %c0_i32_8 : i32
    scf.if %11 {
      %c0_9 = arith.constant 0 : index
      %c0_10 = arith.constant 0 : index
      %12 = vector.load %arg8[%c0_9, %c0_10] : memref<128x128xf32, #tpu.memory_space<vmem>>, vector<128x128xf32>
      %c0_11 = arith.constant 0 : index
      %c0_12 = arith.constant 0 : index
      %13 = vector.load %arg4[%c0_11, %c0_12] : memref<128x1xf32, #tpu.memory_space<vmem>>, vector<128x1xf32>
      %14 = vector.broadcast %13 : vector<128x1xf32> to vector<128x128xf32>
      %15 = arith.mulf %12, %14 : vector<128x128xf32>
      %16 = arith.truncf %15 : vector<128x128xf32> to vector<128x128xbf16>
      %c0_13 = arith.constant 0 : index
      %c0_14 = arith.constant 0 : index
      %17 = vector.load %arg5[%c0_13, %c0_14] : memref<128x128xbf16, #tpu.memory_space<vmem>>, vector<128x128xbf16>
      %cst_15 = arith.constant dense<0.000000e+00> : vector<128x128xf32>
      %18 = tpu.matmul %16, %17, %cst_15 {dimension_numbers = #tpu.dot_dimension_numbers<[1], [0], [0], [1], [0, 0, 1, 1], [], []>} : vector<128x128xbf16>, vector<128x128xbf16>, vector<128x128xf32> -> vector<128x128xf32>
      %c0_16 = arith.constant 0 : index
      %c0_17 = arith.constant 0 : index
      %19 = vector.load %arg6[%c0_16, %c0_17] : memref<1x128xf32, #tpu.memory_space<vmem>>, vector<1x128xf32>
      %20 = vector.broadcast %19 : vector<1x128xf32> to vector<128x128xf32>
      %21 = arith.addf %18, %20 : vector<128x128xf32>
      %cst_18 = arith.constant 0.000000e+00 : f32
      %22 = vector.broadcast %cst_18 : f32 to vector<128x128xf32>
      %23 = arith.maximumf %21, %22 : vector<128x128xf32>
      %c0_19 = arith.constant 0 : index
      %c0_20 = arith.constant 0 : index
      %24 = vector.load %arg7[%c0_19, %c0_20] : memref<128x128xf32, #tpu.memory_space<vmem>>, vector<128x128xf32>
      tpu.vector_store %arg7[%c0_19, %c0_20], %23 {strides = array<i32>} : memref<128x128xf32, #tpu.memory_space<vmem>>, vector<128x128xf32>,
    } else {
    }
    return
  }
  func.func @transform_0(%arg0: i32, %arg1: i32) -> (i32, i32) {
    %c0_i32 = arith.constant 0 : i32
    return %arg0, %arg1 : i32, i32
  }
  func.func @transform_1(%arg0: i32, %arg1: i32) -> (i32, i32) {
    %c0_i32 = arith.constant 0 : i32
    %c0_i32_0 = arith.constant 0 : i32
    return %arg1, %c0_i32 : i32, i32
  }
  func.func @transform_2(%arg0: i32, %arg1: i32) -> (i32, i32) {
    %c0_i32 = arith.constant 0 : i32
    %c0_i32_0 = arith.constant 0 : i32
    return %arg0, %c0_i32 : i32, i32
  }
  func.func @transform_3(%arg0: i32, %arg1: i32) -> (i32, i32) {
    %c0_i32 = arith.constant 0 : i32
    %c0_i32_0 = arith.constant 0 : i32
    %c0_i32_1 = arith.constant 0 : i32
    return %c0_i32, %c0_i32_0 : i32, i32
  }
  func.func @transform_4(%arg0: i32, %arg1: i32) -> (i32, i32) {
    %c0_i32 = arith.constant 0 : i32
    %c0_i32_0 = arith.constant 0 : i32
    %c0_i32_1 = arith.constant 0 : i32
    return %c0_i32, %c0_i32_0 : i32, i32
  }
  func.func @transform_5(%arg0: i32, %arg1: i32) -> (i32, i32) {
    %c0_i32 = arith.constant 0 : i32
    %c0_i32_0 = arith.constant 0 : i32
    return %arg0, %c0_i32 : i32, i32
  }
}

</mosaic_0001>

<llo_original>
// kernel: gnn_forward.5
$region0: #{gnn_forward.5}
  #allocation0 [shape = 'u32[]', space=smem, size = 0x4, offset = 0x4, fixed_abs, tag = 'smem constant byte address 0x4 - core index']
  #allocation1 [shape = 'u32[144,128]{1,0:T(1,128)}', space=vmem, size = 0x12000, scoped, tag = 'internal scratch']
  #allocation2 [shape = 'f32[128,128]{1,0:T(8,128)}', space=vmem, size = 0x10000, scoped, tag = 'scratch operand']
  %s0 = inlined_call_operand.vmem [shape: bf16[384,1536], index: 0, kind: input, shape index: {}]
  %s1 = inlined_call_operand.vmem [shape: bf16[1536,128], index: 1, kind: input, shape index: {}]
  %s2 = inlined_call_operand.vmem [shape: f32[384,1], index: 2, kind: input, shape index: {}]
  %s3 = inlined_call_operand.vmem [shape: bf16[128,128], index: 3, kind: input, shape index: {}]
  %s4 = inlined_call_operand.vmem [shape: f32[1,128], index: 4, kind: input, shape index: {}]
  %s5 = inlined_call_operand.vmem [shape: bf16[384,128], index: 5, kind: output, shape index: {}]
  %s6 = sld [smem:[#allocation0]]
  $region84: #{gnn_forward.5} parent=0
    _
  %s8 = ssub.s32 1, %s6
  %s9 = scalar_select 0, %s8, %s6
  $region1: #{gnn_forward.5} parent=0
    #allocation3 [shape = 'u8[262144]{0}', space=vmem, size = 0x40000, scoped, tag = 'input window, operand 0']
    loop: start=0, step=1, limit=11
    $region2: #{gnn_forward.5} parent=1 // loop_pre_header
      _
    $region3: #{gnn_forward.5} parent=1 // loop_header
      %s11 = sphi 0, %s15
      %p12 = scmp.ge.s32.totalorder %s11, 11
      %s18 = sphi 0, %s30
      %s19 = sphi 0, %s26
      %s20 = sphi 0, %s18
      %s21 = sphi 0, %s19
      %s22 = sphi 0, %s20
      %s23 = sphi 0, %s21
      %s35 = sphi 0, %s37
      %s38 = sphi 0, %s35
      %s39 = sphi 0, %s38
      %s55 = sphi 0, %s39
      %s61 = sphi 0, %s63
      %s64 = sphi 0, %s61
      %s65 = sphi 0, %s64
      %s81 = sphi 0, %s65
      %s87 = sphi 0, %s89
      %s90 = sphi 0, %s87
      %s91 = sphi 0, %s90
      %s107 = sphi 0, %s91
      %s111 = sphi 0, %s111
      %s113 = sphi 0, %s111
      %s114 = sphi 0, %s113
      %s128 = sphi 0, %s114
      %s132 = sphi 0, %s132
      %s134 = sphi 0, %s132
      %s135 = sphi 0, %s134
      %s149 = sphi 0, %s135
      %s155 = sphi 0, %s157
      %s158 = sphi 0, %s155
      %s159 = sphi 0, %s158
      %s175 = sphi 0, %s159
    $region4: #{gnn_forward.5} parent=1 // loop_header_branch
      %14 = sbr.rel (%p12) target = $region8
    $region5: #{gnn_forward.5} parent=1 // loop_body
      %s16 = ssub.s32 %s11, 1
      %s17 = ssub.s32 %s11, 2
      %s24 = sadd.s32 1, %s19
      %p25 = scmp.ge.s32.totalorder %s24, 3
      %s26 = scalar_select %p25, 0, %s24
      %s27 = sadd.s32 1, %s18
      %s28 = scalar_select %p25, %s27, %s18
      %p29 = scmp.ge.s32.totalorder %s28, 3
      %s30 = scalar_select %p29, 0, %s28
      %s31 = ssub.s32 %s18, %s30
      %s32 = ssub.s32 %s19, %s26
      %s33 = sor.u32 %s31, %s32
      %p34 = scmp.eq.s32.totalorder %s33, 0
      %s36 = sadd.s32 %s35, 1
      %s37 = scalar_select %p34, %s35, %s36
      %p40 = pneg %p34
      %p41 = scmp.eq.s32.totalorder %s11, 8
      %p42 = por %p40, %p41
      %p43 = scmp.ne.s32.totalorder %s35, %s38
      %p44 = scmp.eq.s32.totalorder %s11, 0
      %p45 = por %p43, %p44
      %p46 = scmp.ne.s32.totalorder %s35, %s38
      %p47 = scmp.eq.s32.totalorder %s16, 8
      %p48 = por %p46, %p47
      %p49 = scmp.ne.s32.totalorder %s38, %s39
      %p50 = scmp.eq.s32.totalorder %s16, 0
      %p51 = por %p49, %p50
      %p52 = scmp.ne.s32.totalorder %s38, %s39
      %p53 = scmp.eq.s32.totalorder %s17, 8
      %p54 = por %p52, %p53
      %p56 = scmp.ne.s32.totalorder %s39, %s55
      %p57 = scmp.eq.s32.totalorder %s17, 0
      %p58 = por %p56, %p57
      %s59 = ssub.s32 %s19, %s26
      %p60 = scmp.eq.s32.totalorder %s59, 0
      %s62 = sadd.s32 %s61, 1
      %s63 = scalar_select %p60, %s61, %s62
      %p66 = pneg %p60
      %p67 = scmp.eq.s32.totalorder %s11, 8
      %p68 = por %p66, %p67
      %p69 = scmp.ne.s32.totalorder %s61, %s64
      %p70 = scmp.eq.s32.totalorder %s11, 0
      %p71 = por %p69, %p70
      %p72 = scmp.ne.s32.totalorder %s61, %s64
      %p73 = scmp.eq.s32.totalorder %s16, 8
      %p74 = por %p72, %p73
      %p75 = scmp.ne.s32.totalorder %s64, %s65
      %p76 = scmp.eq.s32.totalorder %s16, 0
      %p77 = por %p75, %p76
      %p78 = scmp.ne.s32.totalorder %s64, %s65
      %p79 = scmp.eq.s32.totalorder %s17, 8
      %p80 = por %p78, %p79
      %p82 = scmp.ne.s32.totalorder %s65, %s81
      %p83 = scmp.eq.s32.totalorder %s17, 0
      %p84 = por %p82, %p83
      %s85 = ssub.s32 %s18, %s30
      %p86 = scmp.eq.s32.totalorder %s85, 0
      %s88 = sadd.s32 %s87, 1
      %s89 = scalar_select %p86, %s87, %s88
      %p92 = pneg %p86
      %p93 = scmp.eq.s32.totalorder %s11, 8
      %p94 = por %p92, %p93
      %p95 = scmp.ne.s32.totalorder %s87, %s90
      %p96 = scmp.eq.s32.totalorder %s11, 0
      %p97 = por %p95, %p96
      %p98 = scmp.ne.s32.totalorder %s87, %s90
      %p99 = scmp.eq.s32.totalorder %s16, 8
      %p100 = por %p98, %p99
      %p101 = scmp.ne.s32.totalorder %s90, %s91
      %p102 = scmp.eq.s32.totalorder %s16, 0
      %p103 = por %p101, %p102
      %p104 = scmp.ne.s32.totalorder %s90, %s91
      %p105 = scmp.eq.s32.totalorder %s17, 8
      %p106 = por %p104, %p105
      %p108 = scmp.ne.s32.totalorder %s91, %s107
      %p109 = scmp.eq.s32.totalorder %s17, 0
      %p110 = por %p108, %p109
      %s112 = sadd.s32 %s111, 1
      %p115 = scmp.eq.s32.totalorder %s11, 8
      %p116 = scmp.ne.s32.totalorder %s111, %s113
      %p117 = scmp.eq.s32.totalorder %s11, 0
      %p118 = por %p116, %p117
      %p119 = scmp.ne.s32.totalorder %s111, %s113
      %p120 = scmp.eq.s32.totalorder %s16, 8
      %p121 = por %p119, %p120
      %p122 = scmp.ne.s32.totalorder %s113, %s114
      %p123 = scmp.eq.s32.totalorder %s16, 0
      %p124 = por %p122, %p123
      %p125 = scmp.ne.s32.totalorder %s113, %s114
      %p126 = scmp.eq.s32.totalorder %s17, 8
      %p127 = por %p125, %p126
      %p129 = scmp.ne.s32.totalorder %s114, %s128
      %p130 = scmp.eq.s32.totalorder %s17, 0
      %p131 = por %p129, %p130
      %s133 = sadd.s32 %s132, 1
      %p136 = scmp.eq.s32.totalorder %s11, 8
      %p137 = scmp.ne.s32.totalorder %s132, %s134
      %p138 = scmp.eq.s32.totalorder %s11, 0
      %p139 = por %p137, %p138
      %p140 = scmp.ne.s32.totalorder %s132, %s134
      %p141 = scmp.eq.s32.totalorder %s16, 8
      %p142 = por %p140, %p141
      %p143 = scmp.ne.s32.totalorder %s134, %s135
      %p144 = scmp.eq.s32.totalorder %s16, 0
      %p145 = por %p143, %p144
      %p146 = scmp.ne.s32.totalorder %s134, %s135
      %p147 = scmp.eq.s32.totalorder %s17, 8
      %p148 = por %p146, %p147
      %p150 = scmp.ne.s32.totalorder %s135, %s149
      %p151 = scmp.eq.s32.totalorder %s17, 0
      %p152 = por %p150, %p151
      %s153 = ssub.s32 %s18, %s30
      %p154 = scmp.eq.s32.totalorder %s153, 0
      %s156 = sadd.s32 %s155, 1
      %s157 = scalar_select %p154, %s155, %s156
      %p160 = pneg %p154
      %p161 = scmp.eq.s32.totalorder %s11, 8
      %p162 = por %p160, %p161
      %p163 = scmp.ne.s32.totalorder %s155, %s158
      %p164 = scmp.eq.s32.totalorder %s11, 0
      %p165 = por %p163, %p164
      %p166 = scmp.ne.s32.totalorder %s155, %s158
      %p167 = scmp.eq.s32.totalorder %s16, 8
      %p168 = por %p166, %p167
      %p169 = scmp.ne.s32.totalorder %s158, %s159
      %p170 = scmp.eq.s32.totalorder %s16, 0
      %p171 = por %p169, %p170
      %p172 = scmp.ne.s32.totalorder %s158, %s159
      %p173 = scmp.eq.s32.totalorder %s17, 8
      %p174 = por %p172, %p173
      %p176 = scmp.ne.s32.totalorder %s159, %s175
      %p177 = scmp.eq.s32.totalorder %s17, 0
      %p178 = por %p176, %p177
      %p179 = scmp.le.s32.totalorder 1, %s11
      %p180 = scmp.lt.s32.totalorder %s11, 10
      %p181 = pnand %p179, %p180
      %p182 = pneg %p181
      // Predicated region
      $region9: #{gnn_forward.5} parent=5 // pred_check
        _
      $region10: #{gnn_forward.5} parent=5 // pred_check_branch
        %184 = sbr.rel (%p181) target = $region12
      $region11: #{gnn_forward.5} parent=5 // pred_region
        %s185 = ssub.s32 %s11, 1
        // Predicated region
        $region13: #{gnn_forward.5} parent=11 // pred_check
          %p186 = pneg %p124
        $region14: #{gnn_forward.5} parent=11 // pred_check_branch
          %188 = sbr.rel (%p186) target = $region16
        $region15: #{gnn_forward.5} parent=11 // pred_region
          _
        $region16: #{gnn_forward.5} parent=11 // pred_fallthru
          _
        // Predicated region
        $region17: #{gnn_forward.5} parent=11 // pred_check
          %p189 = pneg %p145
        $region18: #{gnn_forward.5} parent=11 // pred_check_branch
          %191 = sbr.rel (%p189) target = $region20
        $region19: #{gnn_forward.5} parent=11 // pred_region
          _
        $region20: #{gnn_forward.5} parent=11 // pred_fallthru
          _
      $region12: #{gnn_forward.5} parent=5 // pred_fallthru
        _
      %p192 = scmp.lt.s32.totalorder %s11, 9
      // Predicated region
      $region21: #{gnn_forward.5} parent=5 // pred_check
        %p193 = pneg %p192
      $region22: #{gnn_forward.5} parent=5 // pred_check_branch
        %195 = sbr.rel (%p193) target = $region24
      $region23: #{gnn_forward.5} parent=5 // pred_region
        // Predicated region
        $region25: #{gnn_forward.5} parent=23 // pred_check
          %p196 = pneg %p45
        $region26: #{gnn_forward.5} parent=23 // pred_check_branch
          %198 = sbr.rel (%p196) target = $region28
        $region27: #{gnn_forward.5} parent=23 // pred_region
          %s199 = sand.u32 %s35, 1
          %s200 = sand.u32 %s35, 1
          %s201 = smul.addr %s200, 256
          %s202 = scalar_lea.vmem [#allocation3], %s201
          %s203 = smul.u32 16, %s18
          %s204 = smul.u32 4, %s19
          %s205 = smul.addr %s203, 12
          %s206 = sadd.s32 %s204, %s205
          %s207 = smul.addr %s206, 4
          %s208 = scalar_lea.vmem %s0, %s207
          // Predicated region
          $region29: #{gnn_forward.5} parent=27 // pred_check
            _
          $region30: #{gnn_forward.5} parent=27 // pred_check_branch
            %210 = sbr.rel (0) target = $region32
          $region31: #{gnn_forward.5} parent=27 // pred_region
            // Predicated region
            $region33: #{gnn_forward.5} parent=31 // pred_check
              _
            $region34: #{gnn_forward.5} parent=31 // pred_check_branch
              %212 = sbr.rel (0) target = $region36
            $region35: #{gnn_forward.5} parent=31 // pred_region
              loop: start=0, step=1, limit=1
              $region37: #{gnn_forward.5} parent=35 // loop_pre_header
                _
              $region38: #{gnn_forward.5} parent=35 // loop_header
                %s214 = sphi 0, %s218
                %p215 = scmp.ge.s32.totalorder %s214, 1
                %s219 = sphi %s208, %s208
                %s220 = sphi %s202, %s202
              $region39: #{gnn_forward.5} parent=35 // loop_header_branch
                %217 = sbr.rel (%p215) target = $region43
              $region40: #{gnn_forward.5} parent=35 // loop_body
                %v221 = vld [vmem:[%s219] sm:$0xff]
                %222 = vst [vmem:[%s220] sm:$0xff] %v221
                %v223 = vld [vmem:[%s219 + $0x8] sm:$0xff]
                %224 = vst [vmem:[%s220 + $0x8] sm:$0xff] %v223
                %v225 = vld [vmem:[%s219 + $0x30] sm:$0xff]
                %226 = vst [vmem:[%s220 + $0x10] sm:$0xff] %v225
                %v227 = vld [vmem:[%s219 + $0x38] sm:$0xff]
                %228 = vst [vmem:[%s220 + $0x18] sm:$0xff] %v227
                %v229 = vld [vmem:[%s219 + $0x60] sm:$0xff]
                %230 = vst [vmem:[%s220 + $0x20] sm:$0xff] %v229
                %v231 = vld [vmem:[%s219 + $0x68] sm:$0xff]
                %232 = vst [vmem:[%s220 + $0x28] sm:$0xff] %v231
                %v233 = vld [vmem:[%s219 + $0x90] sm:$0xff]
                %234 = vst [vmem:[%s220 + $0x30] sm:$0xff] %v233
                %v235 = vld [vmem:[%s219 + $0x98] sm:$0xff]
                %236 = vst [vmem:[%s220 + $0x38] sm:$0xff] %v235
                %v237 = vld [vmem:[%s219 + $0xc0] sm:$0xff]
                %238 = vst [vmem:[%s220 + $0x40] sm:$0xff] %v237
                %v239 = vld [vmem:[%s219 + $0xc8] sm:$0xff]
                %240 = vst [vmem:[%s220 + $0x48] sm:$0xff] %v239
                %v241 = vld [vmem:[%s219 + $0xf0] sm:$0xff]
                %242 = vst [vmem:[%s220 + $0x50] sm:$0xff] %v241
                %v243 = vld [vmem:[%s219 + $0xf8] sm:$0xff]
                %244 = vst [vmem:[%s220 + $0x58] sm:$0xff] %v243
                %v245 = vld [vmem:[%s219 + $0x120] sm:$0xff]
                %246 = vst [vmem:[%s220 + $0x60] sm:$0xff] %v245
                %v247 = vld [vmem:[%s219 + $0x128] sm:$0xff]
                %248 = vst [vmem:[%s220 + $0x68] sm:$0xff] %v247
                %v249 = vld [vmem:[%s219 + $0x150] sm:$0xff]
                %250 = vst [vmem:[%s220 + $0x70] sm:$0xff] %v249
                %v251 = vld [vmem:[%s219 + $0x158] sm:$0xff]
                %252 = vst [vmem:[%s220 + $0x78] sm:$0xff] %v251
                %v253 = vld [vmem:[%s219 + $0x180] sm:$0xff]
                %254 = vst [vmem:[%s220 + $0x80] sm:$0xff] %v253
                %v255 = vld [vmem:[%s219 + $0x188] sm:$0xff]
                %256 = vst [vmem:[%s220 + $0x88] sm:$0xff] %v255
                %v257 = vld [vmem:[%s219 + $0x1b0] sm:$0xff]
                %258 = vst [vmem:[%s220 + $0x90] sm:$0xff] %v257
                %v259 = vld [vmem:[%s219 + $0x1b8] sm:$0xff]
                %260 = vst [vmem:[%s220 + $0x98] sm:$0xff] %v259
                %v261 = vld [vmem:[%s219 + $0x1e0] sm:$0xff]
                %262 = vst [vmem:[%s220 + $0xa0] sm:$0xff] %v261
                %v263 = vld [vmem:[%s219 + $0x1e8] sm:$0xff]
                %264 = vst [vmem:[%s220 + $0xa8] sm:$0xff] %v263
                %v265 = vld [vmem:[%s219 + $0x210] sm:$0xff]
                %266 = vst [vmem:[%s220 + $0xb0] sm:$0xff] %v265
                %v267 = vld [vmem:[%s219 + $0x218] sm:$0xff]
                %268 = vst [vmem:[%s220 + $0xb8] sm:$0xff] %v267
                %v269 = vld [vmem:[%s219 + $0x240] sm:$0xff]
                %270 = vst [vmem:[%s220 + $0xc0] sm:$0xff] %v269
                %v271 = vld [vmem:[%s219 + $0x248] sm:$0xff]
                %272 = vst [vmem:[%s220 + $0xc8] sm:$0xff] %v271
                %v273 = vld [vmem:[%s219 + $0x270] sm:$0xff]
                %274 = vst [vmem:[%s220 + $0xd0] sm:$0xff] %v273
                %v275 = vld [vmem:[%s219 + $0x278] sm:$0xff]
                %276 = vst [vmem:[%s220 + $0xd8] sm:$0xff] %v275
                %v277 = vld [vmem:[%s219 + $0x2a0] sm:$0xff]
                %278 = vst [vmem:[%s220 + $0xe0] sm:$0xff] %v277
                %v279 = vld [vmem:[%s219 + $0x2a8] sm:$0xff]
                %280 = vst [vmem:[%s220 + $0xe8] sm:$0xff] %v279
                %v281 = vld [vmem:[%s219 + $0x2d0] sm:$0xff]
                %282 = vst [vmem:[%s220 + $0xf0] sm:$0xff] %v281
                %v283 = vld [vmem:[%s219 + $0x2d8] sm:$0xff]
                %284 = vst [vmem:[%s220 + $0xf8] sm:$0xff] %v283
              $region41: #{gnn_forward.5} parent=35 // loop_footer
                %s218 = sadd.s32 1, %s214
              $region42: #{gnn_forward.5} parent=35 // loop_footer_branch
                %213 = sbr.rel target = $region38
              $region43: #{gnn_forward.5} parent=35 // loop_exit
                _
            $region36: #{gnn_forward.5} parent=31 // pred_fallthru
              _
            // Predicated region
            $region44: #{gnn_forward.5} parent=31 // pred_check
              _
            $region45: #{gnn_forward.5} parent=31 // pred_check_branch
              %286 = sbr.rel target = $region47
            $region46: #{gnn_forward.5} parent=31 // pred_region
              _
            $region47: #{gnn_forward.5} parent=31 // pred_fallthru
              _
          $region32: #{gnn_forward.5} parent=27 // pred_fallthru
            _
          %287 = vnop
        $region28: #{gnn_forward.5} parent=23 // pred_fallthru
          _
        // Predicated region
        $region48: #{gnn_forward.5} parent=23 // pred_check
          %p288 = pneg %p71
        $region49: #{gnn_forward.5} parent=23 // pred_check_branch
          %290 = sbr.rel (%p288) target = $region51
        $region50: #{gnn_forward.5} parent=23 // pred_region
          %s291 = smul.u32 64, %s19
          %p292 = scmp.lt.s32.totalorder %s291, 191
          %s293 = scalar_select %p292, %s291, 191
          %s294 = smul.addr %s293, 4
          %s295 = scalar_lea.vmem %s1, %s294
          %s296 = smul.u32 64, %s19
        $region51: #{gnn_forward.5} parent=23 // pred_fallthru
          _
        // Predicated region
        $region52: #{gnn_forward.5} parent=23 // pred_check
          %p297 = pneg %p97
        $region53: #{gnn_forward.5} parent=23 // pred_check_branch
          %299 = sbr.rel (%p297) target = $region55
        $region54: #{gnn_forward.5} parent=23 // pred_region
          %s300 = smul.u32 16, %s18
          %p301 = scmp.lt.s32.totalorder %s300, 47
          %s302 = scalar_select %p301, %s300, 47
          %s303 = smul.addr %s302, 8
          %s304 = scalar_lea.vmem %s2, %s303
          %s305 = smul.u32 16, %s18
        $region55: #{gnn_forward.5} parent=23 // pred_fallthru
          _
      $region24: #{gnn_forward.5} parent=5 // pred_fallthru
        _
      %p306 = scmp.le.s32.totalorder 1, %s11
      %p307 = scmp.lt.s32.totalorder %s11, 10
      %p308 = pnand %p306, %p307
      %p309 = pneg %p308
      // Predicated region
      $region56: #{gnn_forward.5} parent=5 // pred_check
        _
      $region57: #{gnn_forward.5} parent=5 // pred_check_branch
        %311 = sbr.rel (%p308) target = $region59
      $region58: #{gnn_forward.5} parent=5 // pred_region
        %s312 = ssub.s32 %s11, 1
        %s313 = sand.u32 %s38, 1
        %s314 = sand.u32 %s38, 1
        %s315 = smul.addr %s314, 256
        %s316 = scalar_lea.vmem [#allocation3], %s315
        // Predicated region
        $region60: #{gnn_forward.5} parent=58 // pred_check
          %p317 = pneg %p51
        $region61: #{gnn_forward.5} parent=58 // pred_check_branch
          %319 = sbr.rel (%p317) target = $region63
        $region62: #{gnn_forward.5} parent=58 // pred_region
          _
        $region63: #{gnn_forward.5} parent=58 // pred_fallthru
          _
        %s320 = sand.u32 %s38, 1
        %s321 = sand.u32 %s38, 1
        %s322 = smul.addr %s321, 256
        %s323 = scalar_lea.vmem [#allocation3], %s322
        %p324 = pneg %p51
        %p325 = pneg %p48
        %s326 = smul.u32 64, %s21
        %p327 = scmp.lt.s32.totalorder %s326, 191
        %s328 = scalar_select %p327, %s326, 191
        %s329 = smul.addr %s328, 4
        %s330 = scalar_lea.vmem %s1, %s329
        %p331 = pneg %p77
        %p332 = pneg %p74
        %s333 = smul.u32 16, %s20
        %p334 = scmp.lt.s32.totalorder %s333, 47
        %s335 = scalar_select %p334, %s333, 47
        %s336 = smul.addr %s335, 8
        %s337 = scalar_lea.vmem %s2, %s336
        %p338 = pneg %p103
        %p339 = pneg %p100
        %p340 = pneg %p124
        %p341 = pneg %p121
        %p342 = pneg %p145
        %p343 = pneg %p142
        %p344 = pneg %p171
        %p345 = pneg %p168
        %s346 = smul.u32 16, %s20
        %p347 = scmp.lt.s32.totalorder %s346, 47
        %s348 = scalar_select %p347, %s346, 47
        %s349 = smul.addr %s348, 4
        %s350 = scalar_lea.vmem %s5, %s349
        %s351 = smul.u32 16, %s20
        %s352 = smul.u32 4, %s21
        %s353 = smul.u32 64, %s21
        %p354 = scmp.lt.s32.totalorder %s353, 191
        %s355 = scalar_select %p354, %s353, 191
        %s356 = smul.addr %s355, 4
        %s357 = scalar_lea.vmem %s1, %s356
        %s358 = smul.u32 64, %s21
        %s359 = smul.u32 16, %s20
        %p360 = scmp.lt.s32.totalorder %s359, 47
        %s361 = scalar_select %p360, %s359, 47
        %s362 = smul.addr %s361, 8
        %s363 = scalar_lea.vmem %s2, %s362
        %s364 = smul.u32 16, %s20
        %s365 = smul.u32 16, %s20
        %p366 = scmp.lt.s32.totalorder %s365, 47
        %s367 = scalar_select %p366, %s365, 47
        %s368 = smul.addr %s367, 4
        %s369 = scalar_lea.vmem %s5, %s368
        %s370 = smul.u32 16, %s20
        %p372 = scmp.eq.s32.totalorder %s21, 0
        // Predicated region
        $region64: #{gnn_forward.5} parent=58 // pred_check
          %p373 = pneg %p372
        $region65: #{gnn_forward.5} parent=58 // pred_check_branch
          %375 = sbr.rel (%p373) target = $region67
        $region66: #{gnn_forward.5} parent=58 // pred_region
          %376 = vst [vmem:[#allocation2] sm:$0xff] 0.0
          %377 = vst [vmem:[#allocation2 + $0x8] sm:$0xff] 0.0
          %378 = vst [vmem:[#allocation2 + $0x10] sm:$0xff] 0.0
          %379 = vst [vmem:[#allocation2 + $0x18] sm:$0xff] 0.0
          %380 = vst [vmem:[#allocation2 + $0x20] sm:$0xff] 0.0
          %381 = vst [vmem:[#allocation2 + $0x28] sm:$0xff] 0.0
          %382 = vst [vmem:[#allocation2 + $0x30] sm:$0xff] 0.0
          %383 = vst [vmem:[#allocation2 + $0x38] sm:$0xff] 0.0
          %384 = vst [vmem:[#allocation2 + $0x40] sm:$0xff] 0.0
          %385 = vst [vmem:[#allocation2 + $0x48] sm:$0xff] 0.0
          %386 = vst [vmem:[#allocation2 + $0x50] sm:$0xff] 0.0
          %387 = vst [vmem:[#allocation2 + $0x58] sm:$0xff] 0.0
          %388 = vst [vmem:[#allocation2 + $0x60] sm:$0xff] 0.0
          %389 = vst [vmem:[#allocation2 + $0x68] sm:$0xff] 0.0
          %390 = vst [vmem:[#allocation2 + $0x70] sm:$0xff] 0.0
          %391 = vst [vmem:[#allocation2 + $0x78] sm:$0xff] 0.0
        $region67: #{gnn_forward.5} parent=58 // pred_fallthru
          _
        %v392 = vld [vmem:[#allocation2] sm:$0xff]
        %v393 = vld [vmem:[#allocation2 + $0x8] sm:$0xff]
        %v394 = vld [vmem:[#allocation2 + $0x10] sm:$0xff]
        %v395 = vld [vmem:[#allocation2 + $0x18] sm:$0xff]
        %v396 = vld [vmem:[#allocation2 + $0x20] sm:$0xff]
        %v397 = vld [vmem:[#allocation2 + $0x28] sm:$0xff]
        %v398 = vld [vmem:[#allocation2 + $0x30] sm:$0xff]
        %v399 = vld [vmem:[#allocation2 + $0x38] sm:$0xff]
        %v400 = vld [vmem:[#allocation2 + $0x40] sm:$0xff]
        %v401 = vld [vmem:[#allocation2 + $0x48] sm:$0xff]
        %v402 = vld [vmem:[#allocation2 + $0x50] sm:$0xff]
        %v403 = vld [vmem:[#allocation2 + $0x58] sm:$0xff]
        %v404 = vld [vmem:[#allocation2 + $0x60] sm:$0xff]
        %v405 = vld [vmem:[#allocation2 + $0x68] sm:$0xff]
        %v406 = vld [vmem:[#allocation2 + $0x70] sm:$0xff]
        %v407 = vld [vmem:[#allocation2 + $0x78] sm:$0xff]
        %v408 = vld [vmem:[%s316] sm:$0xff]
        %v409 = vld [vmem:[%s316 + $0x8] sm:$0xff]
        %v410 = vld [vmem:[%s316 + $0x10] sm:$0xff]
        %v411 = vld [vmem:[%s316 + $0x18] sm:$0xff]
        %v412 = vld [vmem:[%s316 + $0x20] sm:$0xff]
        %v413 = vld [vmem:[%s316 + $0x28] sm:$0xff]
        %v414 = vld [vmem:[%s316 + $0x30] sm:$0xff]
        %v415 = vld [vmem:[%s316 + $0x38] sm:$0xff]
        %v416 = vld [vmem:[%s316 + $0x40] sm:$0xff]
        %v417 = vld [vmem:[%s316 + $0x48] sm:$0xff]
        %v418 = vld [vmem:[%s316 + $0x50] sm:$0xff]
        %v419 = vld [vmem:[%s316 + $0x58] sm:$0xff]
        %v420 = vld [vmem:[%s316 + $0x60] sm:$0xff]
        %v421 = vld [vmem:[%s316 + $0x68] sm:$0xff]
        %v422 = vld [vmem:[%s316 + $0x70] sm:$0xff]
        %v423 = vld [vmem:[%s316 + $0x78] sm:$0xff]
        %v424 = vld [vmem:[%s316 + $0x80] sm:$0xff]
        %v425 = vld [vmem:[%s316 + $0x88] sm:$0xff]
        %v426 = vld [vmem:[%s316 + $0x90] sm:$0xff]
        %v427 = vld [vmem:[%s316 + $0x98] sm:$0xff]
        %v428 = vld [vmem:[%s316 + $0xa0] sm:$0xff]
        %v429 = vld [vmem:[%s316 + $0xa8] sm:$0xff]
        %v430 = vld [vmem:[%s316 + $0xb0] sm:$0xff]
        %v431 = vld [vmem:[%s316 + $0xb8] sm:$0xff]
        %v432 = vld [vmem:[%s316 + $0xc0] sm:$0xff]
        %v433 = vld [vmem:[%s316 + $0xc8] sm:$0xff]
        %v434 = vld [vmem:[%s316 + $0xd0] sm:$0xff]
        %v435 = vld [vmem:[%s316 + $0xd8] sm:$0xff]
        %v436 = vld [vmem:[%s316 + $0xe0] sm:$0xff]
        %v437 = vld [vmem:[%s316 + $0xe8] sm:$0xff]
        %v438 = vld [vmem:[%s316 + $0xf0] sm:$0xff]
        %v439 = vld [vmem:[%s316 + $0xf8] sm:$0xff]
        %v440 = vld [vmem:[%s357] sm:$0xf]
        %v441 = vld [vmem:[%s357 + $0x4] sm:$0xf]
        %v442 = vld [vmem:[%s357 + $0x8] sm:$0xf]
        %v443 = vld [vmem:[%s357 + $0xc] sm:$0xf]
        %v444 = vld [vmem:[%s357 + $0x10] sm:$0xf]
        %v445 = vld [vmem:[%s357 + $0x14] sm:$0xf]
        %v446 = vld [vmem:[%s357 + $0x18] sm:$0xf]
        %v447 = vld [vmem:[%s357 + $0x1c] sm:$0xf]
        %v448 = vld [vmem:[%s357 + $0x20] sm:$0xf]
        %v449 = vld [vmem:[%s357 + $0x24] sm:$0xf]
        %v450 = vld [vmem:[%s357 + $0x28] sm:$0xf]
        %v451 = vld [vmem:[%s357 + $0x2c] sm:$0xf]
        %v452 = vld [vmem:[%s357 + $0x30] sm:$0xf]
        %v453 = vld [vmem:[%s357 + $0x34] sm:$0xf]
        %v454 = vld [vmem:[%s357 + $0x38] sm:$0xf]
        %v455 = vld [vmem:[%s357 + $0x3c] sm:$0xf]
        %v456 = vld [vmem:[%s357 + $0x40] sm:$0xf]
        %v457 = vld [vmem:[%s357 + $0x44] sm:$0xf]
        %v458 = vld [vmem:[%s357 + $0x48] sm:$0xf]
        %v459 = vld [vmem:[%s357 + $0x4c] sm:$0xf]
        %v460 = vld [vmem:[%s357 + $0x50] sm:$0xf]
        %v461 = vld [vmem:[%s357 + $0x54] sm:$0xf]
        %v462 = vld [vmem:[%s357 + $0x58] sm:$0xf]
        %v463 = vld [vmem:[%s357 + $0x5c] sm:$0xf]
        %v464 = vld [vmem:[%s357 + $0x60] sm:$0xf]
        %v465 = vld [vmem:[%s357 + $0x64] sm:$0xf]
        %v466 = vld [vmem:[%s357 + $0x68] sm:$0xf]
        %v467 = vld [vmem:[%s357 + $0x6c] sm:$0xf]
        %v468 = vld [vmem:[%s357 + $0x70] sm:$0xf]
        %v469 = vld [vmem:[%s357 + $0x74] sm:$0xf]
        %v470 = vld [vmem:[%s357 + $0x78] sm:$0xf]
        %v471 = vld [vmem:[%s357 + $0x7c] sm:$0xf]
        %v472 = vld [vmem:[%s357 + $0x80] sm:$0xf]
        %v473 = vld [vmem:[%s357 + $0x84] sm:$0xf]
        %v474 = vld [vmem:[%s357 + $0x88] sm:$0xf]
        %v475 = vld [vmem:[%s357 + $0x8c] sm:$0xf]
        %v476 = vld [vmem:[%s357 + $0x90] sm:$0xf]
        %v477 = vld [vmem:[%s357 + $0x94] sm:$0xf]
        %v478 = vld [vmem:[%s357 + $0x98] sm:$0xf]
        %v479 = vld [vmem:[%s357 + $0x9c] sm:$0xf]
        %v480 = vld [vmem:[%s357 + $0xa0] sm:$0xf]
        %v481 = vld [vmem:[%s357 + $0xa4] sm:$0xf]
        %v482 = vld [vmem:[%s357 + $0xa8] sm:$0xf]
        %v483 = vld [vmem:[%s357 + $0xac] sm:$0xf]
        %v484 = vld [vmem:[%s357 + $0xb0] sm:$0xf]
        %v485 = vld [vmem:[%s357 + $0xb4] sm:$0xf]
        %v486 = vld [vmem:[%s357 + $0xb8] sm:$0xf]
        %v487 = vld [vmem:[%s357 + $0xbc] sm:$0xf]
        %v488 = vld [vmem:[%s357 + $0xc0] sm:$0xf]
        %v489 = vld [vmem:[%s357 + $0xc4] sm:$0xf]
        %v490 = vld [vmem:[%s357 + $0xc8] sm:$0xf]
        %v491 = vld [vmem:[%s357 + $0xcc] sm:$0xf]
        %v492 = vld [vmem:[%s357 + $0xd0] sm:$0xf]
        %v493 = vld [vmem:[%s357 + $0xd4] sm:$0xf]
        %v494 = vld [vmem:[%s357 + $0xd8] sm:$0xf]
        %v495 = vld [vmem:[%s357 + $0xdc] sm:$0xf]
        %v496 = vld [vmem:[%s357 + $0xe0] sm:$0xf]
        %v497 = vld [vmem:[%s357 + $0xe4] sm:$0xf]
        %v498 = vld [vmem:[%s357 + $0xe8] sm:$0xf]
        %v499 = vld [vmem:[%s357 + $0xec] sm:$0xf]
        %v500 = vld [vmem:[%s357 + $0xf0] sm:$0xf]
        %v501 = vld [vmem:[%s357 + $0xf4] sm:$0xf]
        %v502 = vld [vmem:[%s357 + $0xf8] sm:$0xf]
        %v503 = vld [vmem:[%s357 + $0xfc] sm:$0xf]
        %v536 = vunpack.c.l.b16 %v408
        %v537 = vunpack.c.h.b16 %v408
        %v538 = vunpack.c.l.b16 %v409
        %v539 = vunpack.c.h.b16 %v409
        %v540 = vunpack.c.l.b16 %v410
        %v541 = vunpack.c.h.b16 %v410
        %v542 = vunpack.c.l.b16 %v411
        %v543 = vunpack.c.h.b16 %v411
        %v544 = vunpack.c.l.b16 %v412
        %v545 = vunpack.c.h.b16 %v412
        %v546 = vunpack.c.l.b16 %v413
        %v547 = vunpack.c.h.b16 %v413
        %v548 = vunpack.c.l.b16 %v414
        %v549 = vunpack.c.h.b16 %v414
        %v550 = vunpack.c.l.b16 %v415
        %v551 = vunpack.c.h.b16 %v415
        %v552 = vunpack.c.l.b16 %v416
        %v553 = vunpack.c.h.b16 %v416
        %v554 = vunpack.c.l.b16 %v417
        %v555 = vunpack.c.h.b16 %v417
        %v556 = vunpack.c.l.b16 %v418
        %v557 = vunpack.c.h.b16 %v418
        %v558 = vunpack.c.l.b16 %v419
        %v559 = vunpack.c.h.b16 %v419
        %v560 = vunpack.c.l.b16 %v420
        %v561 = vunpack.c.h.b16 %v420
        %v562 = vunpack.c.l.b16 %v421
        %v563 = vunpack.c.h.b16 %v421
        %v564 = vunpack.c.l.b16 %v422
        %v565 = vunpack.c.h.b16 %v422
        %v566 = vunpack.c.l.b16 %v423
        %v567 = vunpack.c.h.b16 %v423
        %v568 = vunpack.c.l.b16 %v424
        %v569 = vunpack.c.h.b16 %v424
        %v570 = vunpack.c.l.b16 %v425
        %v571 = vunpack.c.h.b16 %v425
        %v572 = vunpack.c.l.b16 %v426
        %v573 = vunpack.c.h.b16 %v426
        %v574 = vunpack.c.l.b16 %v427
        %v575 = vunpack.c.h.b16 %v427
        %v576 = vunpack.c.l.b16 %v428
        %v577 = vunpack.c.h.b16 %v428
        %v578 = vunpack.c.l.b16 %v429
        %v579 = vunpack.c.h.b16 %v429
        %v580 = vunpack.c.l.b16 %v430
        %v581 = vunpack.c.h.b16 %v430
        %v582 = vunpack.c.l.b16 %v431
        %v583 = vunpack.c.h.b16 %v431
        %v584 = vunpack.c.l.b16 %v432
        %v585 = vunpack.c.h.b16 %v432
        %v586 = vunpack.c.l.b16 %v433
        %v587 = vunpack.c.h.b16 %v433
        %v588 = vunpack.c.l.b16 %v434
        %v589 = vunpack.c.h.b16 %v434
        %v590 = vunpack.c.l.b16 %v435
        %v591 = vunpack.c.h.b16 %v435
        %v592 = vunpack.c.l.b16 %v436
        %v593 = vunpack.c.h.b16 %v436
        %v594 = vunpack.c.l.b16 %v437
        %v595 = vunpack.c.h.b16 %v437
        %v596 = vunpack.c.l.b16 %v438
        %v597 = vunpack.c.h.b16 %v438
        %v598 = vunpack.c.l.b16 %v439
        %v599 = vunpack.c.h.b16 %v439
        %v600 = vpack.c.b16 %v540, %v536
        %v601 = vpack.c.b16 %v541, %v537
        %v602 = vpack.c.b16 %v542, %v538
        %v603 = vpack.c.b16 %v543, %v539
        %v604 = vpack.c.b16 %v548, %v544
        %v605 = vpack.c.b16 %v549, %v545
        %v606 = vpack.c.b16 %v550, %v546
        %v607 = vpack.c.b16 %v551, %v547
        %v608 = vpack.c.b16 %v556, %v552
        %v609 = vpack.c.b16 %v557, %v553
        %v610 = vpack.c.b16 %v558, %v554
        %v611 = vpack.c.b16 %v559, %v555
        %v612 = vpack.c.b16 %v564, %v560
        %v613 = vpack.c.b16 %v565, %v561
        %v614 = vpack.c.b16 %v566, %v562
        %v615 = vpack.c.b16 %v567, %v563
        %v616 = vpack.c.b16 %v572, %v568
        %v617 = vpack.c.b16 %v573, %v569
        %v618 = vpack.c.b16 %v574, %v570
        %v619 = vpack.c.b16 %v575, %v571
        %v620 = vpack.c.b16 %v580, %v576
        %v621 = vpack.c.b16 %v581, %v577
        %v622 = vpack.c.b16 %v582, %v578
        %v623 = vpack.c.b16 %v583, %v579
        %v624 = vpack.c.b16 %v588, %v584
        %v625 = vpack.c.b16 %v589, %v585
        %v626 = vpack.c.b16 %v590, %v586
        %v627 = vpack.c.b16 %v591, %v587
        %v628 = vpack.c.b16 %v596, %v592
        %v629 = vpack.c.b16 %v597, %v593
        %v630 = vpack.c.b16 %v598, %v594
        %v631 = vpack.c.b16 %v599, %v595
        %v728 = vunpack.c.l.b16 %v440
        %v729 = vunpack.c.l.b16 %v441
        %v730 = vunpack.c.l.b16 %v442
        %v731 = vunpack.c.l.b16 %v443
        %v732 = vunpack.c.l.b16 %v444
        %v733 = vunpack.c.l.b16 %v445
        %v734 = vunpack.c.l.b16 %v446
        %v735 = vunpack.c.l.b16 %v447
        %v736 = vunpack.c.l.b16 %v448
        %v737 = vunpack.c.l.b16 %v449
        %v738 = vunpack.c.l.b16 %v450
        %v739 = vunpack.c.l.b16 %v451
        %v740 = vunpack.c.l.b16 %v452
        %v741 = vunpack.c.l.b16 %v453
        %v742 = vunpack.c.l.b16 %v454
        %v743 = vunpack.c.l.b16 %v455
        %v744 = vunpack.c.l.b16 %v456
        %v745 = vunpack.c.l.b16 %v457
        %v746 = vunpack.c.l.b16 %v458
        %v747 = vunpack.c.l.b16 %v459
        %v748 = vunpack.c.l.b16 %v460
        %v749 = vunpack.c.l.b16 %v461
        %v750 = vunpack.c.l.b16 %v462
        %v751 = vunpack.c.l.b16 %v463
        %v752 = vunpack.c.l.b16 %v464
        %v753 = vunpack.c.l.b16 %v465
        %v754 = vunpack.c.l.b16 %v466
        %v755 = vunpack.c.l.b16 %v467
        %v756 = vunpack.c.l.b16 %v468
        %v757 = vunpack.c.l.b16 %v469
        %v758 = vunpack.c.l.b16 %v470
        %v759 = vunpack.c.l.b16 %v471
        %v760 = vunpack.c.l.b16 %v472
        %v761 = vunpack.c.l.b16 %v473
        %v762 = vunpack.c.l.b16 %v474
        %v763 = vunpack.c.l.b16 %v475
        %v764 = vunpack.c.l.b16 %v476
        %v765 = vunpack.c.l.b16 %v477
        %v766 = vunpack.c.l.b16 %v478
        %v767 = vunpack.c.l.b16 %v479
        %v768 = vunpack.c.l.b16 %v480
        %v769 = vunpack.c.l.b16 %v481
        %v770 = vunpack.c.l.b16 %v482
        %v771 = vunpack.c.l.b16 %v483
        %v772 = vunpack.c.l.b16 %v484
        %v773 = vunpack.c.l.b16 %v485
        %v774 = vunpack.c.l.b16 %v486
        %v775 = vunpack.c.l.b16 %v487
        %v776 = vunpack.c.l.b16 %v488
        %v777 = vunpack.c.l.b16 %v489
        %v778 = vunpack.c.l.b16 %v490
        %v779 = vunpack.c.l.b16 %v491
        %v780 = vunpack.c.l.b16 %v492
        %v781 = vunpack.c.l.b16 %v493
        %v782 = vunpack.c.l.b16 %v494
        %v783 = vunpack.c.l.b16 %v495
        %v784 = vunpack.c.l.b16 %v496
        %v785 = vunpack.c.l.b16 %v497
        %v786 = vunpack.c.l.b16 %v498
        %v787 = vunpack.c.l.b16 %v499
        %v788 = vunpack.c.l.b16 %v500
        %v789 = vunpack.c.l.b16 %v501
        %v790 = vunpack.c.l.b16 %v502
        %v791 = vunpack.c.l.b16 %v503
        %v792 = vpack.c.b16 %v729, %v728
        %v793 = vpack.c.b16 %v731, %v730
        %v794 = vpack.c.b16 %v733, %v732
        %v795 = vpack.c.b16 %v735, %v734
        %v796 = vpack.c.b16 %v737, %v736
        %v797 = vpack.c.b16 %v739, %v738
        %v798 = vpack.c.b16 %v741, %v740
        %v799 = vpack.c.b16 %v743, %v742
        %v800 = vpack.c.b16 %v745, %v744
        %v801 = vpack.c.b16 %v747, %v746
        %v802 = vpack.c.b16 %v749, %v748
        %v803 = vpack.c.b16 %v751, %v750
        %v804 = vpack.c.b16 %v753, %v752
        %v805 = vpack.c.b16 %v755, %v754
        %v806 = vpack.c.b16 %v757, %v756
        %v807 = vpack.c.b16 %v759, %v758
        %v808 = vpack.c.b16 %v761, %v760
        %v809 = vpack.c.b16 %v763, %v762
        %v810 = vpack.c.b16 %v765, %v764
        %v811 = vpack.c.b16 %v767, %v766
        %v812 = vpack.c.b16 %v769, %v768
        %v813 = vpack.c.b16 %v771, %v770
        %v814 = vpack.c.b16 %v773, %v772
        %v815 = vpack.c.b16 %v775, %v774
        %v816 = vpack.c.b16 %v777, %v776
        %v817 = vpack.c.b16 %v779, %v778
        %v818 = vpack.c.b16 %v781, %v780
        %v819 = vpack.c.b16 %v783, %v782
        %v820 = vpack.c.b16 %v785, %v784
        %v821 = vpack.c.b16 %v787, %v786
        %v822 = vpack.c.b16 %v789, %v788
        %v823 = vpack.c.b16 %v791, %v790
        %856 = vmatprep.subr.bf16.mxu0 0
        %857 = vmatpush1.bf16.msra.mxu0 %v799
        %858 = vmatprep.subr.bf16.mxu0 0
        %859 = vmatpush1.bf16.msra.mxu0 %v798
        %860 = vmatprep.subr.bf16.mxu0 0
        %861 = vmatpush1.bf16.msra.mxu0 %v797
        %862 = vmatprep.subr.bf16.mxu0 0
        %863 = vmatpush1.bf16.msra.mxu0 %v796
        %864 = vmatprep.subr.bf16.mxu0 0
        %865 = vmatpush1.bf16.msra.mxu0 %v795
        %866 = vmatprep.subr.bf16.mxu0 0
        %867 = vmatpush1.bf16.msra.mxu0 %v794
        %868 = vmatprep.subr.bf16.mxu0 0
        %869 = vmatpush1.bf16.msra.mxu0 %v793
        %870 = vmatprep.subr.bf16.mxu0 0
        %871 = vmatpush1.bf16.msra.mxu0 %v792
        %872 = vmatprep.subr.bf16.mxu0 0
        %873 = vmatpush2.bf16.msra.mxu0 %v807
        %874 = vmatprep.subr.bf16.mxu0 0
        %875 = vmatpush2.bf16.msra.mxu0 %v806
        %876 = vmatprep.subr.bf16.mxu0 0
        %877 = vmatpush2.bf16.msra.mxu0 %v805
        %878 = vmatprep.subr.bf16.mxu0 0
        %879 = vmatpush2.bf16.msra.mxu0 %v804
        %880 = vmatprep.subr.bf16.mxu0 0
        %881 = vmatpush2.bf16.msra.mxu0 %v803
        %882 = vmatprep.subr.bf16.mxu0 0
        %883 = vmatpush2.bf16.msra.mxu0 %v802
        %884 = vmatprep.subr.bf16.mxu0 0
        %885 = vmatpush2.bf16.msra.mxu0 %v801
        %886 = vmatprep.subr.bf16.mxu0 0
        %887 = vmatpush2.bf16.msra.mxu0 %v800
        %888 = vmatprep.mubr.bf16.mxu0 %v601
        %889 = vmatmul.mubr.bf16.gmra.mxu0 %v600
        %v890 = vpop.f32.mrf.mxu0
        %v891 = vadd.f32 0.0, %v890
        %v892 = vpop.f32.mrf.mxu0
        %v893 = vpop.f32.mrf.mxu0
        %v894 = vadd.f32 0.0, %v893
        %v895 = vpop.f32.mrf.mxu0
        %896 = vmatprep.mubr.bf16.mxu0 %v605
        %897 = vmatmul.mubr.bf16.gmra.mxu0 %v604
        %v898 = vpop.f32.mrf.mxu0
        %v899 = vadd.f32 0.0, %v898
        %v900 = vpop.f32.mrf.mxu0
        %v901 = vpop.f32.mrf.mxu0
        %v902 = vadd.f32 0.0, %v901
        %v903 = vpop.f32.mrf.mxu0
        %904 = vmatprep.mubr.bf16.mxu0 %v609
        %905 = vmatmul.mubr.bf16.gmra.mxu0 %v608
        %v906 = vpop.f32.mrf.mxu0
        %v907 = vadd.f32 0.0, %v906
        %v908 = vpop.f32.mrf.mxu0
        %v909 = vpop.f32.mrf.mxu0
        %v910 = vadd.f32 0.0, %v909
        %v911 = vpop.f32.mrf.mxu0
        %912 = vmatprep.mubr.bf16.mxu0 %v613
        %913 = vmatmul.mubr.bf16.gmra.mxu0 %v612
        %v914 = vpop.f32.mrf.mxu0
        %v915 = vadd.f32 0.0, %v914
        %v916 = vpop.f32.mrf.mxu0
        %v917 = vpop.f32.mrf.mxu0
        %v918 = vadd.f32 0.0, %v917
        %v919 = vpop.f32.mrf.mxu0
        %920 = vmatprep.mubr.bf16.mxu0 %v617
        %921 = vmatmul.mubr.bf16.gmra.mxu0 %v616
        %v922 = vpop.f32.mrf.mxu0
        %v923 = vadd.f32 0.0, %v922
        %v924 = vpop.f32.mrf.mxu0
        %v925 = vpop.f32.mrf.mxu0
        %v926 = vadd.f32 0.0, %v925
        %v927 = vpop.f32.mrf.mxu0
        %928 = vmatprep.mubr.bf16.mxu0 %v621
        %929 = vmatmul.mubr.bf16.gmra.mxu0 %v620
        %v930 = vpop.f32.mrf.mxu0
        %v931 = vadd.f32 0.0, %v930
        %v932 = vpop.f32.mrf.mxu0
        %v933 = vpop.f32.mrf.mxu0
        %v934 = vadd.f32 0.0, %v933
        %v935 = vpop.f32.mrf.mxu0
        %936 = vmatprep.mubr.bf16.mxu0 %v625
        %937 = vmatmul.mubr.bf16.gmra.mxu0 %v624
        %v938 = vpop.f32.mrf.mxu0
        %v939 = vadd.f32 0.0, %v938
        %v940 = vpop.f32.mrf.mxu0
        %v941 = vpop.f32.mrf.mxu0
        %v942 = vadd.f32 0.0, %v941
        %v943 = vpop.f32.mrf.mxu0
        %944 = vmatprep.mubr.bf16.mxu0 %v629
        %945 = vmatmul.mubr.bf16.gmra.mxu0 %v628
        %v946 = vpop.f32.mrf.mxu0
        %v947 = vadd.f32 0.0, %v946
        %v948 = vpop.f32.mrf.mxu0
        %v949 = vpop.f32.mrf.mxu0
        %v950 = vadd.f32 0.0, %v949
        %v951 = vpop.f32.mrf.mxu0
        %952 = vdwg.mxu0
        %953 = vmatprep.subr.bf16.mxu0 0
        %954 = vmatpush1.bf16.msra.mxu0 %v815
        %955 = vmatprep.subr.bf16.mxu0 0
        %956 = vmatpush1.bf16.msra.mxu0 %v814
        %957 = vmatprep.subr.bf16.mxu0 0
        %958 = vmatpush1.bf16.msra.mxu0 %v813
        %959 = vmatprep.subr.bf16.mxu0 0
        %960 = vmatpush1.bf16.msra.mxu0 %v812
        %961 = vmatprep.subr.bf16.mxu0 0
        %962 = vmatpush1.bf16.msra.mxu0 %v811
        %963 = vmatprep.subr.bf16.mxu0 0
        %964 = vmatpush1.bf16.msra.mxu0 %v810
        %965 = vmatprep.subr.bf16.mxu0 0
        %966 = vmatpush1.bf16.msra.mxu0 %v809
        %967 = vmatprep.subr.bf16.mxu0 0
        %968 = vmatpush1.bf16.msra.mxu0 %v808
        %969 = vmatprep.subr.bf16.mxu0 0
        %970 = vmatpush2.bf16.msra.mxu0 %v823
        %971 = vmatprep.subr.bf16.mxu0 0
        %972 = vmatpush2.bf16.msra.mxu0 %v822
        %973 = vmatprep.subr.bf16.mxu0 0
        %974 = vmatpush2.bf16.msra.mxu0 %v821
        %975 = vmatprep.subr.bf16.mxu0 0
        %976 = vmatpush2.bf16.msra.mxu0 %v820
        %977 = vmatprep.subr.bf16.mxu0 0
        %978 = vmatpush2.bf16.msra.mxu0 %v819
        %979 = vmatprep.subr.bf16.mxu0 0
        %980 = vmatpush2.bf16.msra.mxu0 %v818
        %981 = vmatprep.subr.bf16.mxu0 0
        %982 = vmatpush2.bf16.msra.mxu0 %v817
        %983 = vmatprep.subr.bf16.mxu0 0
        %984 = vmatpush2.bf16.msra.mxu0 %v816
        %985 = vmatprep.mubr.bf16.mxu0 %v603
        %986 = vmatmul.mubr.bf16.gmra.mxu0 %v602
        %v987 = vpop.f32.mrf.mxu0
        %v988 = vadd.f32 %v891, %v987
        %v989 = vpop.f32.mrf.mxu0
        %v990 = vpop.f32.mrf.mxu0
        %v991 = vadd.f32 %v894, %v990
        %v992 = vpop.f32.mrf.mxu0
        %993 = vmatprep.mubr.bf16.mxu0 %v607
        %994 = vmatmul.mubr.bf16.gmra.mxu0 %v606
        %v995 = vpop.f32.mrf.mxu0
        %v996 = vadd.f32 %v899, %v995
        %v997 = vpop.f32.mrf.mxu0
        %v998 = vpop.f32.mrf.mxu0
        %v999 = vadd.f32 %v902, %v998
        %v1000 = vpop.f32.mrf.mxu0
        %1001 = vmatprep.mubr.bf16.mxu0 %v611
        %1002 = vmatmul.mubr.bf16.gmra.mxu0 %v610
        %v1003 = vpop.f32.mrf.mxu0
        %v1004 = vadd.f32 %v907, %v1003
        %v1005 = vpop.f32.mrf.mxu0
        %v1006 = vpop.f32.mrf.mxu0
        %v1007 = vadd.f32 %v910, %v1006
        %v1008 = vpop.f32.mrf.mxu0
        %1009 = vmatprep.mubr.bf16.mxu0 %v615
        %1010 = vmatmul.mubr.bf16.gmra.mxu0 %v614
        %v1011 = vpop.f32.mrf.mxu0
        %v1012 = vadd.f32 %v915, %v1011
        %v1013 = vpop.f32.mrf.mxu0
        %v1014 = vpop.f32.mrf.mxu0
        %v1015 = vadd.f32 %v918, %v1014
        %v1016 = vpop.f32.mrf.mxu0
        %1017 = vmatprep.mubr.bf16.mxu0 %v619
        %1018 = vmatmul.mubr.bf16.gmra.mxu0 %v618
        %v1019 = vpop.f32.mrf.mxu0
        %v1020 = vadd.f32 %v923, %v1019
        %v1021 = vpop.f32.mrf.mxu0
        %v1022 = vpop.f32.mrf.mxu0
        %v1023 = vadd.f32 %v926, %v1022
        %v1024 = vpop.f32.mrf.mxu0
        %1025 = vmatprep.mubr.bf16.mxu0 %v623
        %1026 = vmatmul.mubr.bf16.gmra.mxu0 %v622
        %v1027 = vpop.f32.mrf.mxu0
        %v1028 = vadd.f32 %v931, %v1027
        %v1029 = vpop.f32.mrf.mxu0
        %v1030 = vpop.f32.mrf.mxu0
        %v1031 = vadd.f32 %v934, %v1030
        %v1032 = vpop.f32.mrf.mxu0
        %1033 = vmatprep.mubr.bf16.mxu0 %v627
        %1034 = vmatmul.mubr.bf16.gmra.mxu0 %v626
        %v1035 = vpop.f32.mrf.mxu0
        %v1036 = vadd.f32 %v939, %v1035
        %v1037 = vpop.f32.mrf.mxu0
        %v1038 = vpop.f32.mrf.mxu0
        %v1039 = vadd.f32 %v942, %v1038
        %v1040 = vpop.f32.mrf.mxu0
        %1041 = vmatprep.mubr.bf16.mxu0 %v631
        %1042 = vmatmul.mubr.bf16.gmra.mxu0 %v630
        %v1043 = vpop.f32.mrf.mxu0
        %v1044 = vadd.f32 %v947, %v1043
        %v1045 = vpop.f32.mrf.mxu0
        %v1046 = vpop.f32.mrf.mxu0
        %v1047 = vadd.f32 %v950, %v1046
        %v1048 = vpop.f32.mrf.mxu0
        %1049 = vdwg.mxu0
        %v1050 = vadd.f32 %v392, %v988
        %v1051 = vadd.f32 %v393, %v991
        %v1052 = vadd.f32 %v394, %v996
        %v1053 = vadd.f32 %v395, %v999
        %v1054 = vadd.f32 %v396, %v1004
        %v1055 = vadd.f32 %v397, %v1007
        %v1056 = vadd.f32 %v398, %v1012
        %v1057 = vadd.f32 %v399, %v1015
        %v1058 = vadd.f32 %v400, %v1020
        %v1059 = vadd.f32 %v401, %v1023
        %v1060 = vadd.f32 %v402, %v1028
        %v1061 = vadd.f32 %v403, %v1031
        %v1062 = vadd.f32 %v404, %v1036
        %v1063 = vadd.f32 %v405, %v1039
        %v1064 = vadd.f32 %v406, %v1044
        %v1065 = vadd.f32 %v407, %v1047
        %1066 = vst [vmem:[#allocation2] sm:$0xff] %v1050
        %1067 = vst [vmem:[#allocation2 + $0x8] sm:$0xff] %v1051
        %1068 = vst [vmem:[#allocation2 + $0x10] sm:$0xff] %v1052
        %1069 = vst [vmem:[#allocation2 + $0x18] sm:$0xff] %v1053
        %1070 = vst [vmem:[#allocation2 + $0x20] sm:$0xff] %v1054
        %1071 = vst [vmem:[#allocation2 + $0x28] sm:$0xff] %v1055
        %1072 = vst [vmem:[#allocation2 + $0x30] sm:$0xff] %v1056
        %1073 = vst [vmem:[#allocation2 + $0x38] sm:$0xff] %v1057
        %1074 = vst [vmem:[#allocation2 + $0x40] sm:$0xff] %v1058
        %1075 = vst [vmem:[#allocation2 + $0x48] sm:$0xff] %v1059
        %1076 = vst [vmem:[#allocation2 + $0x50] sm:$0xff] %v1060
        %1077 = vst [vmem:[#allocation2 + $0x58] sm:$0xff] %v1061
        %1078 = vst [vmem:[#allocation2 + $0x60] sm:$0xff] %v1062
        %1079 = vst [vmem:[#allocation2 + $0x68] sm:$0xff] %v1063
        %1080 = vst [vmem:[#allocation2 + $0x70] sm:$0xff] %v1064
        %1081 = vst [vmem:[#allocation2 + $0x78] sm:$0xff] %v1065
        %p1082 = scmp.eq.s32.totalorder %s21, 2
        // Predicated region
        $region68: #{gnn_forward.5} parent=58 // pred_check
          %p1083 = pneg %p1082
        $region69: #{gnn_forward.5} parent=58 // pred_check_branch
          %1085 = sbr.rel (%p1083) target = $region71
        $region70: #{gnn_forward.5} parent=58 // pred_region
          %v1086 = vld [vmem:[#allocation2] sm:$0xff]
          %v1087 = vld [vmem:[#allocation2 + $0x8] sm:$0xff]
          %v1088 = vld [vmem:[#allocation2 + $0x10] sm:$0xff]
          %v1089 = vld [vmem:[#allocation2 + $0x18] sm:$0xff]
          %v1090 = vld [vmem:[#allocation2 + $0x20] sm:$0xff]
          %v1091 = vld [vmem:[#allocation2 + $0x28] sm:$0xff]
          %v1092 = vld [vmem:[#allocation2 + $0x30] sm:$0xff]
          %v1093 = vld [vmem:[#allocation2 + $0x38] sm:$0xff]
          %v1094 = vld [vmem:[#allocation2 + $0x40] sm:$0xff]
          %v1095 = vld [vmem:[#allocation2 + $0x48] sm:$0xff]
          %v1096 = vld [vmem:[#allocation2 + $0x50] sm:$0xff]
          %v1097 = vld [vmem:[#allocation2 + $0x58] sm:$0xff]
          %v1098 = vld [vmem:[#allocation2 + $0x60] sm:$0xff]
          %v1099 = vld [vmem:[#allocation2 + $0x68] sm:$0xff]
          %v1100 = vld [vmem:[#allocation2 + $0x70] sm:$0xff]
          %v1101 = vld [vmem:[#allocation2 + $0x78] sm:$0xff]
          %v1102 = vld [vmem:[%s363] sm:$0xff]
          %v1103 = vld [vmem:[%s363 + $0x8] sm:$0xff]
          %v1104 = vld [vmem:[%s363 + $0x10] sm:$0xff]
          %v1105 = vld [vmem:[%s363 + $0x18] sm:$0xff]
          %v1106 = vld [vmem:[%s363 + $0x20] sm:$0xff]
          %v1107 = vld [vmem:[%s363 + $0x28] sm:$0xff]
          %v1108 = vld [vmem:[%s363 + $0x30] sm:$0xff]
          %v1109 = vld [vmem:[%s363 + $0x38] sm:$0xff]
          %v1110 = vld [vmem:[%s363 + $0x40] sm:$0xff]
          %v1111 = vld [vmem:[%s363 + $0x48] sm:$0xff]
          %v1112 = vld [vmem:[%s363 + $0x50] sm:$0xff]
          %v1113 = vld [vmem:[%s363 + $0x58] sm:$0xff]
          %v1114 = vld [vmem:[%s363 + $0x60] sm:$0xff]
          %v1115 = vld [vmem:[%s363 + $0x68] sm:$0xff]
          %v1116 = vld [vmem:[%s363 + $0x70] sm:$0xff]
          %v1117 = vld [vmem:[%s363 + $0x78] sm:$0xff]
          %1119 = vset.pattern.permute.xlu0 0
          %1120 = vperm.xlu0 %1119, %v1102
          %v1121 = vpop.permute.xlu0 %1120
          %1124 = vset.pattern.permute.xlu0 0
          %1125 = vperm.xlu0 %1124, %v1103
          %v1126 = vpop.permute.xlu0 %1125
          %1129 = vset.pattern.permute.xlu0 0
          %1130 = vperm.xlu0 %1129, %v1104
          %v1131 = vpop.permute.xlu0 %1130
          %1134 = vset.pattern.permute.xlu0 0
          %1135 = vperm.xlu0 %1134, %v1105
          %v1136 = vpop.permute.xlu0 %1135
          %1139 = vset.pattern.permute.xlu0 0
          %1140 = vperm.xlu0 %1139, %v1106
          %v1141 = vpop.permute.xlu0 %1140
          %1144 = vset.pattern.permute.xlu0 0
          %1145 = vperm.xlu0 %1144, %v1107
          %v1146 = vpop.permute.xlu0 %1145
          %1149 = vset.pattern.permute.xlu0 0
          %1150 = vperm.xlu0 %1149, %v1108
          %v1151 = vpop.permute.xlu0 %1150
          %1154 = vset.pattern.permute.xlu0 0
          %1155 = vperm.xlu0 %1154, %v1109
          %v1156 = vpop.permute.xlu0 %1155
          %1159 = vset.pattern.permute.xlu0 0
          %1160 = vperm.xlu0 %1159, %v1110
          %v1161 = vpop.permute.xlu0 %1160
          %1164 = vset.pattern.permute.xlu0 0
          %1165 = vperm.xlu0 %1164, %v1111
          %v1166 = vpop.permute.xlu0 %1165
          %1169 = vset.pattern.permute.xlu0 0
          %1170 = vperm.xlu0 %1169, %v1112
          %v1171 = vpop.permute.xlu0 %1170
          %1174 = vset.pattern.permute.xlu0 0
          %1175 = vperm.xlu0 %1174, %v1113
          %v1176 = vpop.permute.xlu0 %1175
          %1179 = vset.pattern.permute.xlu0 0
          %1180 = vperm.xlu0 %1179, %v1114
          %v1181 = vpop.permute.xlu0 %1180
          %1184 = vset.pattern.permute.xlu0 0
          %1185 = vperm.xlu0 %1184, %v1115
          %v1186 = vpop.permute.xlu0 %1185
          %1189 = vset.pattern.permute.xlu0 0
          %1190 = vperm.xlu0 %1189, %v1116
          %v1191 = vpop.permute.xlu0 %1190
          %1194 = vset.pattern.permute.xlu0 0
          %1195 = vperm.xlu0 %1194, %v1117
          %v1196 = vpop.permute.xlu0 %1195
          %v1198 = vmul.f32 %v1086, %v1121
          %v1199 = vmul.f32 %v1087, %v1126
          %v1200 = vmul.f32 %v1088, %v1131
          %v1201 = vmul.f32 %v1089, %v1136
          %v1202 = vmul.f32 %v1090, %v1141
          %v1203 = vmul.f32 %v1091, %v1146
          %v1204 = vmul.f32 %v1092, %v1151
          %v1205 = vmul.f32 %v1093, %v1156
          %v1206 = vmul.f32 %v1094, %v1161
          %v1207 = vmul.f32 %v1095, %v1166
          %v1208 = vmul.f32 %v1096, %v1171
          %v1209 = vmul.f32 %v1097, %v1176
          %v1210 = vmul.f32 %v1098, %v1181
          %v1211 = vmul.f32 %v1099, %v1186
          %v1212 = vmul.f32 %v1100, %v1191
          %v1213 = vmul.f32 %v1101, %v1196
          %v1214 = vpack.c.bf16 %v1199, %v1198
          %v1215 = vpack.c.bf16 %v1201, %v1200
          %v1216 = vpack.c.bf16 %v1203, %v1202
          %v1217 = vpack.c.bf16 %v1205, %v1204
          %v1218 = vpack.c.bf16 %v1207, %v1206
          %v1219 = vpack.c.bf16 %v1209, %v1208
          %v1220 = vpack.c.bf16 %v1211, %v1210
          %v1221 = vpack.c.bf16 %v1213, %v1212
          %v1222 = vld [vmem:[%s3] sm:$0xf]
          %v1223 = vld [vmem:[%s3 + $0x4] sm:$0xf]
          %v1224 = vld [vmem:[%s3 + $0x8] sm:$0xf]
          %v1225 = vld [vmem:[%s3 + $0xc] sm:$0xf]
          %v1226 = vld [vmem:[%s3 + $0x10] sm:$0xf]
          %v1227 = vld [vmem:[%s3 + $0x14] sm:$0xf]
          %v1228 = vld [vmem:[%s3 + $0x18] sm:$0xf]
          %v1229 = vld [vmem:[%s3 + $0x1c] sm:$0xf]
          %v1230 = vld [vmem:[%s3 + $0x20] sm:$0xf]
          %v1231 = vld [vmem:[%s3 + $0x24] sm:$0xf]
          %v1232 = vld [vmem:[%s3 + $0x28] sm:$0xf]
          %v1233 = vld [vmem:[%s3 + $0x2c] sm:$0xf]
          %v1234 = vld [vmem:[%s3 + $0x30] sm:$0xf]
          %v1235 = vld [vmem:[%s3 + $0x34] sm:$0xf]
          %v1236 = vld [vmem:[%s3 + $0x38] sm:$0xf]
          %v1237 = vld [vmem:[%s3 + $0x3c] sm:$0xf]
          %v1238 = vld [vmem:[%s4] sm:$0x1]
          %v1240 = vlaneseq
          %v1241 = vshrl.u32 %v1240, 7
          %v1242 = vsub.s32 0, %v1241
          %v1243 = vrot.slane %v1238, %v1242
          %v1261 = vunpack.c.l.b16 %v1222
          %v1262 = vunpack.c.l.b16 %v1223
          %v1263 = vunpack.c.l.b16 %v1224
          %v1264 = vunpack.c.l.b16 %v1225
          %v1265 = vunpack.c.l.b16 %v1226
          %v1266 = vunpack.c.l.b16 %v1227
          %v1267 = vunpack.c.l.b16 %v1228
          %v1268 = vunpack.c.l.b16 %v1229
          %v1269 = vunpack.c.l.b16 %v1230
          %v1270 = vunpack.c.l.b16 %v1231
          %v1271 = vunpack.c.l.b16 %v1232
          %v1272 = vunpack.c.l.b16 %v1233
          %v1273 = vunpack.c.l.b16 %v1234
          %v1274 = vunpack.c.l.b16 %v1235
          %v1275 = vunpack.c.l.b16 %v1236
          %v1276 = vunpack.c.l.b16 %v1237
          %v1277 = vpack.c.b16 %v1262, %v1261
          %v1278 = vpack.c.b16 %v1264, %v1263
          %v1279 = vpack.c.b16 %v1266, %v1265
          %v1280 = vpack.c.b16 %v1268, %v1267
          %v1281 = vpack.c.b16 %v1270, %v1269
          %v1282 = vpack.c.b16 %v1272, %v1271
          %v1283 = vpack.c.b16 %v1274, %v1273
          %v1284 = vpack.c.b16 %v1276, %v1275
          %1293 = vmatprep.subr.bf16.mxu0 0
          %1294 = vmatpush1.bf16.msra.mxu0 %v1284
          %1295 = vmatprep.subr.bf16.mxu0 0
          %1296 = vmatpush1.bf16.msra.mxu0 %v1283
          %1297 = vmatprep.subr.bf16.mxu0 0
          %1298 = vmatpush1.bf16.msra.mxu0 %v1282
          %1299 = vmatprep.subr.bf16.mxu0 0
          %1300 = vmatpush1.bf16.msra.mxu0 %v1281
          %1301 = vmatprep.subr.bf16.mxu0 0
          %1302 = vmatpush1.bf16.msra.mxu0 %v1280
          %1303 = vmatprep.subr.bf16.mxu0 0
          %1304 = vmatpush1.bf16.msra.mxu0 %v1279
          %1305 = vmatprep.subr.bf16.mxu0 0
          %1306 = vmatpush1.bf16.msra.mxu0 %v1278
          %1307 = vmatprep.subr.bf16.mxu0 0
          %1308 = vmatpush1.bf16.msra.mxu0 %v1277
          %1309 = vmatprep.subr.bf16.mxu0 0
          %1310 = vmatpush2.bf16.msra.mxu0 0
          %1311 = vmatprep.subr.bf16.mxu0 0
          %1312 = vmatpush2.bf16.msra.mxu0 0
          %1313 = vmatprep.subr.bf16.mxu0 0
          %1314 = vmatpush2.bf16.msra.mxu0 0
          %1315 = vmatprep.subr.bf16.mxu0 0
          %1316 = vmatpush2.bf16.msra.mxu0 0
          %1317 = vmatprep.subr.bf16.mxu0 0
          %1318 = vmatpush2.bf16.msra.mxu0 0
          %1319 = vmatprep.subr.bf16.mxu0 0
          %1320 = vmatpush2.bf16.msra.mxu0 0
          %1321 = vmatprep.subr.bf16.mxu0 0
          %1322 = vmatpush2.bf16.msra.mxu0 0
          %1323 = vmatprep.subr.bf16.mxu0 0
          %1324 = vmatpush2.bf16.msra.mxu0 0
          %1325 = vmatprep.mubr.bf16.mxu0 0
          %1326 = vmatmul.mubr.bf16.gmra.mxu0 %v1214
          %v1327 = vpop.f32.mrf.mxu0
          %v1328 = vadd.f32 %v1243, %v1327
          %v1329 = vpop.f32.mrf.mxu0
          %v1330 = vpop.f32.mrf.mxu0
          %v1331 = vadd.f32 %v1243, %v1330
          %v1332 = vpop.f32.mrf.mxu0
          %1333 = vmatprep.mubr.bf16.mxu0 0
          %1334 = vmatmul.mubr.bf16.gmra.mxu0 %v1215
          %v1335 = vpop.f32.mrf.mxu0
          %v1336 = vadd.f32 %v1243, %v1335
          %v1337 = vpop.f32.mrf.mxu0
          %v1338 = vpop.f32.mrf.mxu0
          %v1339 = vadd.f32 %v1243, %v1338
          %v1340 = vpop.f32.mrf.mxu0
          %1341 = vmatprep.mubr.bf16.mxu0 0
          %1342 = vmatmul.mubr.bf16.gmra.mxu0 %v1216
          %v1343 = vpop.f32.mrf.mxu0
          %v1344 = vadd.f32 %v1243, %v1343
          %v1345 = vpop.f32.mrf.mxu0
          %v1346 = vpop.f32.mrf.mxu0
          %v1347 = vadd.f32 %v1243, %v1346
          %v1348 = vpop.f32.mrf.mxu0
          %1349 = vmatprep.mubr.bf16.mxu0 0
          %1350 = vmatmul.mubr.bf16.gmra.mxu0 %v1217
          %v1351 = vpop.f32.mrf.mxu0
          %v1352 = vadd.f32 %v1243, %v1351
          %v1353 = vpop.f32.mrf.mxu0
          %v1354 = vpop.f32.mrf.mxu0
          %v1355 = vadd.f32 %v1243, %v1354
          %v1356 = vpop.f32.mrf.mxu0
          %1357 = vmatprep.mubr.bf16.mxu0 0
          %1358 = vmatmul.mubr.bf16.gmra.mxu0 %v1218
          %v1359 = vpop.f32.mrf.mxu0
          %v1360 = vadd.f32 %v1243, %v1359
          %v1361 = vpop.f32.mrf.mxu0
          %v1362 = vpop.f32.mrf.mxu0
          %v1363 = vadd.f32 %v1243, %v1362
          %v1364 = vpop.f32.mrf.mxu0
          %1365 = vmatprep.mubr.bf16.mxu0 0
          %1366 = vmatmul.mubr.bf16.gmra.mxu0 %v1219
          %v1367 = vpop.f32.mrf.mxu0
          %v1368 = vadd.f32 %v1243, %v1367
          %v1369 = vpop.f32.mrf.mxu0
          %v1370 = vpop.f32.mrf.mxu0
          %v1371 = vadd.f32 %v1243, %v1370
          %v1372 = vpop.f32.mrf.mxu0
          %1373 = vmatprep.mubr.bf16.mxu0 0
          %1374 = vmatmul.mubr.bf16.gmra.mxu0 %v1220
          %v1375 = vpop.f32.mrf.mxu0
          %v1376 = vadd.f32 %v1243, %v1375
          %v1377 = vpop.f32.mrf.mxu0
          %v1378 = vpop.f32.mrf.mxu0
          %v1379 = vadd.f32 %v1243, %v1378
          %v1380 = vpop.f32.mrf.mxu0
          %1381 = vmatprep.mubr.bf16.mxu0 0
          %1382 = vmatmul.mubr.bf16.gmra.mxu0 %v1221
          %v1383 = vpop.f32.mrf.mxu0
          %v1384 = vadd.f32 %v1243, %v1383
          %v1385 = vpop.f32.mrf.mxu0
          %v1386 = vpop.f32.mrf.mxu0
          %v1387 = vadd.f32 %v1243, %v1386
          %v1388 = vpop.f32.mrf.mxu0
          %1389 = vdwg.mxu0
          %v1390 = vmax.f32 %v1328, 0.0
          %v1391 = vmax.f32 %v1331, 0.0
          %v1392 = vmax.f32 %v1336, 0.0
          %v1393 = vmax.f32 %v1339, 0.0
          %v1394 = vmax.f32 %v1344, 0.0
          %v1395 = vmax.f32 %v1347, 0.0
          %v1396 = vmax.f32 %v1352, 0.0
          %v1397 = vmax.f32 %v1355, 0.0
          %v1398 = vmax.f32 %v1360, 0.0
          %v1399 = vmax.f32 %v1363, 0.0
          %v1400 = vmax.f32 %v1368, 0.0
          %v1401 = vmax.f32 %v1371, 0.0
          %v1402 = vmax.f32 %v1376, 0.0
          %v1403 = vmax.f32 %v1379, 0.0
          %v1404 = vmax.f32 %v1384, 0.0
          %v1405 = vmax.f32 %v1387, 0.0
          %v1406 = vpack.c.bf16 %v1391, %v1390
          %v1407 = vpack.c.bf16 %v1393, %v1392
          %v1408 = vpack.c.bf16 %v1395, %v1394
          %v1409 = vpack.c.bf16 %v1397, %v1396
          %v1410 = vpack.c.bf16 %v1399, %v1398
          %v1411 = vpack.c.bf16 %v1401, %v1400
          %v1412 = vpack.c.bf16 %v1403, %v1402
          %v1413 = vpack.c.bf16 %v1405, %v1404
          %v1422 = vunpack.c.l.b16 %v1406
          %v1423 = vunpack.c.h.b16 %v1406
          %v1424 = vunpack.c.l.b16 %v1407
          %v1425 = vunpack.c.h.b16 %v1407
          %v1426 = vunpack.c.l.b16 %v1408
          %v1427 = vunpack.c.h.b16 %v1408
          %v1428 = vunpack.c.l.b16 %v1409
          %v1429 = vunpack.c.h.b16 %v1409
          %v1430 = vunpack.c.l.b16 %v1410
          %v1431 = vunpack.c.h.b16 %v1410
          %v1432 = vunpack.c.l.b16 %v1411
          %v1433 = vunpack.c.h.b16 %v1411
          %v1434 = vunpack.c.l.b16 %v1412
          %v1435 = vunpack.c.h.b16 %v1412
          %v1436 = vunpack.c.l.b16 %v1413
          %v1437 = vunpack.c.h.b16 %v1413
          %v1438 = vpack.c.b16 %v1422, %v1422
          %v1439 = vpack.c.b16 %v1423, %v1423
          %v1440 = vpack.c.b16 %v1424, %v1424
          %v1441 = vpack.c.b16 %v1425, %v1425
          %v1442 = vpack.c.b16 %v1426, %v1426
          %v1443 = vpack.c.b16 %v1427, %v1427
          %v1444 = vpack.c.b16 %v1428, %v1428
          %v1445 = vpack.c.b16 %v1429, %v1429
          %v1446 = vpack.c.b16 %v1430, %v1430
          %v1447 = vpack.c.b16 %v1431, %v1431
          %v1448 = vpack.c.b16 %v1432, %v1432
          %v1449 = vpack.c.b16 %v1433, %v1433
          %v1450 = vpack.c.b16 %v1434, %v1434
          %v1451 = vpack.c.b16 %v1435, %v1435
          %v1452 = vpack.c.b16 %v1436, %v1436
          %v1453 = vpack.c.b16 %v1437, %v1437
          %1470 = vst [vmem:[%s369] sm:$0xf] %v1438
          %1471 = vst [vmem:[%s369 + $0x4] sm:$0xf] %v1439
          %1472 = vst [vmem:[%s369 + $0x8] sm:$0xf] %v1440
          %1473 = vst [vmem:[%s369 + $0xc] sm:$0xf] %v1441
          %1474 = vst [vmem:[%s369 + $0x10] sm:$0xf] %v1442
          %1475 = vst [vmem:[%s369 + $0x14] sm:$0xf] %v1443
          %1476 = vst [vmem:[%s369 + $0x18] sm:$0xf] %v1444
          %1477 = vst [vmem:[%s369 + $0x1c] sm:$0xf] %v1445
          %1478 = vst [vmem:[%s369 + $0x20] sm:$0xf] %v1446
          %1479 = vst [vmem:[%s369 + $0x24] sm:$0xf] %v1447
          %1480 = vst [vmem:[%s369 + $0x28] sm:$0xf] %v1448
          %1481 = vst [vmem:[%s369 + $0x2c] sm:$0xf] %v1449
          %1482 = vst [vmem:[%s369 + $0x30] sm:$0xf] %v1450
          %1483 = vst [vmem:[%s369 + $0x34] sm:$0xf] %v1451
          %1484 = vst [vmem:[%s369 + $0x38] sm:$0xf] %v1452
          %1485 = vst [vmem:[%s369 + $0x3c] sm:$0xf] %v1453
        $region71: #{gnn_forward.5} parent=58 // pred_fallthru
          _
        %s1486 = smul.u32 16, %s20
        %p1487 = scmp.lt.s32.totalorder %s1486, 47
        %s1488 = scalar_select %p1487, %s1486, 47
        %s1489 = smul.addr %s1488, 4
        %s1490 = scalar_lea.vmem %s5, %s1489
        // Predicated region
        $region72: #{gnn_forward.5} parent=58 // pred_check
          %p1491 = pneg %p168
        $region73: #{gnn_forward.5} parent=58 // pred_check_branch
          %1493 = sbr.rel (%p1491) target = $region75
        $region74: #{gnn_forward.5} parent=58 // pred_region
          %s1494 = smul.u32 16, %s20
        $region75: #{gnn_forward.5} parent=58 // pred_fallthru
          _
      $region59: #{gnn_forward.5} parent=5 // pred_fallthru
        _
      %p1495 = scmp.le.s32.totalorder 2, %s11
      // Predicated region
      $region76: #{gnn_forward.5} parent=5 // pred_check
        %p1496 = pneg %p1495
      $region77: #{gnn_forward.5} parent=5 // pred_check_branch
        %1498 = sbr.rel (%p1496) target = $region79
      $region78: #{gnn_forward.5} parent=5 // pred_region
        %s1499 = ssub.s32 %s11, 2
        // Predicated region
        $region80: #{gnn_forward.5} parent=78 // pred_check
          %p1500 = pneg %p174
        $region81: #{gnn_forward.5} parent=78 // pred_check_branch
          %1502 = sbr.rel (%p1500) target = $region83
        $region82: #{gnn_forward.5} parent=78 // pred_region
          %s1503 = smul.u32 16, %s22
          %p1504 = scmp.lt.s32.totalorder %s1503, 47
          %s1505 = scalar_select %p1504, %s1503, 47
          %s1506 = smul.addr %s1505, 4
          %s1507 = scalar_lea.vmem %s5, %s1506
        $region83: #{gnn_forward.5} parent=78 // pred_fallthru
          _
      $region79: #{gnn_forward.5} parent=5 // pred_fallthru
        _
    $region6: #{gnn_forward.5} parent=1 // loop_footer
      %s15 = sadd.s32 1, %s11
    $region7: #{gnn_forward.5} parent=1 // loop_footer_branch
      %10 = sbr.rel target = $region3
    $region8: #{gnn_forward.5} parent=1 // loop_exit
      _

// kernel: gnn_forward.4
$region0: #{gnn_forward.4}
  #allocation0 [shape = 'u32[]', space=smem, size = 0x4, offset = 0x4, fixed_abs, tag = 'smem constant byte address 0x4 - core index']
  #allocation1 [shape = 'u32[144,128]{1,0:T(1,128)}', space=vmem, size = 0x12000, scoped, tag = 'internal scratch']
  %s0 = inlined_call_operand.vmem [shape: bf16[1536,256], index: 0, kind: input, shape index: {}]
  %s1 = inlined_call_operand.vmem [shape: bf16[256,128], index: 1, kind: input, shape index: {}]
  %s2 = inlined_call_operand.vmem [shape: f32[1,128], index: 2, kind: input, shape index: {}]
  %s3 = inlined_call_operand.vmem [shape: bf16[1536,128], index: 3, kind: output, shape index: {}]
  %s4 = sld [smem:[#allocation0]]
  $region45: #{gnn_forward.4} parent=0
    _
  %s6 = ssub.s32 1, %s4
  %s7 = scalar_select 0, %s6, %s4
  loop: start=0, step=1, limit=5
  $region2: #{gnn_forward.4} parent=0 // loop_pre_header
    _
  $region3: #{gnn_forward.4} parent=0 // loop_header
    %s9 = sphi 0, %s13
    %p10 = scmp.ge.s32.totalorder %s9, 5
    %s19 = sphi 0, %s21
    %s22 = sphi 0, %s19
    %s23 = sphi 0, %s22
    %s39 = sphi 0, %s23
    %s43 = sphi 0, %s43
    %s45 = sphi 0, %s43
    %s46 = sphi 0, %s45
    %s60 = sphi 0, %s46
    %s64 = sphi 0, %s64
    %s66 = sphi 0, %s64
    %s67 = sphi 0, %s66
    %s81 = sphi 0, %s67
    %s87 = sphi 0, %s89
    %s90 = sphi 0, %s87
    %s91 = sphi 0, %s90
    %s107 = sphi 0, %s91
  $region4: #{gnn_forward.4} parent=0 // loop_header_branch
    %12 = sbr.rel (%p10) target = $region8
  $region5: #{gnn_forward.4} parent=0 // loop_body
    %s14 = ssub.s32 %s9, 1
    %s15 = ssub.s32 %s9, 2
    %s16 = sadd.s32 %s9, 1
    %s17 = ssub.s32 %s9, %s16
    %p18 = scmp.eq.s32.totalorder %s17, 0
    %s20 = sadd.s32 %s19, 1
    %s21 = scalar_select %p18, %s19, %s20
    %p24 = pneg %p18
    %p25 = scmp.eq.s32.totalorder %s9, 2
    %p26 = por %p24, %p25
    %p27 = scmp.ne.s32.totalorder %s19, %s22
    %p28 = scmp.eq.s32.totalorder %s9, 0
    %p29 = por %p27, %p28
    %p30 = scmp.ne.s32.totalorder %s19, %s22
    %p31 = scmp.eq.s32.totalorder %s14, 2
    %p32 = por %p30, %p31
    %p33 = scmp.ne.s32.totalorder %s22, %s23
    %p34 = scmp.eq.s32.totalorder %s14, 0
    %p35 = por %p33, %p34
    %p36 = scmp.ne.s32.totalorder %s22, %s23
    %p37 = scmp.eq.s32.totalorder %s15, 2
    %p38 = por %p36, %p37
    %p40 = scmp.ne.s32.totalorder %s23, %s39
    %p41 = scmp.eq.s32.totalorder %s15, 0
    %p42 = por %p40, %p41
    %s44 = sadd.s32 %s43, 1
    %p47 = scmp.eq.s32.totalorder %s9, 2
    %p48 = scmp.ne.s32.totalorder %s43, %s45
    %p49 = scmp.eq.s32.totalorder %s9, 0
    %p50 = por %p48, %p49
    %p51 = scmp.ne.s32.totalorder %s43, %s45
    %p52 = scmp.eq.s32.totalorder %s14, 2
    %p53 = por %p51, %p52
    %p54 = scmp.ne.s32.totalorder %s45, %s46
    %p55 = scmp.eq.s32.totalorder %s14, 0
    %p56 = por %p54, %p55
    %p57 = scmp.ne.s32.totalorder %s45, %s46
    %p58 = scmp.eq.s32.totalorder %s15, 2
    %p59 = por %p57, %p58
    %p61 = scmp.ne.s32.totalorder %s46, %s60
    %p62 = scmp.eq.s32.totalorder %s15, 0
    %p63 = por %p61, %p62
    %s65 = sadd.s32 %s64, 1
    %p68 = scmp.eq.s32.totalorder %s9, 2
    %p69 = scmp.ne.s32.totalorder %s64, %s66
    %p70 = scmp.eq.s32.totalorder %s9, 0
    %p71 = por %p69, %p70
    %p72 = scmp.ne.s32.totalorder %s64, %s66
    %p73 = scmp.eq.s32.totalorder %s14, 2
    %p74 = por %p72, %p73
    %p75 = scmp.ne.s32.totalorder %s66, %s67
    %p76 = scmp.eq.s32.totalorder %s14, 0
    %p77 = por %p75, %p76
    %p78 = scmp.ne.s32.totalorder %s66, %s67
    %p79 = scmp.eq.s32.totalorder %s15, 2
    %p80 = por %p78, %p79
    %p82 = scmp.ne.s32.totalorder %s67, %s81
    %p83 = scmp.eq.s32.totalorder %s15, 0
    %p84 = por %p82, %p83
    %s85 = ssub.s32 %s9, %s16
    %p86 = scmp.eq.s32.totalorder %s85, 0
    %s88 = sadd.s32 %s87, 1
    %s89 = scalar_select %p86, %s87, %s88
    %p92 = pneg %p86
    %p93 = scmp.eq.s32.totalorder %s9, 2
    %p94 = por %p92, %p93
    %p95 = scmp.ne.s32.totalorder %s87, %s90
    %p96 = scmp.eq.s32.totalorder %s9, 0
    %p97 = por %p95, %p96
    %p98 = scmp.ne.s32.totalorder %s87, %s90
    %p99 = scmp.eq.s32.totalorder %s14, 2
    %p100 = por %p98, %p99
    %p101 = scmp.ne.s32.totalorder %s90, %s91
    %p102 = scmp.eq.s32.totalorder %s14, 0
    %p103 = por %p101, %p102
    %p104 = scmp.ne.s32.totalorder %s90, %s91
    %p105 = scmp.eq.s32.totalorder %s15, 2
    %p106 = por %p104, %p105
    %p108 = scmp.ne.s32.totalorder %s91, %s107
    %p109 = scmp.eq.s32.totalorder %s15, 0
    %p110 = por %p108, %p109
    %p111 = scmp.le.s32.totalorder 1, %s9
    %p112 = scmp.lt.s32.totalorder %s9, 4
    %p113 = pnand %p111, %p112
    %p114 = pneg %p113
    // Predicated region
    $region9: #{gnn_forward.4} parent=5 // pred_check
      _
    $region10: #{gnn_forward.4} parent=5 // pred_check_branch
      %116 = sbr.rel (%p113) target = $region12
    $region11: #{gnn_forward.4} parent=5 // pred_region
      %s117 = ssub.s32 %s9, 1
      // Predicated region
      $region13: #{gnn_forward.4} parent=11 // pred_check
        %p118 = pneg %p56
      $region14: #{gnn_forward.4} parent=11 // pred_check_branch
        %120 = sbr.rel (%p118) target = $region16
      $region15: #{gnn_forward.4} parent=11 // pred_region
        _
      $region16: #{gnn_forward.4} parent=11 // pred_fallthru
        _
      // Predicated region
      $region17: #{gnn_forward.4} parent=11 // pred_check
        %p121 = pneg %p77
      $region18: #{gnn_forward.4} parent=11 // pred_check_branch
        %123 = sbr.rel (%p121) target = $region20
      $region19: #{gnn_forward.4} parent=11 // pred_region
        _
      $region20: #{gnn_forward.4} parent=11 // pred_fallthru
        _
    $region12: #{gnn_forward.4} parent=5 // pred_fallthru
      _
    %p124 = scmp.lt.s32.totalorder %s9, 3
    // Predicated region
    $region21: #{gnn_forward.4} parent=5 // pred_check
      %p125 = pneg %p124
    $region22: #{gnn_forward.4} parent=5 // pred_check_branch
      %127 = sbr.rel (%p125) target = $region24
    $region23: #{gnn_forward.4} parent=5 // pred_region
      // Predicated region
      $region25: #{gnn_forward.4} parent=23 // pred_check
        %p128 = pneg %p29
      $region26: #{gnn_forward.4} parent=23 // pred_check_branch
        %130 = sbr.rel (%p128) target = $region28
      $region27: #{gnn_forward.4} parent=23 // pred_region
        %s131 = smul.u32 64, %s9
        %p132 = scmp.lt.s32.totalorder %s131, 191
        %s133 = scalar_select %p132, %s131, 191
        %s134 = smul.addr %s133, 2
        %s135 = smul.addr %s134, 4
        %s136 = scalar_lea.vmem %s0, %s135
        %s137 = smul.u32 64, %s9
      $region28: #{gnn_forward.4} parent=23 // pred_fallthru
        _
    $region24: #{gnn_forward.4} parent=5 // pred_fallthru
      _
    %p138 = scmp.le.s32.totalorder 1, %s9
    %p139 = scmp.lt.s32.totalorder %s9, 4
    %p140 = pnand %p138, %p139
    %p141 = pneg %p140
    // Predicated region
    $region29: #{gnn_forward.4} parent=5 // pred_check
      _
    $region30: #{gnn_forward.4} parent=5 // pred_check_branch
      %143 = sbr.rel (%p140) target = $region32
    $region31: #{gnn_forward.4} parent=5 // pred_region
      %s144 = ssub.s32 %s9, 1
      %s145 = smul.u32 64, %s14
      %p146 = scmp.lt.s32.totalorder %s145, 191
      %s147 = scalar_select %p146, %s145, 191
      %s148 = smul.addr %s147, 2
      %s149 = smul.addr %s148, 4
      %s150 = scalar_lea.vmem %s0, %s149
      %p151 = pneg %p35
      %p152 = pneg %p32
      %p153 = pneg %p56
      %p154 = pneg %p53
      %p155 = pneg %p77
      %p156 = pneg %p74
      %p157 = pneg %p103
      %p158 = pneg %p100
      %s159 = smul.u32 64, %s14
      %p160 = scmp.lt.s32.totalorder %s159, 191
      %s161 = scalar_select %p160, %s159, 191
      %s162 = smul.addr %s161, 4
      %s163 = scalar_lea.vmem %s3, %s162
      %s164 = smul.u32 64, %s14
      %p165 = scmp.lt.s32.totalorder %s164, 191
      %s166 = scalar_select %p165, %s164, 191
      %s167 = smul.addr %s166, 2
      %s168 = smul.addr %s167, 4
      %s169 = scalar_lea.vmem %s0, %s168
      %s170 = smul.u32 64, %s14
      %s171 = smul.u32 64, %s14
      %p172 = scmp.lt.s32.totalorder %s171, 191
      %s173 = scalar_select %p172, %s171, 191
      %s174 = smul.addr %s173, 4
      %s175 = scalar_lea.vmem %s3, %s174
      %s176 = smul.u32 64, %s14
      %v178 = vld [vmem:[%s169] sm:$0xff]
      %v179 = vld [vmem:[%s169 + $0x8] sm:$0xff]
      %v180 = vld [vmem:[%s169 + $0x10] sm:$0xff]
      %v181 = vld [vmem:[%s169 + $0x18] sm:$0xff]
      %v182 = vld [vmem:[%s169 + $0x20] sm:$0xff]
      %v183 = vld [vmem:[%s169 + $0x28] sm:$0xff]
      %v184 = vld [vmem:[%s169 + $0x30] sm:$0xff]
      %v185 = vld [vmem:[%s169 + $0x38] sm:$0xff]
      %v186 = vld [vmem:[%s169 + $0x40] sm:$0xff]
      %v187 = vld [vmem:[%s169 + $0x48] sm:$0xff]
      %v188 = vld [vmem:[%s169 + $0x50] sm:$0xff]
      %v189 = vld [vmem:[%s169 + $0x58] sm:$0xff]
      %v190 = vld [vmem:[%s169 + $0x60] sm:$0xff]
      %v191 = vld [vmem:[%s169 + $0x68] sm:$0xff]
      %v192 = vld [vmem:[%s169 + $0x70] sm:$0xff]
      %v193 = vld [vmem:[%s169 + $0x78] sm:$0xff]
      %v194 = vld [vmem:[%s169 + $0x80] sm:$0xff]
      %v195 = vld [vmem:[%s169 + $0x88] sm:$0xff]
      %v196 = vld [vmem:[%s169 + $0x90] sm:$0xff]
      %v197 = vld [vmem:[%s169 + $0x98] sm:$0xff]
      %v198 = vld [vmem:[%s169 + $0xa0] sm:$0xff]
      %v199 = vld [vmem:[%s169 + $0xa8] sm:$0xff]
      %v200 = vld [vmem:[%s169 + $0xb0] sm:$0xff]
      %v201 = vld [vmem:[%s169 + $0xb8] sm:$0xff]
      %v202 = vld [vmem:[%s169 + $0xc0] sm:$0xff]
      %v203 = vld [vmem:[%s169 + $0xc8] sm:$0xff]
      %v204 = vld [vmem:[%s169 + $0xd0] sm:$0xff]
      %v205 = vld [vmem:[%s169 + $0xd8] sm:$0xff]
      %v206 = vld [vmem:[%s169 + $0xe0] sm:$0xff]
      %v207 = vld [vmem:[%s169 + $0xe8] sm:$0xff]
      %v208 = vld [vmem:[%s169 + $0xf0] sm:$0xff]
      %v209 = vld [vmem:[%s169 + $0xf8] sm:$0xff]
      %v210 = vld [vmem:[%s169 + $0x100] sm:$0xff]
      %v211 = vld [vmem:[%s169 + $0x108] sm:$0xff]
      %v212 = vld [vmem:[%s169 + $0x110] sm:$0xff]
      %v213 = vld [vmem:[%s169 + $0x118] sm:$0xff]
      %v214 = vld [vmem:[%s169 + $0x120] sm:$0xff]
      %v215 = vld [vmem:[%s169 + $0x128] sm:$0xff]
      %v216 = vld [vmem:[%s169 + $0x130] sm:$0xff]
      %v217 = vld [vmem:[%s169 + $0x138] sm:$0xff]
      %v218 = vld [vmem:[%s169 + $0x140] sm:$0xff]
      %v219 = vld [vmem:[%s169 + $0x148] sm:$0xff]
      %v220 = vld [vmem:[%s169 + $0x150] sm:$0xff]
      %v221 = vld [vmem:[%s169 + $0x158] sm:$0xff]
      %v222 = vld [vmem:[%s169 + $0x160] sm:$0xff]
      %v223 = vld [vmem:[%s169 + $0x168] sm:$0xff]
      %v224 = vld [vmem:[%s169 + $0x170] sm:$0xff]
      %v225 = vld [vmem:[%s169 + $0x178] sm:$0xff]
      %v226 = vld [vmem:[%s169 + $0x180] sm:$0xff]
      %v227 = vld [vmem:[%s169 + $0x188] sm:$0xff]
      %v228 = vld [vmem:[%s169 + $0x190] sm:$0xff]
      %v229 = vld [vmem:[%s169 + $0x198] sm:$0xff]
      %v230 = vld [vmem:[%s169 + $0x1a0] sm:$0xff]
      %v231 = vld [vmem:[%s169 + $0x1a8] sm:$0xff]
      %v232 = vld [vmem:[%s169 + $0x1b0] sm:$0xff]
      %v233 = vld [vmem:[%s169 + $0x1b8] sm:$0xff]
      %v234 = vld [vmem:[%s169 + $0x1c0] sm:$0xff]
      %v235 = vld [vmem:[%s169 + $0x1c8] sm:$0xff]
      %v236 = vld [vmem:[%s169 + $0x1d0] sm:$0xff]
      %v237 = vld [vmem:[%s169 + $0x1d8] sm:$0xff]
      %v238 = vld [vmem:[%s169 + $0x1e0] sm:$0xff]
      %v239 = vld [vmem:[%s169 + $0x1e8] sm:$0xff]
      %v240 = vld [vmem:[%s169 + $0x1f0] sm:$0xff]
      %v241 = vld [vmem:[%s169 + $0x1f8] sm:$0xff]
      %v242 = vld [vmem:[%s1] sm:$0xf]
      %v243 = vld [vmem:[%s1 + $0x4] sm:$0xf]
      %v244 = vld [vmem:[%s1 + $0x8] sm:$0xf]
      %v245 = vld [vmem:[%s1 + $0xc] sm:$0xf]
      %v246 = vld [vmem:[%s1 + $0x10] sm:$0xf]
      %v247 = vld [vmem:[%s1 + $0x14] sm:$0xf]
      %v248 = vld [vmem:[%s1 + $0x18] sm:$0xf]
      %v249 = vld [vmem:[%s1 + $0x1c] sm:$0xf]
      %v250 = vld [vmem:[%s1 + $0x20] sm:$0xf]
      %v251 = vld [vmem:[%s1 + $0x24] sm:$0xf]
      %v252 = vld [vmem:[%s1 + $0x28] sm:$0xf]
      %v253 = vld [vmem:[%s1 + $0x2c] sm:$0xf]
      %v254 = vld [vmem:[%s1 + $0x30] sm:$0xf]
      %v255 = vld [vmem:[%s1 + $0x34] sm:$0xf]
      %v256 = vld [vmem:[%s1 + $0x38] sm:$0xf]
      %v257 = vld [vmem:[%s1 + $0x3c] sm:$0xf]
      %v258 = vld [vmem:[%s1 + $0x40] sm:$0xf]
      %v259 = vld [vmem:[%s1 + $0x44] sm:$0xf]
      %v260 = vld [vmem:[%s1 + $0x48] sm:$0xf]
      %v261 = vld [vmem:[%s1 + $0x4c] sm:$0xf]
      %v262 = vld [vmem:[%s1 + $0x50] sm:$0xf]
      %v263 = vld [vmem:[%s1 + $0x54] sm:$0xf]
      %v264 = vld [vmem:[%s1 + $0x58] sm:$0xf]
      %v265 = vld [vmem:[%s1 + $0x5c] sm:$0xf]
      %v266 = vld [vmem:[%s1 + $0x60] sm:$0xf]
      %v267 = vld [vmem:[%s1 + $0x64] sm:$0xf]
      %v268 = vld [vmem:[%s1 + $0x68] sm:$0xf]
      %v269 = vld [vmem:[%s1 + $0x6c] sm:$0xf]
      %v270 = vld [vmem:[%s1 + $0x70] sm:$0xf]
      %v271 = vld [vmem:[%s1 + $0x74] sm:$0xf]
      %v272 = vld [vmem:[%s1 + $0x78] sm:$0xf]
      %v273 = vld [vmem:[%s1 + $0x7c] sm:$0xf]
      %v274 = vld [vmem:[%s2] sm:$0x1]
      %v276 = vlaneseq
      %v277 = vshrl.u32 %v276, 7
      %v278 = vsub.s32 0, %v277
      %v279 = vrot.slane %v274, %v278
      %v345 = vunpack.c.l.b16 %v178
      %v346 = vunpack.c.h.b16 %v178
      %v347 = vunpack.c.l.b16 %v179
      %v348 = vunpack.c.h.b16 %v179
      %v349 = vunpack.c.l.b16 %v180
      %v350 = vunpack.c.h.b16 %v180
      %v351 = vunpack.c.l.b16 %v181
      %v352 = vunpack.c.h.b16 %v181
      %v353 = vunpack.c.l.b16 %v182
      %v354 = vunpack.c.h.b16 %v182
      %v355 = vunpack.c.l.b16 %v183
      %v356 = vunpack.c.h.b16 %v183
      %v357 = vunpack.c.l.b16 %v184
      %v358 = vunpack.c.h.b16 %v184
      %v359 = vunpack.c.l.b16 %v185
      %v360 = vunpack.c.h.b16 %v185
      %v361 = vunpack.c.l.b16 %v186
      %v362 = vunpack.c.h.b16 %v186
      %v363 = vunpack.c.l.b16 %v187
      %v364 = vunpack.c.h.b16 %v187
      %v365 = vunpack.c.l.b16 %v188
      %v366 = vunpack.c.h.b16 %v188
      %v367 = vunpack.c.l.b16 %v189
      %v368 = vunpack.c.h.b16 %v189
      %v369 = vunpack.c.l.b16 %v190
      %v370 = vunpack.c.h.b16 %v190
      %v371 = vunpack.c.l.b16 %v191
      %v372 = vunpack.c.h.b16 %v191
      %v373 = vunpack.c.l.b16 %v192
      %v374 = vunpack.c.h.b16 %v192
      %v375 = vunpack.c.l.b16 %v193
      %v376 = vunpack.c.h.b16 %v193
      %v377 = vunpack.c.l.b16 %v194
      %v378 = vunpack.c.h.b16 %v194
      %v379 = vunpack.c.l.b16 %v195
      %v380 = vunpack.c.h.b16 %v195
      %v381 = vunpack.c.l.b16 %v196
      %v382 = vunpack.c.h.b16 %v196
      %v383 = vunpack.c.l.b16 %v197
      %v384 = vunpack.c.h.b16 %v197
      %v385 = vunpack.c.l.b16 %v198
      %v386 = vunpack.c.h.b16 %v198
      %v387 = vunpack.c.l.b16 %v199
      %v388 = vunpack.c.h.b16 %v199
      %v389 = vunpack.c.l.b16 %v200
      %v390 = vunpack.c.h.b16 %v200
      %v391 = vunpack.c.l.b16 %v201
      %v392 = vunpack.c.h.b16 %v201
      %v393 = vunpack.c.l.b16 %v202
      %v394 = vunpack.c.h.b16 %v202
      %v395 = vunpack.c.l.b16 %v203
      %v396 = vunpack.c.h.b16 %v203
      %v397 = vunpack.c.l.b16 %v204
      %v398 = vunpack.c.h.b16 %v204
      %v399 = vunpack.c.l.b16 %v205
      %v400 = vunpack.c.h.b16 %v205
      %v401 = vunpack.c.l.b16 %v206
      %v402 = vunpack.c.h.b16 %v206
      %v403 = vunpack.c.l.b16 %v207
      %v404 = vunpack.c.h.b16 %v207
      %v405 = vunpack.c.l.b16 %v208
      %v406 = vunpack.c.h.b16 %v208
      %v407 = vunpack.c.l.b16 %v209
      %v408 = vunpack.c.h.b16 %v209
      %v409 = vunpack.c.l.b16 %v210
      %v410 = vunpack.c.h.b16 %v210
      %v411 = vunpack.c.l.b16 %v211
      %v412 = vunpack.c.h.b16 %v211
      %v413 = vunpack.c.l.b16 %v212
      %v414 = vunpack.c.h.b16 %v212
      %v415 = vunpack.c.l.b16 %v213
      %v416 = vunpack.c.h.b16 %v213
      %v417 = vunpack.c.l.b16 %v214
      %v418 = vunpack.c.h.b16 %v214
      %v419 = vunpack.c.l.b16 %v215
      %v420 = vunpack.c.h.b16 %v215
      %v421 = vunpack.c.l.b16 %v216
      %v422 = vunpack.c.h.b16 %v216
      %v423 = vunpack.c.l.b16 %v217
      %v424 = vunpack.c.h.b16 %v217
      %v425 = vunpack.c.l.b16 %v218
      %v426 = vunpack.c.h.b16 %v218
      %v427 = vunpack.c.l.b16 %v219
      %v428 = vunpack.c.h.b16 %v219
      %v429 = vunpack.c.l.b16 %v220
      %v430 = vunpack.c.h.b16 %v220
      %v431 = vunpack.c.l.b16 %v221
      %v432 = vunpack.c.h.b16 %v221
      %v433 = vunpack.c.l.b16 %v222
      %v434 = vunpack.c.h.b16 %v222
      %v435 = vunpack.c.l.b16 %v223
      %v436 = vunpack.c.h.b16 %v223
      %v437 = vunpack.c.l.b16 %v224
      %v438 = vunpack.c.h.b16 %v224
      %v439 = vunpack.c.l.b16 %v225
      %v440 = vunpack.c.h.b16 %v225
      %v441 = vunpack.c.l.b16 %v226
      %v442 = vunpack.c.h.b16 %v226
      %v443 = vunpack.c.l.b16 %v227
      %v444 = vunpack.c.h.b16 %v227
      %v445 = vunpack.c.l.b16 %v228
      %v446 = vunpack.c.h.b16 %v228
      %v447 = vunpack.c.l.b16 %v229
      %v448 = vunpack.c.h.b16 %v229
      %v449 = vunpack.c.l.b16 %v230
      %v450 = vunpack.c.h.b16 %v230
      %v451 = vunpack.c.l.b16 %v231
      %v452 = vunpack.c.h.b16 %v231
      %v453 = vunpack.c.l.b16 %v232
      %v454 = vunpack.c.h.b16 %v232
      %v455 = vunpack.c.l.b16 %v233
      %v456 = vunpack.c.h.b16 %v233
      %v457 = vunpack.c.l.b16 %v234
      %v458 = vunpack.c.h.b16 %v234
      %v459 = vunpack.c.l.b16 %v235
      %v460 = vunpack.c.h.b16 %v235
      %v461 = vunpack.c.l.b16 %v236
      %v462 = vunpack.c.h.b16 %v236
      %v463 = vunpack.c.l.b16 %v237
      %v464 = vunpack.c.h.b16 %v237
      %v465 = vunpack.c.l.b16 %v238
      %v466 = vunpack.c.h.b16 %v238
      %v467 = vunpack.c.l.b16 %v239
      %v468 = vunpack.c.h.b16 %v239
      %v469 = vunpack.c.l.b16 %v240
      %v470 = vunpack.c.h.b16 %v240
      %v471 = vunpack.c.l.b16 %v241
      %v472 = vunpack.c.h.b16 %v241
      %v473 = vpack.c.b16 %v347, %v345
      %v474 = vpack.c.b16 %v348, %v346
      %v475 = vpack.c.b16 %v351, %v349
      %v476 = vpack.c.b16 %v352, %v350
      %v477 = vpack.c.b16 %v355, %v353
      %v478 = vpack.c.b16 %v356, %v354
      %v479 = vpack.c.b16 %v359, %v357
      %v480 = vpack.c.b16 %v360, %v358
      %v481 = vpack.c.b16 %v363, %v361
      %v482 = vpack.c.b16 %v364, %v362
      %v483 = vpack.c.b16 %v367, %v365
      %v484 = vpack.c.b16 %v368, %v366
      %v485 = vpack.c.b16 %v371, %v369
      %v486 = vpack.c.b16 %v372, %v370
      %v487 = vpack.c.b16 %v375, %v373
      %v488 = vpack.c.b16 %v376, %v374
      %v489 = vpack.c.b16 %v379, %v377
      %v490 = vpack.c.b16 %v380, %v378
      %v491 = vpack.c.b16 %v383, %v381
      %v492 = vpack.c.b16 %v384, %v382
      %v493 = vpack.c.b16 %v387, %v385
      %v494 = vpack.c.b16 %v388, %v386
      %v495 = vpack.c.b16 %v391, %v389
      %v496 = vpack.c.b16 %v392, %v390
      %v497 = vpack.c.b16 %v395, %v393
      %v498 = vpack.c.b16 %v396, %v394
      %v499 = vpack.c.b16 %v399, %v397
      %v500 = vpack.c.b16 %v400, %v398
      %v501 = vpack.c.b16 %v403, %v401
      %v502 = vpack.c.b16 %v404, %v402
      %v503 = vpack.c.b16 %v407, %v405
      %v504 = vpack.c.b16 %v408, %v406
      %v505 = vpack.c.b16 %v411, %v409
      %v506 = vpack.c.b16 %v412, %v410
      %v507 = vpack.c.b16 %v415, %v413
      %v508 = vpack.c.b16 %v416, %v414
      %v509 = vpack.c.b16 %v419, %v417
      %v510 = vpack.c.b16 %v420, %v418
      %v511 = vpack.c.b16 %v423, %v421
      %v512 = vpack.c.b16 %v424, %v422
      %v513 = vpack.c.b16 %v427, %v425
      %v514 = vpack.c.b16 %v428, %v426
      %v515 = vpack.c.b16 %v431, %v429
      %v516 = vpack.c.b16 %v432, %v430
      %v517 = vpack.c.b16 %v435, %v433
      %v518 = vpack.c.b16 %v436, %v434
      %v519 = vpack.c.b16 %v439, %v437
      %v520 = vpack.c.b16 %v440, %v438
      %v521 = vpack.c.b16 %v443, %v441
      %v522 = vpack.c.b16 %v444, %v442
      %v523 = vpack.c.b16 %v447, %v445
      %v524 = vpack.c.b16 %v448, %v446
      %v525 = vpack.c.b16 %v451, %v449
      %v526 = vpack.c.b16 %v452, %v450
      %v527 = vpack.c.b16 %v455, %v453
      %v528 = vpack.c.b16 %v456, %v454
      %v529 = vpack.c.b16 %v459, %v457
      %v530 = vpack.c.b16 %v460, %v458
      %v531 = vpack.c.b16 %v463, %v461
      %v532 = vpack.c.b16 %v464, %v462
      %v533 = vpack.c.b16 %v467, %v465
      %v534 = vpack.c.b16 %v468, %v466
      %v535 = vpack.c.b16 %v471, %v469
      %v536 = vpack.c.b16 %v472, %v470
      %v633 = vunpack.c.l.b16 %v242
      %v634 = vunpack.c.l.b16 %v243
      %v635 = vunpack.c.l.b16 %v244
      %v636 = vunpack.c.l.b16 %v245
      %v637 = vunpack.c.l.b16 %v246
      %v638 = vunpack.c.l.b16 %v247
      %v639 = vunpack.c.l.b16 %v248
      %v640 = vunpack.c.l.b16 %v249
      %v641 = vunpack.c.l.b16 %v250
      %v642 = vunpack.c.l.b16 %v251
      %v643 = vunpack.c.l.b16 %v252
      %v644 = vunpack.c.l.b16 %v253
      %v645 = vunpack.c.l.b16 %v254
      %v646 = vunpack.c.l.b16 %v255
      %v647 = vunpack.c.l.b16 %v256
      %v648 = vunpack.c.l.b16 %v257
      %v649 = vunpack.c.l.b16 %v258
      %v650 = vunpack.c.l.b16 %v259
      %v651 = vunpack.c.l.b16 %v260
      %v652 = vunpack.c.l.b16 %v261
      %v653 = vunpack.c.l.b16 %v262
      %v654 = vunpack.c.l.b16 %v263
      %v655 = vunpack.c.l.b16 %v264
      %v656 = vunpack.c.l.b16 %v265
      %v657 = vunpack.c.l.b16 %v266
      %v658 = vunpack.c.l.b16 %v267
      %v659 = vunpack.c.l.b16 %v268
      %v660 = vunpack.c.l.b16 %v269
      %v661 = vunpack.c.l.b16 %v270
      %v662 = vunpack.c.l.b16 %v271
      %v663 = vunpack.c.l.b16 %v272
      %v664 = vunpack.c.l.b16 %v273
      %v665 = vpack.c.b16 %v634, %v633
      %v666 = vpack.c.b16 %v636, %v635
      %v667 = vpack.c.b16 %v638, %v637
      %v668 = vpack.c.b16 %v640, %v639
      %v669 = vpack.c.b16 %v642, %v641
      %v670 = vpack.c.b16 %v644, %v643
      %v671 = vpack.c.b16 %v646, %v645
      %v672 = vpack.c.b16 %v648, %v647
      %v673 = vpack.c.b16 %v650, %v649
      %v674 = vpack.c.b16 %v652, %v651
      %v675 = vpack.c.b16 %v654, %v653
      %v676 = vpack.c.b16 %v656, %v655
      %v677 = vpack.c.b16 %v658, %v657
      %v678 = vpack.c.b16 %v660, %v659
      %v679 = vpack.c.b16 %v662, %v661
      %v680 = vpack.c.b16 %v664, %v663
      %697 = vmatprep.subr.bf16.mxu0 0
      %698 = vmatpush1.bf16.msra.mxu0 %v672
      %699 = vmatprep.subr.bf16.mxu0 0
      %700 = vmatpush1.bf16.msra.mxu0 %v671
      %701 = vmatprep.subr.bf16.mxu0 0
      %702 = vmatpush1.bf16.msra.mxu0 %v670
      %703 = vmatprep.subr.bf16.mxu0 0
      %704 = vmatpush1.bf16.msra.mxu0 %v669
      %705 = vmatprep.subr.bf16.mxu0 0
      %706 = vmatpush1.bf16.msra.mxu0 %v668
      %707 = vmatprep.subr.bf16.mxu0 0
      %708 = vmatpush1.bf16.msra.mxu0 %v667
      %709 = vmatprep.subr.bf16.mxu0 0
      %710 = vmatpush1.bf16.msra.mxu0 %v666
      %711 = vmatprep.subr.bf16.mxu0 0
      %712 = vmatpush1.bf16.msra.mxu0 %v665
      %713 = vmatprep.subr.bf16.mxu0 0
      %714 = vmatpush2.bf16.msra.mxu0 %v680
      %715 = vmatprep.subr.bf16.mxu0 0
      %716 = vmatpush2.bf16.msra.mxu0 %v679
      %717 = vmatprep.subr.bf16.mxu0 0
      %718 = vmatpush2.bf16.msra.mxu0 %v678
      %719 = vmatprep.subr.bf16.mxu0 0
      %720 = vmatpush2.bf16.msra.mxu0 %v677
      %721 = vmatprep.subr.bf16.mxu0 0
      %722 = vmatpush2.bf16.msra.mxu0 %v676
      %723 = vmatprep.subr.bf16.mxu0 0
      %724 = vmatpush2.bf16.msra.mxu0 %v675
      %725 = vmatprep.subr.bf16.mxu0 0
      %726 = vmatpush2.bf16.msra.mxu0 %v674
      %727 = vmatprep.subr.bf16.mxu0 0
      %728 = vmatpush2.bf16.msra.mxu0 %v673
      %729 = vmatprep.mubr.bf16.mxu0 %v474
      %730 = vmatmul.mubr.bf16.gmra.mxu0 %v473
      %v731 = vpop.f32.mrf.mxu0
      %v732 = vadd.f32 %v279, %v731
      %v733 = vpop.f32.mrf.mxu0
      %v734 = vpop.f32.mrf.mxu0
      %v735 = vadd.f32 %v279, %v734
      %v736 = vpop.f32.mrf.mxu0
      %737 = vmatprep.mubr.bf16.mxu0 %v476
      %738 = vmatmul.mubr.bf16.gmra.mxu0 %v475
      %v739 = vpop.f32.mrf.mxu0
      %v740 = vadd.f32 %v279, %v739
      %v741 = vpop.f32.mrf.mxu0
      %v742 = vpop.f32.mrf.mxu0
      %v743 = vadd.f32 %v279, %v742
      %v744 = vpop.f32.mrf.mxu0
      %745 = vmatprep.mubr.bf16.mxu0 %v478
      %746 = vmatmul.mubr.bf16.gmra.mxu0 %v477
      %v747 = vpop.f32.mrf.mxu0
      %v748 = vadd.f32 %v279, %v747
      %v749 = vpop.f32.mrf.mxu0
      %v750 = vpop.f32.mrf.mxu0
      %v751 = vadd.f32 %v279, %v750
      %v752 = vpop.f32.mrf.mxu0
      %753 = vmatprep.mubr.bf16.mxu0 %v480
      %754 = vmatmul.mubr.bf16.gmra.mxu0 %v479
      %v755 = vpop.f32.mrf.mxu0
      %v756 = vadd.f32 %v279, %v755
      %v757 = vpop.f32.mrf.mxu0
      %v758 = vpop.f32.mrf.mxu0
      %v759 = vadd.f32 %v279, %v758
      %v760 = vpop.f32.mrf.mxu0
      %761 = vmatprep.mubr.bf16.mxu0 %v482
      %762 = vmatmul.mubr.bf16.gmra.mxu0 %v481
      %v763 = vpop.f32.mrf.mxu0
      %v764 = vadd.f32 %v279, %v763
      %v765 = vpop.f32.mrf.mxu0
      %v766 = vpop.f32.mrf.mxu0
      %v767 = vadd.f32 %v279, %v766
      %v768 = vpop.f32.mrf.mxu0
      %769 = vmatprep.mubr.bf16.mxu0 %v484
      %770 = vmatmul.mubr.bf16.gmra.mxu0 %v483
      %v771 = vpop.f32.mrf.mxu0
      %v772 = vadd.f32 %v279, %v771
      %v773 = vpop.f32.mrf.mxu0
      %v774 = vpop.f32.mrf.mxu0
      %v775 = vadd.f32 %v279, %v774
      %v776 = vpop.f32.mrf.mxu0
      %777 = vmatprep.mubr.bf16.mxu0 %v486
      %778 = vmatmul.mubr.bf16.gmra.mxu0 %v485
      %v779 = vpop.f32.mrf.mxu0
      %v780 = vadd.f32 %v279, %v779
      %v781 = vpop.f32.mrf.mxu0
      %v782 = vpop.f32.mrf.mxu0
      %v783 = vadd.f32 %v279, %v782
      %v784 = vpop.f32.mrf.mxu0
      %785 = vmatprep.mubr.bf16.mxu0 %v488
      %786 = vmatmul.mubr.bf16.gmra.mxu0 %v487
      %v787 = vpop.f32.mrf.mxu0
      %v788 = vadd.f32 %v279, %v787
      %v789 = vpop.f32.mrf.mxu0
      %v790 = vpop.f32.mrf.mxu0
      %v791 = vadd.f32 %v279, %v790
      %v792 = vpop.f32.mrf.mxu0
      %793 = vmatprep.mubr.bf16.mxu0 %v490
      %794 = vmatmul.mubr.bf16.gmra.mxu0 %v489
      %v795 = vpop.f32.mrf.mxu0
      %v796 = vadd.f32 %v279, %v795
      %v797 = vpop.f32.mrf.mxu0
      %v798 = vpop.f32.mrf.mxu0
      %v799 = vadd.f32 %v279, %v798
      %v800 = vpop.f32.mrf.mxu0
      %801 = vmatprep.mubr.bf16.mxu0 %v492
      %802 = vmatmul.mubr.bf16.gmra.mxu0 %v491
      %v803 = vpop.f32.mrf.mxu0
      %v804 = vadd.f32 %v279, %v803
      %v805 = vpop.f32.mrf.mxu0
      %v806 = vpop.f32.mrf.mxu0
      %v807 = vadd.f32 %v279, %v806
      %v808 = vpop.f32.mrf.mxu0
      %809 = vmatprep.mubr.bf16.mxu0 %v494
      %810 = vmatmul.mubr.bf16.gmra.mxu0 %v493
      %v811 = vpop.f32.mrf.mxu0
      %v812 = vadd.f32 %v279, %v811
      %v813 = vpop.f32.mrf.mxu0
      %v814 = vpop.f32.mrf.mxu0
      %v815 = vadd.f32 %v279, %v814
      %v816 = vpop.f32.mrf.mxu0
      %817 = vmatprep.mubr.bf16.mxu0 %v496
      %818 = vmatmul.mubr.bf16.gmra.mxu0 %v495
      %v819 = vpop.f32.mrf.mxu0
      %v820 = vadd.f32 %v279, %v819
      %v821 = vpop.f32.mrf.mxu0
      %v822 = vpop.f32.mrf.mxu0
      %v823 = vadd.f32 %v279, %v822
      %v824 = vpop.f32.mrf.mxu0
      %825 = vmatprep.mubr.bf16.mxu0 %v498
      %826 = vmatmul.mubr.bf16.gmra.mxu0 %v497
      %v827 = vpop.f32.mrf.mxu0
      %v828 = vadd.f32 %v279, %v827
      %v829 = vpop.f32.mrf.mxu0
      %v830 = vpop.f32.mrf.mxu0
      %v831 = vadd.f32 %v279, %v830
      %v832 = vpop.f32.mrf.mxu0
      %833 = vmatprep.mubr.bf16.mxu0 %v500
      %834 = vmatmul.mubr.bf16.gmra.mxu0 %v499
      %v835 = vpop.f32.mrf.mxu0
      %v836 = vadd.f32 %v279, %v835
      %v837 = vpop.f32.mrf.mxu0
      %v838 = vpop.f32.mrf.mxu0
      %v839 = vadd.f32 %v279, %v838
      %v840 = vpop.f32.mrf.mxu0
      %841 = vmatprep.mubr.bf16.mxu0 %v502
      %842 = vmatmul.mubr.bf16.gmra.mxu0 %v501
      %v843 = vpop.f32.mrf.mxu0
      %v844 = vadd.f32 %v279, %v843
      %v845 = vpop.f32.mrf.mxu0
      %v846 = vpop.f32.mrf.mxu0
      %v847 = vadd.f32 %v279, %v846
      %v848 = vpop.f32.mrf.mxu0
      %849 = vmatprep.mubr.bf16.mxu0 %v504
      %850 = vmatmul.mubr.bf16.gmra.mxu0 %v503
      %v851 = vpop.f32.mrf.mxu0
      %v852 = vadd.f32 %v279, %v851
      %v853 = vpop.f32.mrf.mxu0
      %v854 = vpop.f32.mrf.mxu0
      %v855 = vadd.f32 %v279, %v854
      %v856 = vpop.f32.mrf.mxu0
      %857 = vmatprep.mubr.bf16.mxu0 %v506
      %858 = vmatmul.mubr.bf16.gmra.mxu0 %v505
      %v859 = vpop.f32.mrf.mxu0
      %v860 = vadd.f32 %v279, %v859
      %v861 = vpop.f32.mrf.mxu0
      %v862 = vpop.f32.mrf.mxu0
      %v863 = vadd.f32 %v279, %v862
      %v864 = vpop.f32.mrf.mxu0
      %865 = vmatprep.mubr.bf16.mxu0 %v508
      %866 = vmatmul.mubr.bf16.gmra.mxu0 %v507
      %v867 = vpop.f32.mrf.mxu0
      %v868 = vadd.f32 %v279, %v867
      %v869 = vpop.f32.mrf.mxu0
      %v870 = vpop.f32.mrf.mxu0
      %v871 = vadd.f32 %v279, %v870
      %v872 = vpop.f32.mrf.mxu0
      %873 = vmatprep.mubr.bf16.mxu0 %v510
      %874 = vmatmul.mubr.bf16.gmra.mxu0 %v509
      %v875 = vpop.f32.mrf.mxu0
      %v876 = vadd.f32 %v279, %v875
      %v877 = vpop.f32.mrf.mxu0
      %v878 = vpop.f32.mrf.mxu0
      %v879 = vadd.f32 %v279, %v878
      %v880 = vpop.f32.mrf.mxu0
      %881 = vmatprep.mubr.bf16.mxu0 %v512
      %882 = vmatmul.mubr.bf16.gmra.mxu0 %v511
      %v883 = vpop.f32.mrf.mxu0
      %v884 = vadd.f32 %v279, %v883
      %v885 = vpop.f32.mrf.mxu0
      %v886 = vpop.f32.mrf.mxu0
      %v887 = vadd.f32 %v279, %v886
      %v888 = vpop.f32.mrf.mxu0
      %889 = vmatprep.mubr.bf16.mxu0 %v514
      %890 = vmatmul.mubr.bf16.gmra.mxu0 %v513
      %v891 = vpop.f32.mrf.mxu0
      %v892 = vadd.f32 %v279, %v891
      %v893 = vpop.f32.mrf.mxu0
      %v894 = vpop.f32.mrf.mxu0
      %v895 = vadd.f32 %v279, %v894
      %v896 = vpop.f32.mrf.mxu0
      %897 = vmatprep.mubr.bf16.mxu0 %v516
      %898 = vmatmul.mubr.bf16.gmra.mxu0 %v515
      %v899 = vpop.f32.mrf.mxu0
      %v900 = vadd.f32 %v279, %v899
      %v901 = vpop.f32.mrf.mxu0
      %v902 = vpop.f32.mrf.mxu0
      %v903 = vadd.f32 %v279, %v902
      %v904 = vpop.f32.mrf.mxu0
      %905 = vmatprep.mubr.bf16.mxu0 %v518
      %906 = vmatmul.mubr.bf16.gmra.mxu0 %v517
      %v907 = vpop.f32.mrf.mxu0
      %v908 = vadd.f32 %v279, %v907
      %v909 = vpop.f32.mrf.mxu0
      %v910 = vpop.f32.mrf.mxu0
      %v911 = vadd.f32 %v279, %v910
      %v912 = vpop.f32.mrf.mxu0
      %913 = vmatprep.mubr.bf16.mxu0 %v520
      %914 = vmatmul.mubr.bf16.gmra.mxu0 %v519
      %v915 = vpop.f32.mrf.mxu0
      %v916 = vadd.f32 %v279, %v915
      %v917 = vpop.f32.mrf.mxu0
      %v918 = vpop.f32.mrf.mxu0
      %v919 = vadd.f32 %v279, %v918
      %v920 = vpop.f32.mrf.mxu0
      %921 = vmatprep.mubr.bf16.mxu0 %v522
      %922 = vmatmul.mubr.bf16.gmra.mxu0 %v521
      %v923 = vpop.f32.mrf.mxu0
      %v924 = vadd.f32 %v279, %v923
      %v925 = vpop.f32.mrf.mxu0
      %v926 = vpop.f32.mrf.mxu0
      %v927 = vadd.f32 %v279, %v926
      %v928 = vpop.f32.mrf.mxu0
      %929 = vmatprep.mubr.bf16.mxu0 %v524
      %930 = vmatmul.mubr.bf16.gmra.mxu0 %v523
      %v931 = vpop.f32.mrf.mxu0
      %v932 = vadd.f32 %v279, %v931
      %v933 = vpop.f32.mrf.mxu0
      %v934 = vpop.f32.mrf.mxu0
      %v935 = vadd.f32 %v279, %v934
      %v936 = vpop.f32.mrf.mxu0
      %937 = vmatprep.mubr.bf16.mxu0 %v526
      %938 = vmatmul.mubr.bf16.gmra.mxu0 %v525
      %v939 = vpop.f32.mrf.mxu0
      %v940 = vadd.f32 %v279, %v939
      %v941 = vpop.f32.mrf.mxu0
      %v942 = vpop.f32.mrf.mxu0
      %v943 = vadd.f32 %v279, %v942
      %v944 = vpop.f32.mrf.mxu0
      %945 = vmatprep.mubr.bf16.mxu0 %v528
      %946 = vmatmul.mubr.bf16.gmra.mxu0 %v527
      %v947 = vpop.f32.mrf.mxu0
      %v948 = vadd.f32 %v279, %v947
      %v949 = vpop.f32.mrf.mxu0
      %v950 = vpop.f32.mrf.mxu0
      %v951 = vadd.f32 %v279, %v950
      %v952 = vpop.f32.mrf.mxu0
      %953 = vmatprep.mubr.bf16.mxu0 %v530
      %954 = vmatmul.mubr.bf16.gmra.mxu0 %v529
      %v955 = vpop.f32.mrf.mxu0
      %v956 = vadd.f32 %v279, %v955
      %v957 = vpop.f32.mrf.mxu0
      %v958 = vpop.f32.mrf.mxu0
      %v959 = vadd.f32 %v279, %v958
      %v960 = vpop.f32.mrf.mxu0
      %961 = vmatprep.mubr.bf16.mxu0 %v532
      %962 = vmatmul.mubr.bf16.gmra.mxu0 %v531
      %v963 = vpop.f32.mrf.mxu0
      %v964 = vadd.f32 %v279, %v963
      %v965 = vpop.f32.mrf.mxu0
      %v966 = vpop.f32.mrf.mxu0
      %v967 = vadd.f32 %v279, %v966
      %v968 = vpop.f32.mrf.mxu0
      %969 = vmatprep.mubr.bf16.mxu0 %v534
      %970 = vmatmul.mubr.bf16.gmra.mxu0 %v533
      %v971 = vpop.f32.mrf.mxu0
      %v972 = vadd.f32 %v279, %v971
      %v973 = vpop.f32.mrf.mxu0
      %v974 = vpop.f32.mrf.mxu0
      %v975 = vadd.f32 %v279, %v974
      %v976 = vpop.f32.mrf.mxu0
      %977 = vmatprep.mubr.bf16.mxu0 %v536
      %978 = vmatmul.mubr.bf16.gmra.mxu0 %v535
      %v979 = vpop.f32.mrf.mxu0
      %v980 = vadd.f32 %v279, %v979
      %v981 = vpop.f32.mrf.mxu0
      %v982 = vpop.f32.mrf.mxu0
      %v983 = vadd.f32 %v279, %v982
      %v984 = vpop.f32.mrf.mxu0
      %985 = vdwg.mxu0
      %v986 = vmax.f32 %v732, 0.0
      %v987 = vmax.f32 %v735, 0.0
      %v988 = vmax.f32 %v740, 0.0
      %v989 = vmax.f32 %v743, 0.0
      %v990 = vmax.f32 %v748, 0.0
      %v991 = vmax.f32 %v751, 0.0
      %v992 = vmax.f32 %v756, 0.0
      %v993 = vmax.f32 %v759, 0.0
      %v994 = vmax.f32 %v764, 0.0
      %v995 = vmax.f32 %v767, 0.0
      %v996 = vmax.f32 %v772, 0.0
      %v997 = vmax.f32 %v775, 0.0
      %v998 = vmax.f32 %v780, 0.0
      %v999 = vmax.f32 %v783, 0.0
      %v1000 = vmax.f32 %v788, 0.0
      %v1001 = vmax.f32 %v791, 0.0
      %v1002 = vmax.f32 %v796, 0.0
      %v1003 = vmax.f32 %v799, 0.0
      %v1004 = vmax.f32 %v804, 0.0
      %v1005 = vmax.f32 %v807, 0.0
      %v1006 = vmax.f32 %v812, 0.0
      %v1007 = vmax.f32 %v815, 0.0
      %v1008 = vmax.f32 %v820, 0.0
      %v1009 = vmax.f32 %v823, 0.0
      %v1010 = vmax.f32 %v828, 0.0
      %v1011 = vmax.f32 %v831, 0.0
      %v1012 = vmax.f32 %v836, 0.0
      %v1013 = vmax.f32 %v839, 0.0
      %v1014 = vmax.f32 %v844, 0.0
      %v1015 = vmax.f32 %v847, 0.0
      %v1016 = vmax.f32 %v852, 0.0
      %v1017 = vmax.f32 %v855, 0.0
      %v1018 = vmax.f32 %v860, 0.0
      %v1019 = vmax.f32 %v863, 0.0
      %v1020 = vmax.f32 %v868, 0.0
      %v1021 = vmax.f32 %v871, 0.0
      %v1022 = vmax.f32 %v876, 0.0
      %v1023 = vmax.f32 %v879, 0.0
      %v1024 = vmax.f32 %v884, 0.0
      %v1025 = vmax.f32 %v887, 0.0
      %v1026 = vmax.f32 %v892, 0.0
      %v1027 = vmax.f32 %v895, 0.0
      %v1028 = vmax.f32 %v900, 0.0
      %v1029 = vmax.f32 %v903, 0.0
      %v1030 = vmax.f32 %v908, 0.0
      %v1031 = vmax.f32 %v911, 0.0
      %v1032 = vmax.f32 %v916, 0.0
      %v1033 = vmax.f32 %v919, 0.0
      %v1034 = vmax.f32 %v924, 0.0
      %v1035 = vmax.f32 %v927, 0.0
      %v1036 = vmax.f32 %v932, 0.0
      %v1037 = vmax.f32 %v935, 0.0
      %v1038 = vmax.f32 %v940, 0.0
      %v1039 = vmax.f32 %v943, 0.0
      %v1040 = vmax.f32 %v948, 0.0
      %v1041 = vmax.f32 %v951, 0.0
      %v1042 = vmax.f32 %v956, 0.0
      %v1043 = vmax.f32 %v959, 0.0
      %v1044 = vmax.f32 %v964, 0.0
      %v1045 = vmax.f32 %v967, 0.0
      %v1046 = vmax.f32 %v972, 0.0
      %v1047 = vmax.f32 %v975, 0.0
      %v1048 = vmax.f32 %v980, 0.0
      %v1049 = vmax.f32 %v983, 0.0
      %v1050 = vpack.c.bf16 %v987, %v986
      %v1051 = vpack.c.bf16 %v989, %v988
      %v1052 = vpack.c.bf16 %v991, %v990
      %v1053 = vpack.c.bf16 %v993, %v992
      %v1054 = vpack.c.bf16 %v995, %v994
      %v1055 = vpack.c.bf16 %v997, %v996
      %v1056 = vpack.c.bf16 %v999, %v998
      %v1057 = vpack.c.bf16 %v1001, %v1000
      %v1058 = vpack.c.bf16 %v1003, %v1002
      %v1059 = vpack.c.bf16 %v1005, %v1004
      %v1060 = vpack.c.bf16 %v1007, %v1006
      %v1061 = vpack.c.bf16 %v1009, %v1008
      %v1062 = vpack.c.bf16 %v1011, %v1010
      %v1063 = vpack.c.bf16 %v1013, %v1012
      %v1064 = vpack.c.bf16 %v1015, %v1014
      %v1065 = vpack.c.bf16 %v1017, %v1016
      %v1066 = vpack.c.bf16 %v1019, %v1018
      %v1067 = vpack.c.bf16 %v1021, %v1020
      %v1068 = vpack.c.bf16 %v1023, %v1022
      %v1069 = vpack.c.bf16 %v1025, %v1024
      %v1070 = vpack.c.bf16 %v1027, %v1026
      %v1071 = vpack.c.bf16 %v1029, %v1028
      %v1072 = vpack.c.bf16 %v1031, %v1030
      %v1073 = vpack.c.bf16 %v1033, %v1032
      %v1074 = vpack.c.bf16 %v1035, %v1034
      %v1075 = vpack.c.bf16 %v1037, %v1036
      %v1076 = vpack.c.bf16 %v1039, %v1038
      %v1077 = vpack.c.bf16 %v1041, %v1040
      %v1078 = vpack.c.bf16 %v1043, %v1042
      %v1079 = vpack.c.bf16 %v1045, %v1044
      %v1080 = vpack.c.bf16 %v1047, %v1046
      %v1081 = vpack.c.bf16 %v1049, %v1048
      %v1114 = vunpack.c.l.b16 %v1050
      %v1115 = vunpack.c.h.b16 %v1050
      %v1116 = vunpack.c.l.b16 %v1051
      %v1117 = vunpack.c.h.b16 %v1051
      %v1118 = vunpack.c.l.b16 %v1052
      %v1119 = vunpack.c.h.b16 %v1052
      %v1120 = vunpack.c.l.b16 %v1053
      %v1121 = vunpack.c.h.b16 %v1053
      %v1122 = vunpack.c.l.b16 %v1054
      %v1123 = vunpack.c.h.b16 %v1054
      %v1124 = vunpack.c.l.b16 %v1055
      %v1125 = vunpack.c.h.b16 %v1055
      %v1126 = vunpack.c.l.b16 %v1056
      %v1127 = vunpack.c.h.b16 %v1056
      %v1128 = vunpack.c.l.b16 %v1057
      %v1129 = vunpack.c.h.b16 %v1057
      %v1130 = vunpack.c.l.b16 %v1058
      %v1131 = vunpack.c.h.b16 %v1058
      %v1132 = vunpack.c.l.b16 %v1059
      %v1133 = vunpack.c.h.b16 %v1059
      %v1134 = vunpack.c.l.b16 %v1060
      %v1135 = vunpack.c.h.b16 %v1060
      %v1136 = vunpack.c.l.b16 %v1061
      %v1137 = vunpack.c.h.b16 %v1061
      %v1138 = vunpack.c.l.b16 %v1062
      %v1139 = vunpack.c.h.b16 %v1062
      %v1140 = vunpack.c.l.b16 %v1063
      %v1141 = vunpack.c.h.b16 %v1063
      %v1142 = vunpack.c.l.b16 %v1064
      %v1143 = vunpack.c.h.b16 %v1064
      %v1144 = vunpack.c.l.b16 %v1065
      %v1145 = vunpack.c.h.b16 %v1065
      %v1146 = vunpack.c.l.b16 %v1066
      %v1147 = vunpack.c.h.b16 %v1066
      %v1148 = vunpack.c.l.b16 %v1067
      %v1149 = vunpack.c.h.b16 %v1067
      %v1150 = vunpack.c.l.b16 %v1068
      %v1151 = vunpack.c.h.b16 %v1068
      %v1152 = vunpack.c.l.b16 %v1069
      %v1153 = vunpack.c.h.b16 %v1069
      %v1154 = vunpack.c.l.b16 %v1070
      %v1155 = vunpack.c.h.b16 %v1070
      %v1156 = vunpack.c.l.b16 %v1071
      %v1157 = vunpack.c.h.b16 %v1071
      %v1158 = vunpack.c.l.b16 %v1072
      %v1159 = vunpack.c.h.b16 %v1072
      %v1160 = vunpack.c.l.b16 %v1073
      %v1161 = vunpack.c.h.b16 %v1073
      %v1162 = vunpack.c.l.b16 %v1074
      %v1163 = vunpack.c.h.b16 %v1074
      %v1164 = vunpack.c.l.b16 %v1075
      %v1165 = vunpack.c.h.b16 %v1075
      %v1166 = vunpack.c.l.b16 %v1076
      %v1167 = vunpack.c.h.b16 %v1076
      %v1168 = vunpack.c.l.b16 %v1077
      %v1169 = vunpack.c.h.b16 %v1077
      %v1170 = vunpack.c.l.b16 %v1078
      %v1171 = vunpack.c.h.b16 %v1078
      %v1172 = vunpack.c.l.b16 %v1079
      %v1173 = vunpack.c.h.b16 %v1079
      %v1174 = vunpack.c.l.b16 %v1080
      %v1175 = vunpack.c.h.b16 %v1080
      %v1176 = vunpack.c.l.b16 %v1081
      %v1177 = vunpack.c.h.b16 %v1081
      %v1178 = vpack.c.b16 %v1114, %v1114
      %v1179 = vpack.c.b16 %v1115, %v1115
      %v1180 = vpack.c.b16 %v1116, %v1116
      %v1181 = vpack.c.b16 %v1117, %v1117
      %v1182 = vpack.c.b16 %v1118, %v1118
      %v1183 = vpack.c.b16 %v1119, %v1119
      %v1184 = vpack.c.b16 %v1120, %v1120
      %v1185 = vpack.c.b16 %v1121, %v1121
      %v1186 = vpack.c.b16 %v1122, %v1122
      %v1187 = vpack.c.b16 %v1123, %v1123
      %v1188 = vpack.c.b16 %v1124, %v1124
      %v1189 = vpack.c.b16 %v1125, %v1125
      %v1190 = vpack.c.b16 %v1126, %v1126
      %v1191 = vpack.c.b16 %v1127, %v1127
      %v1192 = vpack.c.b16 %v1128, %v1128
      %v1193 = vpack.c.b16 %v1129, %v1129
      %v1194 = vpack.c.b16 %v1130, %v1130
      %v1195 = vpack.c.b16 %v1131, %v1131
      %v1196 = vpack.c.b16 %v1132, %v1132
      %v1197 = vpack.c.b16 %v1133, %v1133
      %v1198 = vpack.c.b16 %v1134, %v1134
      %v1199 = vpack.c.b16 %v1135, %v1135
      %v1200 = vpack.c.b16 %v1136, %v1136
      %v1201 = vpack.c.b16 %v1137, %v1137
      %v1202 = vpack.c.b16 %v1138, %v1138
      %v1203 = vpack.c.b16 %v1139, %v1139
      %v1204 = vpack.c.b16 %v1140, %v1140
      %v1205 = vpack.c.b16 %v1141, %v1141
      %v1206 = vpack.c.b16 %v1142, %v1142
      %v1207 = vpack.c.b16 %v1143, %v1143
      %v1208 = vpack.c.b16 %v1144, %v1144
      %v1209 = vpack.c.b16 %v1145, %v1145
      %v1210 = vpack.c.b16 %v1146, %v1146
      %v1211 = vpack.c.b16 %v1147, %v1147
      %v1212 = vpack.c.b16 %v1148, %v1148
      %v1213 = vpack.c.b16 %v1149, %v1149
      %v1214 = vpack.c.b16 %v1150, %v1150
      %v1215 = vpack.c.b16 %v1151, %v1151
      %v1216 = vpack.c.b16 %v1152, %v1152
      %v1217 = vpack.c.b16 %v1153, %v1153
      %v1218 = vpack.c.b16 %v1154, %v1154
      %v1219 = vpack.c.b16 %v1155, %v1155
      %v1220 = vpack.c.b16 %v1156, %v1156
      %v1221 = vpack.c.b16 %v1157, %v1157
      %v1222 = vpack.c.b16 %v1158, %v1158
      %v1223 = vpack.c.b16 %v1159, %v1159
      %v1224 = vpack.c.b16 %v1160, %v1160
      %v1225 = vpack.c.b16 %v1161, %v1161
      %v1226 = vpack.c.b16 %v1162, %v1162
      %v1227 = vpack.c.b16 %v1163, %v1163
      %v1228 = vpack.c.b16 %v1164, %v1164
      %v1229 = vpack.c.b16 %v1165, %v1165
      %v1230 = vpack.c.b16 %v1166, %v1166
      %v1231 = vpack.c.b16 %v1167, %v1167
      %v1232 = vpack.c.b16 %v1168, %v1168
      %v1233 = vpack.c.b16 %v1169, %v1169
      %v1234 = vpack.c.b16 %v1170, %v1170
      %v1235 = vpack.c.b16 %v1171, %v1171
      %v1236 = vpack.c.b16 %v1172, %v1172
      %v1237 = vpack.c.b16 %v1173, %v1173
      %v1238 = vpack.c.b16 %v1174, %v1174
      %v1239 = vpack.c.b16 %v1175, %v1175
      %v1240 = vpack.c.b16 %v1176, %v1176
      %v1241 = vpack.c.b16 %v1177, %v1177
      %1306 = vst [vmem:[%s175] sm:$0xf] %v1178
      %1307 = vst [vmem:[%s175 + $0x4] sm:$0xf] %v1179
      %1308 = vst [vmem:[%s175 + $0x8] sm:$0xf] %v1180
      %1309 = vst [vmem:[%s175 + $0xc] sm:$0xf] %v1181
      %1310 = vst [vmem:[%s175 + $0x10] sm:$0xf] %v1182
      %1311 = vst [vmem:[%s175 + $0x14] sm:$0xf] %v1183
      %1312 = vst [vmem:[%s175 + $0x18] sm:$0xf] %v1184
      %1313 = vst [vmem:[%s175 + $0x1c] sm:$0xf] %v1185
      %1314 = vst [vmem:[%s175 + $0x20] sm:$0xf] %v1186
      %1315 = vst [vmem:[%s175 + $0x24] sm:$0xf] %v1187
      %1316 = vst [vmem:[%s175 + $0x28] sm:$0xf] %v1188
      %1317 = vst [vmem:[%s175 + $0x2c] sm:$0xf] %v1189
      %1318 = vst [vmem:[%s175 + $0x30] sm:$0xf] %v1190
      %1319 = vst [vmem:[%s175 + $0x34] sm:$0xf] %v1191
      %1320 = vst [vmem:[%s175 + $0x38] sm:$0xf] %v1192
      %1321 = vst [vmem:[%s175 + $0x3c] sm:$0xf] %v1193
      %1322 = vst [vmem:[%s175 + $0x40] sm:$0xf] %v1194
      %1323 = vst [vmem:[%s175 + $0x44] sm:$0xf] %v1195
      %1324 = vst [vmem:[%s175 + $0x48] sm:$0xf] %v1196
      %1325 = vst [vmem:[%s175 + $0x4c] sm:$0xf] %v1197
      %1326 = vst [vmem:[%s175 + $0x50] sm:$0xf] %v1198
      %1327 = vst [vmem:[%s175 + $0x54] sm:$0xf] %v1199
      %1328 = vst [vmem:[%s175 + $0x58] sm:$0xf] %v1200
      %1329 = vst [vmem:[%s175 + $0x5c] sm:$0xf] %v1201
      %1330 = vst [vmem:[%s175 + $0x60] sm:$0xf] %v1202
      %1331 = vst [vmem:[%s175 + $0x64] sm:$0xf] %v1203
      %1332 = vst [vmem:[%s175 + $0x68] sm:$0xf] %v1204
      %1333 = vst [vmem:[%s175 + $0x6c] sm:$0xf] %v1205
      %1334 = vst [vmem:[%s175 + $0x70] sm:$0xf] %v1206
      %1335 = vst [vmem:[%s175 + $0x74] sm:$0xf] %v1207
      %1336 = vst [vmem:[%s175 + $0x78] sm:$0xf] %v1208
      %1337 = vst [vmem:[%s175 + $0x7c] sm:$0xf] %v1209
      %1338 = vst [vmem:[%s175 + $0x80] sm:$0xf] %v1210
      %1339 = vst [vmem:[%s175 + $0x84] sm:$0xf] %v1211
      %1340 = vst [vmem:[%s175 + $0x88] sm:$0xf] %v1212
      %1341 = vst [vmem:[%s175 + $0x8c] sm:$0xf] %v1213
      %1342 = vst [vmem:[%s175 + $0x90] sm:$0xf] %v1214
      %1343 = vst [vmem:[%s175 + $0x94] sm:$0xf] %v1215
      %1344 = vst [vmem:[%s175 + $0x98] sm:$0xf] %v1216
      %1345 = vst [vmem:[%s175 + $0x9c] sm:$0xf] %v1217
      %1346 = vst [vmem:[%s175 + $0xa0] sm:$0xf] %v1218
      %1347 = vst [vmem:[%s175 + $0xa4] sm:$0xf] %v1219
      %1348 = vst [vmem:[%s175 + $0xa8] sm:$0xf] %v1220
      %1349 = vst [vmem:[%s175 + $0xac] sm:$0xf] %v1221
      %1350 = vst [vmem:[%s175 + $0xb0] sm:$0xf] %v1222
      %1351 = vst [vmem:[%s175 + $0xb4] sm:$0xf] %v1223
      %1352 = vst [vmem:[%s175 + $0xb8] sm:$0xf] %v1224
      %1353 = vst [vmem:[%s175 + $0xbc] sm:$0xf] %v1225
      %1354 = vst [vmem:[%s175 + $0xc0] sm:$0xf] %v1226
      %1355 = vst [vmem:[%s175 + $0xc4] sm:$0xf] %v1227
      %1356 = vst [vmem:[%s175 + $0xc8] sm:$0xf] %v1228
      %1357 = vst [vmem:[%s175 + $0xcc] sm:$0xf] %v1229
      %1358 = vst [vmem:[%s175 + $0xd0] sm:$0xf] %v1230
      %1359 = vst [vmem:[%s175 + $0xd4] sm:$0xf] %v1231
      %1360 = vst [vmem:[%s175 + $0xd8] sm:$0xf] %v1232
      %1361 = vst [vmem:[%s175 + $0xdc] sm:$0xf] %v1233
      %1362 = vst [vmem:[%s175 + $0xe0] sm:$0xf] %v1234
      %1363 = vst [vmem:[%s175 + $0xe4] sm:$0xf] %v1235
      %1364 = vst [vmem:[%s175 + $0xe8] sm:$0xf] %v1236
      %1365 = vst [vmem:[%s175 + $0xec] sm:$0xf] %v1237
      %1366 = vst [vmem:[%s175 + $0xf0] sm:$0xf] %v1238
      %1367 = vst [vmem:[%s175 + $0xf4] sm:$0xf] %v1239
      %1368 = vst [vmem:[%s175 + $0xf8] sm:$0xf] %v1240
      %1369 = vst [vmem:[%s175 + $0xfc] sm:$0xf] %v1241
      %s1370 = smul.u32 64, %s14
      %p1371 = scmp.lt.s32.totalorder %s1370, 191
      %s1372 = scalar_select %p1371, %s1370, 191
      %s1373 = smul.addr %s1372, 4
      %s1374 = scalar_lea.vmem %s3, %s1373
      // Predicated region
      $region33: #{gnn_forward.4} parent=31 // pred_check
        %p1375 = pneg %p100
      $region34: #{gnn_forward.4} parent=31 // pred_check_branch
        %1377 = sbr.rel (%p1375) target = $region36
      $region35: #{gnn_forward.4} parent=31 // pred_region
        %s1378 = smul.u32 64, %s14
      $region36: #{gnn_forward.4} parent=31 // pred_fallthru
        _
    $region32: #{gnn_forward.4} parent=5 // pred_fallthru
      _
    %p1379 = scmp.le.s32.totalorder 2, %s9
    // Predicated region
    $region37: #{gnn_forward.4} parent=5 // pred_check
      %p1380 = pneg %p1379
    $region38: #{gnn_forward.4} parent=5 // pred_check_branch
      %1382 = sbr.rel (%p1380) target = $region40
    $region39: #{gnn_forward.4} parent=5 // pred_region
      %s1383 = ssub.s32 %s9, 2
      // Predicated region
      $region41: #{gnn_forward.4} parent=39 // pred_check
        %p1384 = pneg %p106
      $region42: #{gnn_forward.4} parent=39 // pred_check_branch
        %1386 = sbr.rel (%p1384) target = $region44
      $region43: #{gnn_forward.4} parent=39 // pred_region
        %s1387 = smul.u32 64, %s15
        %p1388 = scmp.lt.s32.totalorder %s1387, 191
        %s1389 = scalar_select %p1388, %s1387, 191
        %s1390 = smul.addr %s1389, 4
        %s1391 = scalar_lea.vmem %s3, %s1390
      $region44: #{gnn_forward.4} parent=39 // pred_fallthru
        _
    $region40: #{gnn_forward.4} parent=5 // pred_fallthru
      _
  $region6: #{gnn_forward.4} parent=0 // loop_footer
    %s13 = sadd.s32 1, %s9
  $region7: #{gnn_forward.4} parent=0 // loop_footer_branch
    %8 = sbr.rel target = $region3
  $region8: #{gnn_forward.4} parent=0 // loop_exit
    _

// kernel: gnn_forward.7
$region0: #{gnn_forward.7}
  #allocation0 [shape = 'u32[]', space=smem, size = 0x4, offset = 0x4, fixed_abs, tag = 'smem constant byte address 0x4 - core index']
  #allocation1 [shape = 'u32[144,128]{1,0:T(1,128)}', space=vmem, size = 0x12000, scoped, tag = 'internal scratch']
  #allocation2 [shape = 'f32[128,128]{1,0:T(8,128)}', space=vmem, size = 0x10000, scoped, tag = 'scratch operand']
  %s0 = inlined_call_operand.vmem [shape: bf16[384,1536], index: 0, kind: input, shape index: {}]
  %s1 = inlined_call_operand.vmem [shape: bf16[1536,128], index: 1, kind: input, shape index: {}]
  %s2 = inlined_call_operand.vmem [shape: f32[384,1], index: 2, kind: input, shape index: {}]
  %s3 = inlined_call_operand.vmem [shape: bf16[128,128], index: 3, kind: input, shape index: {}]
  %s4 = inlined_call_operand.vmem [shape: f32[1,128], index: 4, kind: input, shape index: {}]
  %s5 = inlined_call_operand.hbm [shape: f32[384,128], index: 5, kind: output, shape index: {}]
  %s6 = sld [smem:[#allocation0]]
  $region84: #{gnn_forward.7} parent=0
    _
  %s8 = ssub.s32 1, %s6
  %s9 = scalar_select 0, %s8, %s6
  $region1: #{gnn_forward.7} parent=0
    #allocation3 [shape = 'u8[262144]{0}', space=vmem, size = 0x40000, scoped, tag = 'input window, operand 0']
    #allocation4 [shape = 'u8[131072]{0}', space=vmem, size = 0x20000, scoped, tag = 'output window, operand 0']
    #allocation5 [shape = 's32[2]{0}', space=sflag, size = 0x8, scoped, tag = 'scoped memory for gnn_forward.7']
    %10 = vsyncpa [#allocation5], 0
    %s11 = scalar_lea.sflag [#allocation5], 1
    %12 = vsyncpa %s11, 0
    loop: start=0, step=1, limit=11
    $region2: #{gnn_forward.7} parent=1 // loop_pre_header
      _
    $region3: #{gnn_forward.7} parent=1 // loop_header
      %s14 = sphi 0, %s18
      %p15 = scmp.ge.s32.totalorder %s14, 11
      %s21 = sphi 0, %s33
      %s22 = sphi 0, %s29
      %s23 = sphi 0, %s21
      %s24 = sphi 0, %s22
      %s25 = sphi 0, %s23
      %s26 = sphi 0, %s24
      %s38 = sphi 0, %s40
      %s41 = sphi 0, %s38
      %s42 = sphi 0, %s41
      %s58 = sphi 0, %s42
      %s64 = sphi 0, %s66
      %s67 = sphi 0, %s64
      %s68 = sphi 0, %s67
      %s84 = sphi 0, %s68
      %s90 = sphi 0, %s92
      %s93 = sphi 0, %s90
      %s94 = sphi 0, %s93
      %s110 = sphi 0, %s94
      %s114 = sphi 0, %s114
      %s116 = sphi 0, %s114
      %s117 = sphi 0, %s116
      %s131 = sphi 0, %s117
      %s135 = sphi 0, %s135
      %s137 = sphi 0, %s135
      %s138 = sphi 0, %s137
      %s152 = sphi 0, %s138
      %s158 = sphi 0, %s160
      %s161 = sphi 0, %s158
      %s162 = sphi 0, %s161
      %s178 = sphi 0, %s162
    $region4: #{gnn_forward.7} parent=1 // loop_header_branch
      %17 = sbr.rel (%p15) target = $region8
    $region5: #{gnn_forward.7} parent=1 // loop_body
      %s19 = ssub.s32 %s14, 1
      %s20 = ssub.s32 %s14, 2
      %s27 = sadd.s32 1, %s22
      %p28 = scmp.ge.s32.totalorder %s27, 3
      %s29 = scalar_select %p28, 0, %s27
      %s30 = sadd.s32 1, %s21
      %s31 = scalar_select %p28, %s30, %s21
      %p32 = scmp.ge.s32.totalorder %s31, 3
      %s33 = scalar_select %p32, 0, %s31
      %s34 = ssub.s32 %s21, %s33
      %s35 = ssub.s32 %s22, %s29
      %s36 = sor.u32 %s34, %s35
      %p37 = scmp.eq.s32.totalorder %s36, 0
      %s39 = sadd.s32 %s38, 1
      %s40 = scalar_select %p37, %s38, %s39
      %p43 = pneg %p37
      %p44 = scmp.eq.s32.totalorder %s14, 8
      %p45 = por %p43, %p44
      %p46 = scmp.ne.s32.totalorder %s38, %s41
      %p47 = scmp.eq.s32.totalorder %s14, 0
      %p48 = por %p46, %p47
      %p49 = scmp.ne.s32.totalorder %s38, %s41
      %p50 = scmp.eq.s32.totalorder %s19, 8
      %p51 = por %p49, %p50
      %p52 = scmp.ne.s32.totalorder %s41, %s42
      %p53 = scmp.eq.s32.totalorder %s19, 0
      %p54 = por %p52, %p53
      %p55 = scmp.ne.s32.totalorder %s41, %s42
      %p56 = scmp.eq.s32.totalorder %s20, 8
      %p57 = por %p55, %p56
      %p59 = scmp.ne.s32.totalorder %s42, %s58
      %p60 = scmp.eq.s32.totalorder %s20, 0
      %p61 = por %p59, %p60
      %s62 = ssub.s32 %s22, %s29
      %p63 = scmp.eq.s32.totalorder %s62, 0
      %s65 = sadd.s32 %s64, 1
      %s66 = scalar_select %p63, %s64, %s65
      %p69 = pneg %p63
      %p70 = scmp.eq.s32.totalorder %s14, 8
      %p71 = por %p69, %p70
      %p72 = scmp.ne.s32.totalorder %s64, %s67
      %p73 = scmp.eq.s32.totalorder %s14, 0
      %p74 = por %p72, %p73
      %p75 = scmp.ne.s32.totalorder %s64, %s67
      %p76 = scmp.eq.s32.totalorder %s19, 8
      %p77 = por %p75, %p76
      %p78 = scmp.ne.s32.totalorder %s67, %s68
      %p79 = scmp.eq.s32.totalorder %s19, 0
      %p80 = por %p78, %p79
      %p81 = scmp.ne.s32.totalorder %s67, %s68
      %p82 = scmp.eq.s32.totalorder %s20, 8
      %p83 = por %p81, %p82
      %p85 = scmp.ne.s32.totalorder %s68, %s84
      %p86 = scmp.eq.s32.totalorder %s20, 0
      %p87 = por %p85, %p86
      %s88 = ssub.s32 %s21, %s33
      %p89 = scmp.eq.s32.totalorder %s88, 0
      %s91 = sadd.s32 %s90, 1
      %s92 = scalar_select %p89, %s90, %s91
      %p95 = pneg %p89
      %p96 = scmp.eq.s32.totalorder %s14, 8
      %p97 = por %p95, %p96
      %p98 = scmp.ne.s32.totalorder %s90, %s93
      %p99 = scmp.eq.s32.totalorder %s14, 0
      %p100 = por %p98, %p99
      %p101 = scmp.ne.s32.totalorder %s90, %s93
      %p102 = scmp.eq.s32.totalorder %s19, 8
      %p103 = por %p101, %p102
      %p104 = scmp.ne.s32.totalorder %s93, %s94
      %p105 = scmp.eq.s32.totalorder %s19, 0
      %p106 = por %p104, %p105
      %p107 = scmp.ne.s32.totalorder %s93, %s94
      %p108 = scmp.eq.s32.totalorder %s20, 8
      %p109 = por %p107, %p108
      %p111 = scmp.ne.s32.totalorder %s94, %s110
      %p112 = scmp.eq.s32.totalorder %s20, 0
      %p113 = por %p111, %p112
      %s115 = sadd.s32 %s114, 1
      %p118 = scmp.eq.s32.totalorder %s14, 8
      %p119 = scmp.ne.s32.totalorder %s114, %s116
      %p120 = scmp.eq.s32.totalorder %s14, 0
      %p121 = por %p119, %p120
      %p122 = scmp.ne.s32.totalorder %s114, %s116
      %p123 = scmp.eq.s32.totalorder %s19, 8
      %p124 = por %p122, %p123
      %p125 = scmp.ne.s32.totalorder %s116, %s117
      %p126 = scmp.eq.s32.totalorder %s19, 0
      %p127 = por %p125, %p126
      %p128 = scmp.ne.s32.totalorder %s116, %s117
      %p129 = scmp.eq.s32.totalorder %s20, 8
      %p130 = por %p128, %p129
      %p132 = scmp.ne.s32.totalorder %s117, %s131
      %p133 = scmp.eq.s32.totalorder %s20, 0
      %p134 = por %p132, %p133
      %s136 = sadd.s32 %s135, 1
      %p139 = scmp.eq.s32.totalorder %s14, 8
      %p140 = scmp.ne.s32.totalorder %s135, %s137
      %p141 = scmp.eq.s32.totalorder %s14, 0
      %p142 = por %p140, %p141
      %p143 = scmp.ne.s32.totalorder %s135, %s137
      %p144 = scmp.eq.s32.totalorder %s19, 8
      %p145 = por %p143, %p144
      %p146 = scmp.ne.s32.totalorder %s137, %s138
      %p147 = scmp.eq.s32.totalorder %s19, 0
      %p148 = por %p146, %p147
      %p149 = scmp.ne.s32.totalorder %s137, %s138
      %p150 = scmp.eq.s32.totalorder %s20, 8
      %p151 = por %p149, %p150
      %p153 = scmp.ne.s32.totalorder %s138, %s152
      %p154 = scmp.eq.s32.totalorder %s20, 0
      %p155 = por %p153, %p154
      %s156 = ssub.s32 %s21, %s33
      %p157 = scmp.eq.s32.totalorder %s156, 0
      %s159 = sadd.s32 %s158, 1
      %s160 = scalar_select %p157, %s158, %s159
      %p163 = pneg %p157
      %p164 = scmp.eq.s32.totalorder %s14, 8
      %p165 = por %p163, %p164
      %p166 = scmp.ne.s32.totalorder %s158, %s161
      %p167 = scmp.eq.s32.totalorder %s14, 0
      %p168 = por %p166, %p167
      %p169 = scmp.ne.s32.totalorder %s158, %s161
      %p170 = scmp.eq.s32.totalorder %s19, 8
      %p171 = por %p169, %p170
      %p172 = scmp.ne.s32.totalorder %s161, %s162
      %p173 = scmp.eq.s32.totalorder %s19, 0
      %p174 = por %p172, %p173
      %p175 = scmp.ne.s32.totalorder %s161, %s162
      %p176 = scmp.eq.s32.totalorder %s20, 8
      %p177 = por %p175, %p176
      %p179 = scmp.ne.s32.totalorder %s162, %s178
      %p180 = scmp.eq.s32.totalorder %s20, 0
      %p181 = por %p179, %p180
      %p182 = scmp.le.s32.totalorder 1, %s14
      %p183 = scmp.lt.s32.totalorder %s14, 10
      %p184 = pnand %p182, %p183
      %p185 = pneg %p184
      // Predicated region
      $region9: #{gnn_forward.7} parent=5 // pred_check
        _
      $region10: #{gnn_forward.7} parent=5 // pred_check_branch
        %187 = sbr.rel (%p184) target = $region12
      $region11: #{gnn_forward.7} parent=5 // pred_region
        %s188 = ssub.s32 %s14, 1
        // Predicated region
        $region13: #{gnn_forward.7} parent=11 // pred_check
          %p189 = pneg %p127
        $region14: #{gnn_forward.7} parent=11 // pred_check_branch
          %191 = sbr.rel (%p189) target = $region16
        $region15: #{gnn_forward.7} parent=11 // pred_region
          _
        $region16: #{gnn_forward.7} parent=11 // pred_fallthru
          _
        // Predicated region
        $region17: #{gnn_forward.7} parent=11 // pred_check
          %p192 = pneg %p148
        $region18: #{gnn_forward.7} parent=11 // pred_check_branch
          %194 = sbr.rel (%p192) target = $region20
        $region19: #{gnn_forward.7} parent=11 // pred_region
          _
        $region20: #{gnn_forward.7} parent=11 // pred_fallthru
          _
      $region12: #{gnn_forward.7} parent=5 // pred_fallthru
        _
      %p195 = scmp.lt.s32.totalorder %s14, 9
      // Predicated region
      $region21: #{gnn_forward.7} parent=5 // pred_check
        %p196 = pneg %p195
      $region22: #{gnn_forward.7} parent=5 // pred_check_branch
        %198 = sbr.rel (%p196) target = $region24
      $region23: #{gnn_forward.7} parent=5 // pred_region
        // Predicated region
        $region25: #{gnn_forward.7} parent=23 // pred_check
          %p199 = pneg %p48
        $region26: #{gnn_forward.7} parent=23 // pred_check_branch
          %201 = sbr.rel (%p199) target = $region28
        $region27: #{gnn_forward.7} parent=23 // pred_region
          %s202 = sand.u32 %s38, 1
          %s203 = sand.u32 %s38, 1
          %s204 = smul.addr %s203, 256
          %s205 = scalar_lea.vmem [#allocation3], %s204
          %s206 = smul.u32 16, %s21
          %s207 = smul.u32 4, %s22
          %s208 = smul.addr %s206, 12
          %s209 = sadd.s32 %s207, %s208
          %s210 = smul.addr %s209, 4
          %s211 = scalar_lea.vmem %s0, %s210
          // Predicated region
          $region29: #{gnn_forward.7} parent=27 // pred_check
            _
          $region30: #{gnn_forward.7} parent=27 // pred_check_branch
            %213 = sbr.rel (0) target = $region32
          $region31: #{gnn_forward.7} parent=27 // pred_region
            // Predicated region
            $region33: #{gnn_forward.7} parent=31 // pred_check
              _
            $region34: #{gnn_forward.7} parent=31 // pred_check_branch
              %215 = sbr.rel (0) target = $region36
            $region35: #{gnn_forward.7} parent=31 // pred_region
              loop: start=0, step=1, limit=1
              $region37: #{gnn_forward.7} parent=35 // loop_pre_header
                _
              $region38: #{gnn_forward.7} parent=35 // loop_header
                %s217 = sphi 0, %s221
                %p218 = scmp.ge.s32.totalorder %s217, 1
                %s222 = sphi %s211, %s211
                %s223 = sphi %s205, %s205
              $region39: #{gnn_forward.7} parent=35 // loop_header_branch
                %220 = sbr.rel (%p218) target = $region43
              $region40: #{gnn_forward.7} parent=35 // loop_body
                %v224 = vld [vmem:[%s222] sm:$0xff]
                %225 = vst [vmem:[%s223] sm:$0xff] %v224
                %v226 = vld [vmem:[%s222 + $0x8] sm:$0xff]
                %227 = vst [vmem:[%s223 + $0x8] sm:$0xff] %v226
                %v228 = vld [vmem:[%s222 + $0x30] sm:$0xff]
                %229 = vst [vmem:[%s223 + $0x10] sm:$0xff] %v228
                %v230 = vld [vmem:[%s222 + $0x38] sm:$0xff]
                %231 = vst [vmem:[%s223 + $0x18] sm:$0xff] %v230
                %v232 = vld [vmem:[%s222 + $0x60] sm:$0xff]
                %233 = vst [vmem:[%s223 + $0x20] sm:$0xff] %v232
                %v234 = vld [vmem:[%s222 + $0x68] sm:$0xff]
                %235 = vst [vmem:[%s223 + $0x28] sm:$0xff] %v234
                %v236 = vld [vmem:[%s222 + $0x90] sm:$0xff]
                %237 = vst [vmem:[%s223 + $0x30] sm:$0xff] %v236
                %v238 = vld [vmem:[%s222 + $0x98] sm:$0xff]
                %239 = vst [vmem:[%s223 + $0x38] sm:$0xff] %v238
                %v240 = vld [vmem:[%s222 + $0xc0] sm:$0xff]
                %241 = vst [vmem:[%s223 + $0x40] sm:$0xff] %v240
                %v242 = vld [vmem:[%s222 + $0xc8] sm:$0xff]
                %243 = vst [vmem:[%s223 + $0x48] sm:$0xff] %v242
                %v244 = vld [vmem:[%s222 + $0xf0] sm:$0xff]
                %245 = vst [vmem:[%s223 + $0x50] sm:$0xff] %v244
                %v246 = vld [vmem:[%s222 + $0xf8] sm:$0xff]
                %247 = vst [vmem:[%s223 + $0x58] sm:$0xff] %v246
                %v248 = vld [vmem:[%s222 + $0x120] sm:$0xff]
                %249 = vst [vmem:[%s223 + $0x60] sm:$0xff] %v248
                %v250 = vld [vmem:[%s222 + $0x128] sm:$0xff]
                %251 = vst [vmem:[%s223 + $0x68] sm:$0xff] %v250
                %v252 = vld [vmem:[%s222 + $0x150] sm:$0xff]
                %253 = vst [vmem:[%s223 + $0x70] sm:$0xff] %v252
                %v254 = vld [vmem:[%s222 + $0x158] sm:$0xff]
                %255 = vst [vmem:[%s223 + $0x78] sm:$0xff] %v254
                %v256 = vld [vmem:[%s222 + $0x180] sm:$0xff]
                %257 = vst [vmem:[%s223 + $0x80] sm:$0xff] %v256
                %v258 = vld [vmem:[%s222 + $0x188] sm:$0xff]
                %259 = vst [vmem:[%s223 + $0x88] sm:$0xff] %v258
                %v260 = vld [vmem:[%s222 + $0x1b0] sm:$0xff]
                %261 = vst [vmem:[%s223 + $0x90] sm:$0xff] %v260
                %v262 = vld [vmem:[%s222 + $0x1b8] sm:$0xff]
                %263 = vst [vmem:[%s223 + $0x98] sm:$0xff] %v262
                %v264 = vld [vmem:[%s222 + $0x1e0] sm:$0xff]
                %265 = vst [vmem:[%s223 + $0xa0] sm:$0xff] %v264
                %v266 = vld [vmem:[%s222 + $0x1e8] sm:$0xff]
                %267 = vst [vmem:[%s223 + $0xa8] sm:$0xff] %v266
                %v268 = vld [vmem:[%s222 + $0x210] sm:$0xff]
                %269 = vst [vmem:[%s223 + $0xb0] sm:$0xff] %v268
                %v270 = vld [vmem:[%s222 + $0x218] sm:$0xff]
                %271 = vst [vmem:[%s223 + $0xb8] sm:$0xff] %v270
                %v272 = vld [vmem:[%s222 + $0x240] sm:$0xff]
                %273 = vst [vmem:[%s223 + $0xc0] sm:$0xff] %v272
                %v274 = vld [vmem:[%s222 + $0x248] sm:$0xff]
                %275 = vst [vmem:[%s223 + $0xc8] sm:$0xff] %v274
                %v276 = vld [vmem:[%s222 + $0x270] sm:$0xff]
                %277 = vst [vmem:[%s223 + $0xd0] sm:$0xff] %v276
                %v278 = vld [vmem:[%s222 + $0x278] sm:$0xff]
                %279 = vst [vmem:[%s223 + $0xd8] sm:$0xff] %v278
                %v280 = vld [vmem:[%s222 + $0x2a0] sm:$0xff]
                %281 = vst [vmem:[%s223 + $0xe0] sm:$0xff] %v280
                %v282 = vld [vmem:[%s222 + $0x2a8] sm:$0xff]
                %283 = vst [vmem:[%s223 + $0xe8] sm:$0xff] %v282
                %v284 = vld [vmem:[%s222 + $0x2d0] sm:$0xff]
                %285 = vst [vmem:[%s223 + $0xf0] sm:$0xff] %v284
                %v286 = vld [vmem:[%s222 + $0x2d8] sm:$0xff]
                %287 = vst [vmem:[%s223 + $0xf8] sm:$0xff] %v286
              $region41: #{gnn_forward.7} parent=35 // loop_footer
                %s221 = sadd.s32 1, %s217
              $region42: #{gnn_forward.7} parent=35 // loop_footer_branch
                %216 = sbr.rel target = $region38
              $region43: #{gnn_forward.7} parent=35 // loop_exit
                _
            $region36: #{gnn_forward.7} parent=31 // pred_fallthru
              _
            // Predicated region
            $region44: #{gnn_forward.7} parent=31 // pred_check
              _
            $region45: #{gnn_forward.7} parent=31 // pred_check_branch
              %289 = sbr.rel target = $region47
            $region46: #{gnn_forward.7} parent=31 // pred_region
              _
            $region47: #{gnn_forward.7} parent=31 // pred_fallthru
              _
          $region32: #{gnn_forward.7} parent=27 // pred_fallthru
            _
          %290 = vnop
        $region28: #{gnn_forward.7} parent=23 // pred_fallthru
          _
        // Predicated region
        $region48: #{gnn_forward.7} parent=23 // pred_check
          %p291 = pneg %p74
        $region49: #{gnn_forward.7} parent=23 // pred_check_branch
          %293 = sbr.rel (%p291) target = $region51
        $region50: #{gnn_forward.7} parent=23 // pred_region
          %s294 = smul.u32 64, %s22
          %p295 = scmp.lt.s32.totalorder %s294, 191
          %s296 = scalar_select %p295, %s294, 191
          %s297 = smul.addr %s296, 4
          %s298 = scalar_lea.vmem %s1, %s297
          %s299 = smul.u32 64, %s22
        $region51: #{gnn_forward.7} parent=23 // pred_fallthru
          _
        // Predicated region
        $region52: #{gnn_forward.7} parent=23 // pred_check
          %p300 = pneg %p100
        $region53: #{gnn_forward.7} parent=23 // pred_check_branch
          %302 = sbr.rel (%p300) target = $region55
        $region54: #{gnn_forward.7} parent=23 // pred_region
          %s303 = smul.u32 16, %s21
          %p304 = scmp.lt.s32.totalorder %s303, 47
          %s305 = scalar_select %p304, %s303, 47
          %s306 = smul.addr %s305, 8
          %s307 = scalar_lea.vmem %s2, %s306
          %s308 = smul.u32 16, %s21
        $region55: #{gnn_forward.7} parent=23 // pred_fallthru
          _
      $region24: #{gnn_forward.7} parent=5 // pred_fallthru
        _
      %p309 = scmp.le.s32.totalorder 1, %s14
      %p310 = scmp.lt.s32.totalorder %s14, 10
      %p311 = pnand %p309, %p310
      %p312 = pneg %p311
      // Predicated region
      $region56: #{gnn_forward.7} parent=5 // pred_check
        _
      $region57: #{gnn_forward.7} parent=5 // pred_check_branch
        %314 = sbr.rel (%p311) target = $region59
      $region58: #{gnn_forward.7} parent=5 // pred_region
        %s315 = ssub.s32 %s14, 1
        %s316 = sand.u32 %s41, 1
        %s317 = sand.u32 %s41, 1
        %s318 = smul.addr %s317, 256
        %s319 = scalar_lea.vmem [#allocation3], %s318
        // Predicated region
        $region60: #{gnn_forward.7} parent=58 // pred_check
          %p320 = pneg %p54
        $region61: #{gnn_forward.7} parent=58 // pred_check_branch
          %322 = sbr.rel (%p320) target = $region63
        $region62: #{gnn_forward.7} parent=58 // pred_region
          _
        $region63: #{gnn_forward.7} parent=58 // pred_fallthru
          _
        %s323 = sand.u32 %s41, 1
        %s324 = sand.u32 %s41, 1
        %s325 = smul.addr %s324, 256
        %s326 = scalar_lea.vmem [#allocation3], %s325
        %p327 = pneg %p54
        %p328 = pneg %p51
        %s329 = smul.u32 64, %s24
        %p330 = scmp.lt.s32.totalorder %s329, 191
        %s331 = scalar_select %p330, %s329, 191
        %s332 = smul.addr %s331, 4
        %s333 = scalar_lea.vmem %s1, %s332
        %p334 = pneg %p80
        %p335 = pneg %p77
        %s336 = smul.u32 16, %s23
        %p337 = scmp.lt.s32.totalorder %s336, 47
        %s338 = scalar_select %p337, %s336, 47
        %s339 = smul.addr %s338, 8
        %s340 = scalar_lea.vmem %s2, %s339
        %p341 = pneg %p106
        %p342 = pneg %p103
        %p343 = pneg %p127
        %p344 = pneg %p124
        %p345 = pneg %p148
        %p346 = pneg %p145
        %p347 = pneg %p174
        %p348 = pneg %p171
        %s349 = sand.u32 %s161, 1
        %s350 = scalar_lea.sflag [#allocation5], %s349
        %s351 = sand.u32 %s161, 1
        %s352 = smul.addr %s351, 128
        %s353 = scalar_lea.vmem [#allocation4], %s352
        %s354 = smul.u32 16, %s23
        %s355 = smul.u32 4, %s24
        %s356 = smul.u32 64, %s24
        %p357 = scmp.lt.s32.totalorder %s356, 191
        %s358 = scalar_select %p357, %s356, 191
        %s359 = smul.addr %s358, 4
        %s360 = scalar_lea.vmem %s1, %s359
        %s361 = smul.u32 64, %s24
        %s362 = smul.u32 16, %s23
        %p363 = scmp.lt.s32.totalorder %s362, 47
        %s364 = scalar_select %p363, %s362, 47
        %s365 = smul.addr %s364, 8
        %s366 = scalar_lea.vmem %s2, %s365
        %s367 = smul.u32 16, %s23
        %s368 = smul.u32 16, %s23
        %p370 = scmp.eq.s32.totalorder %s24, 0
        // Predicated region
        $region64: #{gnn_forward.7} parent=58 // pred_check
          %p371 = pneg %p370
        $region65: #{gnn_forward.7} parent=58 // pred_check_branch
          %373 = sbr.rel (%p371) target = $region67
        $region66: #{gnn_forward.7} parent=58 // pred_region
          %374 = vst [vmem:[#allocation2] sm:$0xff] 0.0
          %375 = vst [vmem:[#allocation2 + $0x8] sm:$0xff] 0.0
          %376 = vst [vmem:[#allocation2 + $0x10] sm:$0xff] 0.0
          %377 = vst [vmem:[#allocation2 + $0x18] sm:$0xff] 0.0
          %378 = vst [vmem:[#allocation2 + $0x20] sm:$0xff] 0.0
          %379 = vst [vmem:[#allocation2 + $0x28] sm:$0xff] 0.0
          %380 = vst [vmem:[#allocation2 + $0x30] sm:$0xff] 0.0
          %381 = vst [vmem:[#allocation2 + $0x38] sm:$0xff] 0.0
          %382 = vst [vmem:[#allocation2 + $0x40] sm:$0xff] 0.0
          %383 = vst [vmem:[#allocation2 + $0x48] sm:$0xff] 0.0
          %384 = vst [vmem:[#allocation2 + $0x50] sm:$0xff] 0.0
          %385 = vst [vmem:[#allocation2 + $0x58] sm:$0xff] 0.0
          %386 = vst [vmem:[#allocation2 + $0x60] sm:$0xff] 0.0
          %387 = vst [vmem:[#allocation2 + $0x68] sm:$0xff] 0.0
          %388 = vst [vmem:[#allocation2 + $0x70] sm:$0xff] 0.0
          %389 = vst [vmem:[#allocation2 + $0x78] sm:$0xff] 0.0
        $region67: #{gnn_forward.7} parent=58 // pred_fallthru
          _
        %v390 = vld [vmem:[#allocation2] sm:$0xff]
        %v391 = vld [vmem:[#allocation2 + $0x8] sm:$0xff]
        %v392 = vld [vmem:[#allocation2 + $0x10] sm:$0xff]
        %v393 = vld [vmem:[#allocation2 + $0x18] sm:$0xff]
        %v394 = vld [vmem:[#allocation2 + $0x20] sm:$0xff]
        %v395 = vld [vmem:[#allocation2 + $0x28] sm:$0xff]
        %v396 = vld [vmem:[#allocation2 + $0x30] sm:$0xff]
        %v397 = vld [vmem:[#allocation2 + $0x38] sm:$0xff]
        %v398 = vld [vmem:[#allocation2 + $0x40] sm:$0xff]
        %v399 = vld [vmem:[#allocation2 + $0x48] sm:$0xff]
        %v400 = vld [vmem:[#allocation2 + $0x50] sm:$0xff]
        %v401 = vld [vmem:[#allocation2 + $0x58] sm:$0xff]
        %v402 = vld [vmem:[#allocation2 + $0x60] sm:$0xff]
        %v403 = vld [vmem:[#allocation2 + $0x68] sm:$0xff]
        %v404 = vld [vmem:[#allocation2 + $0x70] sm:$0xff]
        %v405 = vld [vmem:[#allocation2 + $0x78] sm:$0xff]
        %v406 = vld [vmem:[%s319] sm:$0xff]
        %v407 = vld [vmem:[%s319 + $0x8] sm:$0xff]
        %v408 = vld [vmem:[%s319 + $0x10] sm:$0xff]
        %v409 = vld [vmem:[%s319 + $0x18] sm:$0xff]
        %v410 = vld [vmem:[%s319 + $0x20] sm:$0xff]
        %v411 = vld [vmem:[%s319 + $0x28] sm:$0xff]
        %v412 = vld [vmem:[%s319 + $0x30] sm:$0xff]
        %v413 = vld [vmem:[%s319 + $0x38] sm:$0xff]
        %v414 = vld [vmem:[%s319 + $0x40] sm:$0xff]
        %v415 = vld [vmem:[%s319 + $0x48] sm:$0xff]
        %v416 = vld [vmem:[%s319 + $0x50] sm:$0xff]
        %v417 = vld [vmem:[%s319 + $0x58] sm:$0xff]
        %v418 = vld [vmem:[%s319 + $0x60] sm:$0xff]
        %v419 = vld [vmem:[%s319 + $0x68] sm:$0xff]
        %v420 = vld [vmem:[%s319 + $0x70] sm:$0xff]
        %v421 = vld [vmem:[%s319 + $0x78] sm:$0xff]
        %v422 = vld [vmem:[%s319 + $0x80] sm:$0xff]
        %v423 = vld [vmem:[%s319 + $0x88] sm:$0xff]
        %v424 = vld [vmem:[%s319 + $0x90] sm:$0xff]
        %v425 = vld [vmem:[%s319 + $0x98] sm:$0xff]
        %v426 = vld [vmem:[%s319 + $0xa0] sm:$0xff]
        %v427 = vld [vmem:[%s319 + $0xa8] sm:$0xff]
        %v428 = vld [vmem:[%s319 + $0xb0] sm:$0xff]
        %v429 = vld [vmem:[%s319 + $0xb8] sm:$0xff]
        %v430 = vld [vmem:[%s319 + $0xc0] sm:$0xff]
        %v431 = vld [vmem:[%s319 + $0xc8] sm:$0xff]
        %v432 = vld [vmem:[%s319 + $0xd0] sm:$0xff]
        %v433 = vld [vmem:[%s319 + $0xd8] sm:$0xff]
        %v434 = vld [vmem:[%s319 + $0xe0] sm:$0xff]
        %v435 = vld [vmem:[%s319 + $0xe8] sm:$0xff]
        %v436 = vld [vmem:[%s319 + $0xf0] sm:$0xff]
        %v437 = vld [vmem:[%s319 + $0xf8] sm:$0xff]
        %v438 = vld [vmem:[%s360] sm:$0xf]
        %v439 = vld [vmem:[%s360 + $0x4] sm:$0xf]
        %v440 = vld [vmem:[%s360 + $0x8] sm:$0xf]
        %v441 = vld [vmem:[%s360 + $0xc] sm:$0xf]
        %v442 = vld [vmem:[%s360 + $0x10] sm:$0xf]
        %v443 = vld [vmem:[%s360 + $0x14] sm:$0xf]
        %v444 = vld [vmem:[%s360 + $0x18] sm:$0xf]
        %v445 = vld [vmem:[%s360 + $0x1c] sm:$0xf]
        %v446 = vld [vmem:[%s360 + $0x20] sm:$0xf]
        %v447 = vld [vmem:[%s360 + $0x24] sm:$0xf]
        %v448 = vld [vmem:[%s360 + $0x28] sm:$0xf]
        %v449 = vld [vmem:[%s360 + $0x2c] sm:$0xf]
        %v450 = vld [vmem:[%s360 + $0x30] sm:$0xf]
        %v451 = vld [vmem:[%s360 + $0x34] sm:$0xf]
        %v452 = vld [vmem:[%s360 + $0x38] sm:$0xf]
        %v453 = vld [vmem:[%s360 + $0x3c] sm:$0xf]
        %v454 = vld [vmem:[%s360 + $0x40] sm:$0xf]
        %v455 = vld [vmem:[%s360 + $0x44] sm:$0xf]
        %v456 = vld [vmem:[%s360 + $0x48] sm:$0xf]
        %v457 = vld [vmem:[%s360 + $0x4c] sm:$0xf]
        %v458 = vld [vmem:[%s360 + $0x50] sm:$0xf]
        %v459 = vld [vmem:[%s360 + $0x54] sm:$0xf]
        %v460 = vld [vmem:[%s360 + $0x58] sm:$0xf]
        %v461 = vld [vmem:[%s360 + $0x5c] sm:$0xf]
        %v462 = vld [vmem:[%s360 + $0x60] sm:$0xf]
        %v463 = vld [vmem:[%s360 + $0x64] sm:$0xf]
        %v464 = vld [vmem:[%s360 + $0x68] sm:$0xf]
        %v465 = vld [vmem:[%s360 + $0x6c] sm:$0xf]
        %v466 = vld [vmem:[%s360 + $0x70] sm:$0xf]
        %v467 = vld [vmem:[%s360 + $0x74] sm:$0xf]
        %v468 = vld [vmem:[%s360 + $0x78] sm:$0xf]
        %v469 = vld [vmem:[%s360 + $0x7c] sm:$0xf]
        %v470 = vld [vmem:[%s360 + $0x80] sm:$0xf]
        %v471 = vld [vmem:[%s360 + $0x84] sm:$0xf]
        %v472 = vld [vmem:[%s360 + $0x88] sm:$0xf]
        %v473 = vld [vmem:[%s360 + $0x8c] sm:$0xf]
        %v474 = vld [vmem:[%s360 + $0x90] sm:$0xf]
        %v475 = vld [vmem:[%s360 + $0x94] sm:$0xf]
        %v476 = vld [vmem:[%s360 + $0x98] sm:$0xf]
        %v477 = vld [vmem:[%s360 + $0x9c] sm:$0xf]
        %v478 = vld [vmem:[%s360 + $0xa0] sm:$0xf]
        %v479 = vld [vmem:[%s360 + $0xa4] sm:$0xf]
        %v480 = vld [vmem:[%s360 + $0xa8] sm:$0xf]
        %v481 = vld [vmem:[%s360 + $0xac] sm:$0xf]
        %v482 = vld [vmem:[%s360 + $0xb0] sm:$0xf]
        %v483 = vld [vmem:[%s360 + $0xb4] sm:$0xf]
        %v484 = vld [vmem:[%s360 + $0xb8] sm:$0xf]
        %v485 = vld [vmem:[%s360 + $0xbc] sm:$0xf]
        %v486 = vld [vmem:[%s360 + $0xc0] sm:$0xf]
        %v487 = vld [vmem:[%s360 + $0xc4] sm:$0xf]
        %v488 = vld [vmem:[%s360 + $0xc8] sm:$0xf]
        %v489 = vld [vmem:[%s360 + $0xcc] sm:$0xf]
        %v490 = vld [vmem:[%s360 + $0xd0] sm:$0xf]
        %v491 = vld [vmem:[%s360 + $0xd4] sm:$0xf]
        %v492 = vld [vmem:[%s360 + $0xd8] sm:$0xf]
        %v493 = vld [vmem:[%s360 + $0xdc] sm:$0xf]
        %v494 = vld [vmem:[%s360 + $0xe0] sm:$0xf]
        %v495 = vld [vmem:[%s360 + $0xe4] sm:$0xf]
        %v496 = vld [vmem:[%s360 + $0xe8] sm:$0xf]
        %v497 = vld [vmem:[%s360 + $0xec] sm:$0xf]
        %v498 = vld [vmem:[%s360 + $0xf0] sm:$0xf]
        %v499 = vld [vmem:[%s360 + $0xf4] sm:$0xf]
        %v500 = vld [vmem:[%s360 + $0xf8] sm:$0xf]
        %v501 = vld [vmem:[%s360 + $0xfc] sm:$0xf]
        %v534 = vunpack.c.l.b16 %v406
        %v535 = vunpack.c.h.b16 %v406
        %v536 = vunpack.c.l.b16 %v407
        %v537 = vunpack.c.h.b16 %v407
        %v538 = vunpack.c.l.b16 %v408
        %v539 = vunpack.c.h.b16 %v408
        %v540 = vunpack.c.l.b16 %v409
        %v541 = vunpack.c.h.b16 %v409
        %v542 = vunpack.c.l.b16 %v410
        %v543 = vunpack.c.h.b16 %v410
        %v544 = vunpack.c.l.b16 %v411
        %v545 = vunpack.c.h.b16 %v411
        %v546 = vunpack.c.l.b16 %v412
        %v547 = vunpack.c.h.b16 %v412
        %v548 = vunpack.c.l.b16 %v413
        %v549 = vunpack.c.h.b16 %v413
        %v550 = vunpack.c.l.b16 %v414
        %v551 = vunpack.c.h.b16 %v414
        %v552 = vunpack.c.l.b16 %v415
        %v553 = vunpack.c.h.b16 %v415
        %v554 = vunpack.c.l.b16 %v416
        %v555 = vunpack.c.h.b16 %v416
        %v556 = vunpack.c.l.b16 %v417
        %v557 = vunpack.c.h.b16 %v417
        %v558 = vunpack.c.l.b16 %v418
        %v559 = vunpack.c.h.b16 %v418
        %v560 = vunpack.c.l.b16 %v419
        %v561 = vunpack.c.h.b16 %v419
        %v562 = vunpack.c.l.b16 %v420
        %v563 = vunpack.c.h.b16 %v420
        %v564 = vunpack.c.l.b16 %v421
        %v565 = vunpack.c.h.b16 %v421
        %v566 = vunpack.c.l.b16 %v422
        %v567 = vunpack.c.h.b16 %v422
        %v568 = vunpack.c.l.b16 %v423
        %v569 = vunpack.c.h.b16 %v423
        %v570 = vunpack.c.l.b16 %v424
        %v571 = vunpack.c.h.b16 %v424
        %v572 = vunpack.c.l.b16 %v425
        %v573 = vunpack.c.h.b16 %v425
        %v574 = vunpack.c.l.b16 %v426
        %v575 = vunpack.c.h.b16 %v426
        %v576 = vunpack.c.l.b16 %v427
        %v577 = vunpack.c.h.b16 %v427
        %v578 = vunpack.c.l.b16 %v428
        %v579 = vunpack.c.h.b16 %v428
        %v580 = vunpack.c.l.b16 %v429
        %v581 = vunpack.c.h.b16 %v429
        %v582 = vunpack.c.l.b16 %v430
        %v583 = vunpack.c.h.b16 %v430
        %v584 = vunpack.c.l.b16 %v431
        %v585 = vunpack.c.h.b16 %v431
        %v586 = vunpack.c.l.b16 %v432
        %v587 = vunpack.c.h.b16 %v432
        %v588 = vunpack.c.l.b16 %v433
        %v589 = vunpack.c.h.b16 %v433
        %v590 = vunpack.c.l.b16 %v434
        %v591 = vunpack.c.h.b16 %v434
        %v592 = vunpack.c.l.b16 %v435
        %v593 = vunpack.c.h.b16 %v435
        %v594 = vunpack.c.l.b16 %v436
        %v595 = vunpack.c.h.b16 %v436
        %v596 = vunpack.c.l.b16 %v437
        %v597 = vunpack.c.h.b16 %v437
        %v598 = vpack.c.b16 %v538, %v534
        %v599 = vpack.c.b16 %v539, %v535
        %v600 = vpack.c.b16 %v540, %v536
        %v601 = vpack.c.b16 %v541, %v537
        %v602 = vpack.c.b16 %v546, %v542
        %v603 = vpack.c.b16 %v547, %v543
        %v604 = vpack.c.b16 %v548, %v544
        %v605 = vpack.c.b16 %v549, %v545
        %v606 = vpack.c.b16 %v554, %v550
        %v607 = vpack.c.b16 %v555, %v551
        %v608 = vpack.c.b16 %v556, %v552
        %v609 = vpack.c.b16 %v557, %v553
        %v610 = vpack.c.b16 %v562, %v558
        %v611 = vpack.c.b16 %v563, %v559
        %v612 = vpack.c.b16 %v564, %v560
        %v613 = vpack.c.b16 %v565, %v561
        %v614 = vpack.c.b16 %v570, %v566
        %v615 = vpack.c.b16 %v571, %v567
        %v616 = vpack.c.b16 %v572, %v568
        %v617 = vpack.c.b16 %v573, %v569
        %v618 = vpack.c.b16 %v578, %v574
        %v619 = vpack.c.b16 %v579, %v575
        %v620 = vpack.c.b16 %v580, %v576
        %v621 = vpack.c.b16 %v581, %v577
        %v622 = vpack.c.b16 %v586, %v582
        %v623 = vpack.c.b16 %v587, %v583
        %v624 = vpack.c.b16 %v588, %v584
        %v625 = vpack.c.b16 %v589, %v585
        %v626 = vpack.c.b16 %v594, %v590
        %v627 = vpack.c.b16 %v595, %v591
        %v628 = vpack.c.b16 %v596, %v592
        %v629 = vpack.c.b16 %v597, %v593
        %v726 = vunpack.c.l.b16 %v438
        %v727 = vunpack.c.l.b16 %v439
        %v728 = vunpack.c.l.b16 %v440
        %v729 = vunpack.c.l.b16 %v441
        %v730 = vunpack.c.l.b16 %v442
        %v731 = vunpack.c.l.b16 %v443
        %v732 = vunpack.c.l.b16 %v444
        %v733 = vunpack.c.l.b16 %v445
        %v734 = vunpack.c.l.b16 %v446
        %v735 = vunpack.c.l.b16 %v447
        %v736 = vunpack.c.l.b16 %v448
        %v737 = vunpack.c.l.b16 %v449
        %v738 = vunpack.c.l.b16 %v450
        %v739 = vunpack.c.l.b16 %v451
        %v740 = vunpack.c.l.b16 %v452
        %v741 = vunpack.c.l.b16 %v453
        %v742 = vunpack.c.l.b16 %v454
        %v743 = vunpack.c.l.b16 %v455
        %v744 = vunpack.c.l.b16 %v456
        %v745 = vunpack.c.l.b16 %v457
        %v746 = vunpack.c.l.b16 %v458
        %v747 = vunpack.c.l.b16 %v459
        %v748 = vunpack.c.l.b16 %v460
        %v749 = vunpack.c.l.b16 %v461
        %v750 = vunpack.c.l.b16 %v462
        %v751 = vunpack.c.l.b16 %v463
        %v752 = vunpack.c.l.b16 %v464
        %v753 = vunpack.c.l.b16 %v465
        %v754 = vunpack.c.l.b16 %v466
        %v755 = vunpack.c.l.b16 %v467
        %v756 = vunpack.c.l.b16 %v468
        %v757 = vunpack.c.l.b16 %v469
        %v758 = vunpack.c.l.b16 %v470
        %v759 = vunpack.c.l.b16 %v471
        %v760 = vunpack.c.l.b16 %v472
        %v761 = vunpack.c.l.b16 %v473
        %v762 = vunpack.c.l.b16 %v474
        %v763 = vunpack.c.l.b16 %v475
        %v764 = vunpack.c.l.b16 %v476
        %v765 = vunpack.c.l.b16 %v477
        %v766 = vunpack.c.l.b16 %v478
        %v767 = vunpack.c.l.b16 %v479
        %v768 = vunpack.c.l.b16 %v480
        %v769 = vunpack.c.l.b16 %v481
        %v770 = vunpack.c.l.b16 %v482
        %v771 = vunpack.c.l.b16 %v483
        %v772 = vunpack.c.l.b16 %v484
        %v773 = vunpack.c.l.b16 %v485
        %v774 = vunpack.c.l.b16 %v486
        %v775 = vunpack.c.l.b16 %v487
        %v776 = vunpack.c.l.b16 %v488
        %v777 = vunpack.c.l.b16 %v489
        %v778 = vunpack.c.l.b16 %v490
        %v779 = vunpack.c.l.b16 %v491
        %v780 = vunpack.c.l.b16 %v492
        %v781 = vunpack.c.l.b16 %v493
        %v782 = vunpack.c.l.b16 %v494
        %v783 = vunpack.c.l.b16 %v495
        %v784 = vunpack.c.l.b16 %v496
        %v785 = vunpack.c.l.b16 %v497
        %v786 = vunpack.c.l.b16 %v498
        %v787 = vunpack.c.l.b16 %v499
        %v788 = vunpack.c.l.b16 %v500
        %v789 = vunpack.c.l.b16 %v501
        %v790 = vpack.c.b16 %v727, %v726
        %v791 = vpack.c.b16 %v729, %v728
        %v792 = vpack.c.b16 %v731, %v730
        %v793 = vpack.c.b16 %v733, %v732
        %v794 = vpack.c.b16 %v735, %v734
        %v795 = vpack.c.b16 %v737, %v736
        %v796 = vpack.c.b16 %v739, %v738
        %v797 = vpack.c.b16 %v741, %v740
        %v798 = vpack.c.b16 %v743, %v742
        %v799 = vpack.c.b16 %v745, %v744
        %v800 = vpack.c.b16 %v747, %v746
        %v801 = vpack.c.b16 %v749, %v748
        %v802 = vpack.c.b16 %v751, %v750
        %v803 = vpack.c.b16 %v753, %v752
        %v804 = vpack.c.b16 %v755, %v754
        %v805 = vpack.c.b16 %v757, %v756
        %v806 = vpack.c.b16 %v759, %v758
        %v807 = vpack.c.b16 %v761, %v760
        %v808 = vpack.c.b16 %v763, %v762
        %v809 = vpack.c.b16 %v765, %v764
        %v810 = vpack.c.b16 %v767, %v766
        %v811 = vpack.c.b16 %v769, %v768
        %v812 = vpack.c.b16 %v771, %v770
        %v813 = vpack.c.b16 %v773, %v772
        %v814 = vpack.c.b16 %v775, %v774
        %v815 = vpack.c.b16 %v777, %v776
        %v816 = vpack.c.b16 %v779, %v778
        %v817 = vpack.c.b16 %v781, %v780
        %v818 = vpack.c.b16 %v783, %v782
        %v819 = vpack.c.b16 %v785, %v784
        %v820 = vpack.c.b16 %v787, %v786
        %v821 = vpack.c.b16 %v789, %v788
        %854 = vmatprep.subr.bf16.mxu0 0
        %855 = vmatpush1.bf16.msra.mxu0 %v797
        %856 = vmatprep.subr.bf16.mxu0 0
        %857 = vmatpush1.bf16.msra.mxu0 %v796
        %858 = vmatprep.subr.bf16.mxu0 0
        %859 = vmatpush1.bf16.msra.mxu0 %v795
        %860 = vmatprep.subr.bf16.mxu0 0
        %861 = vmatpush1.bf16.msra.mxu0 %v794
        %862 = vmatprep.subr.bf16.mxu0 0
        %863 = vmatpush1.bf16.msra.mxu0 %v793
        %864 = vmatprep.subr.bf16.mxu0 0
        %865 = vmatpush1.bf16.msra.mxu0 %v792
        %866 = vmatprep.subr.bf16.mxu0 0
        %867 = vmatpush1.bf16.msra.mxu0 %v791
        %868 = vmatprep.subr.bf16.mxu0 0
        %869 = vmatpush1.bf16.msra.mxu0 %v790
        %870 = vmatprep.subr.bf16.mxu0 0
        %871 = vmatpush2.bf16.msra.mxu0 %v805
        %872 = vmatprep.subr.bf16.mxu0 0
        %873 = vmatpush2.bf16.msra.mxu0 %v804
        %874 = vmatprep.subr.bf16.mxu0 0
        %875 = vmatpush2.bf16.msra.mxu0 %v803
        %876 = vmatprep.subr.bf16.mxu0 0
        %877 = vmatpush2.bf16.msra.mxu0 %v802
        %878 = vmatprep.subr.bf16.mxu0 0
        %879 = vmatpush2.bf16.msra.mxu0 %v801
        %880 = vmatprep.subr.bf16.mxu0 0
        %881 = vmatpush2.bf16.msra.mxu0 %v800
        %882 = vmatprep.subr.bf16.mxu0 0
        %883 = vmatpush2.bf16.msra.mxu0 %v799
        %884 = vmatprep.subr.bf16.mxu0 0
        %885 = vmatpush2.bf16.msra.mxu0 %v798
        %886 = vmatprep.mubr.bf16.mxu0 %v599
        %887 = vmatmul.mubr.bf16.gmra.mxu0 %v598
        %v888 = vpop.f32.mrf.mxu0
        %v889 = vadd.f32 0.0, %v888
        %v890 = vpop.f32.mrf.mxu0
        %v891 = vpop.f32.mrf.mxu0
        %v892 = vadd.f32 0.0, %v891
        %v893 = vpop.f32.mrf.mxu0
        %894 = vmatprep.mubr.bf16.mxu0 %v603
        %895 = vmatmul.mubr.bf16.gmra.mxu0 %v602
        %v896 = vpop.f32.mrf.mxu0
        %v897 = vadd.f32 0.0, %v896
        %v898 = vpop.f32.mrf.mxu0
        %v899 = vpop.f32.mrf.mxu0
        %v900 = vadd.f32 0.0, %v899
        %v901 = vpop.f32.mrf.mxu0
        %902 = vmatprep.mubr.bf16.mxu0 %v607
        %903 = vmatmul.mubr.bf16.gmra.mxu0 %v606
        %v904 = vpop.f32.mrf.mxu0
        %v905 = vadd.f32 0.0, %v904
        %v906 = vpop.f32.mrf.mxu0
        %v907 = vpop.f32.mrf.mxu0
        %v908 = vadd.f32 0.0, %v907
        %v909 = vpop.f32.mrf.mxu0
        %910 = vmatprep.mubr.bf16.mxu0 %v611
        %911 = vmatmul.mubr.bf16.gmra.mxu0 %v610
        %v912 = vpop.f32.mrf.mxu0
        %v913 = vadd.f32 0.0, %v912
        %v914 = vpop.f32.mrf.mxu0
        %v915 = vpop.f32.mrf.mxu0
        %v916 = vadd.f32 0.0, %v915
        %v917 = vpop.f32.mrf.mxu0
        %918 = vmatprep.mubr.bf16.mxu0 %v615
        %919 = vmatmul.mubr.bf16.gmra.mxu0 %v614
        %v920 = vpop.f32.mrf.mxu0
        %v921 = vadd.f32 0.0, %v920
        %v922 = vpop.f32.mrf.mxu0
        %v923 = vpop.f32.mrf.mxu0
        %v924 = vadd.f32 0.0, %v923
        %v925 = vpop.f32.mrf.mxu0
        %926 = vmatprep.mubr.bf16.mxu0 %v619
        %927 = vmatmul.mubr.bf16.gmra.mxu0 %v618
        %v928 = vpop.f32.mrf.mxu0
        %v929 = vadd.f32 0.0, %v928
        %v930 = vpop.f32.mrf.mxu0
        %v931 = vpop.f32.mrf.mxu0
        %v932 = vadd.f32 0.0, %v931
        %v933 = vpop.f32.mrf.mxu0
        %934 = vmatprep.mubr.bf16.mxu0 %v623
        %935 = vmatmul.mubr.bf16.gmra.mxu0 %v622
        %v936 = vpop.f32.mrf.mxu0
        %v937 = vadd.f32 0.0, %v936
        %v938 = vpop.f32.mrf.mxu0
        %v939 = vpop.f32.mrf.mxu0
        %v940 = vadd.f32 0.0, %v939
        %v941 = vpop.f32.mrf.mxu0
        %942 = vmatprep.mubr.bf16.mxu0 %v627
        %943 = vmatmul.mubr.bf16.gmra.mxu0 %v626
        %v944 = vpop.f32.mrf.mxu0
        %v945 = vadd.f32 0.0, %v944
        %v946 = vpop.f32.mrf.mxu0
        %v947 = vpop.f32.mrf.mxu0
        %v948 = vadd.f32 0.0, %v947
        %v949 = vpop.f32.mrf.mxu0
        %950 = vdwg.mxu0
        %951 = vmatprep.subr.bf16.mxu0 0
        %952 = vmatpush1.bf16.msra.mxu0 %v813
        %953 = vmatprep.subr.bf16.mxu0 0
        %954 = vmatpush1.bf16.msra.mxu0 %v812
        %955 = vmatprep.subr.bf16.mxu0 0
        %956 = vmatpush1.bf16.msra.mxu0 %v811
        %957 = vmatprep.subr.bf16.mxu0 0
        %958 = vmatpush1.bf16.msra.mxu0 %v810
        %959 = vmatprep.subr.bf16.mxu0 0
        %960 = vmatpush1.bf16.msra.mxu0 %v809
        %961 = vmatprep.subr.bf16.mxu0 0
        %962 = vmatpush1.bf16.msra.mxu0 %v808
        %963 = vmatprep.subr.bf16.mxu0 0
        %964 = vmatpush1.bf16.msra.mxu0 %v807
        %965 = vmatprep.subr.bf16.mxu0 0
        %966 = vmatpush1.bf16.msra.mxu0 %v806
        %967 = vmatprep.subr.bf16.mxu0 0
        %968 = vmatpush2.bf16.msra.mxu0 %v821
        %969 = vmatprep.subr.bf16.mxu0 0
        %970 = vmatpush2.bf16.msra.mxu0 %v820
        %971 = vmatprep.subr.bf16.mxu0 0
        %972 = vmatpush2.bf16.msra.mxu0 %v819
        %973 = vmatprep.subr.bf16.mxu0 0
        %974 = vmatpush2.bf16.msra.mxu0 %v818
        %975 = vmatprep.subr.bf16.mxu0 0
        %976 = vmatpush2.bf16.msra.mxu0 %v817
        %977 = vmatprep.subr.bf16.mxu0 0
        %978 = vmatpush2.bf16.msra.mxu0 %v816
        %979 = vmatprep.subr.bf16.mxu0 0
        %980 = vmatpush2.bf16.msra.mxu0 %v815
        %981 = vmatprep.subr.bf16.mxu0 0
        %982 = vmatpush2.bf16.msra.mxu0 %v814
        %983 = vmatprep.mubr.bf16.mxu0 %v601
        %984 = vmatmul.mubr.bf16.gmra.mxu0 %v600
        %v985 = vpop.f32.mrf.mxu0
        %v986 = vadd.f32 %v889, %v985
        %v987 = vpop.f32.mrf.mxu0
        %v988 = vpop.f32.mrf.mxu0
        %v989 = vadd.f32 %v892, %v988
        %v990 = vpop.f32.mrf.mxu0
        %991 = vmatprep.mubr.bf16.mxu0 %v605
        %992 = vmatmul.mubr.bf16.gmra.mxu0 %v604
        %v993 = vpop.f32.mrf.mxu0
        %v994 = vadd.f32 %v897, %v993
        %v995 = vpop.f32.mrf.mxu0
        %v996 = vpop.f32.mrf.mxu0
        %v997 = vadd.f32 %v900, %v996
        %v998 = vpop.f32.mrf.mxu0
        %999 = vmatprep.mubr.bf16.mxu0 %v609
        %1000 = vmatmul.mubr.bf16.gmra.mxu0 %v608
        %v1001 = vpop.f32.mrf.mxu0
        %v1002 = vadd.f32 %v905, %v1001
        %v1003 = vpop.f32.mrf.mxu0
        %v1004 = vpop.f32.mrf.mxu0
        %v1005 = vadd.f32 %v908, %v1004
        %v1006 = vpop.f32.mrf.mxu0
        %1007 = vmatprep.mubr.bf16.mxu0 %v613
        %1008 = vmatmul.mubr.bf16.gmra.mxu0 %v612
        %v1009 = vpop.f32.mrf.mxu0
        %v1010 = vadd.f32 %v913, %v1009
        %v1011 = vpop.f32.mrf.mxu0
        %v1012 = vpop.f32.mrf.mxu0
        %v1013 = vadd.f32 %v916, %v1012
        %v1014 = vpop.f32.mrf.mxu0
        %1015 = vmatprep.mubr.bf16.mxu0 %v617
        %1016 = vmatmul.mubr.bf16.gmra.mxu0 %v616
        %v1017 = vpop.f32.mrf.mxu0
        %v1018 = vadd.f32 %v921, %v1017
        %v1019 = vpop.f32.mrf.mxu0
        %v1020 = vpop.f32.mrf.mxu0
        %v1021 = vadd.f32 %v924, %v1020
        %v1022 = vpop.f32.mrf.mxu0
        %1023 = vmatprep.mubr.bf16.mxu0 %v621
        %1024 = vmatmul.mubr.bf16.gmra.mxu0 %v620
        %v1025 = vpop.f32.mrf.mxu0
        %v1026 = vadd.f32 %v929, %v1025
        %v1027 = vpop.f32.mrf.mxu0
        %v1028 = vpop.f32.mrf.mxu0
        %v1029 = vadd.f32 %v932, %v1028
        %v1030 = vpop.f32.mrf.mxu0
        %1031 = vmatprep.mubr.bf16.mxu0 %v625
        %1032 = vmatmul.mubr.bf16.gmra.mxu0 %v624
        %v1033 = vpop.f32.mrf.mxu0
        %v1034 = vadd.f32 %v937, %v1033
        %v1035 = vpop.f32.mrf.mxu0
        %v1036 = vpop.f32.mrf.mxu0
        %v1037 = vadd.f32 %v940, %v1036
        %v1038 = vpop.f32.mrf.mxu0
        %1039 = vmatprep.mubr.bf16.mxu0 %v629
        %1040 = vmatmul.mubr.bf16.gmra.mxu0 %v628
        %v1041 = vpop.f32.mrf.mxu0
        %v1042 = vadd.f32 %v945, %v1041
        %v1043 = vpop.f32.mrf.mxu0
        %v1044 = vpop.f32.mrf.mxu0
        %v1045 = vadd.f32 %v948, %v1044
        %v1046 = vpop.f32.mrf.mxu0
        %1047 = vdwg.mxu0
        %v1048 = vadd.f32 %v390, %v986
        %v1049 = vadd.f32 %v391, %v989
        %v1050 = vadd.f32 %v392, %v994
        %v1051 = vadd.f32 %v393, %v997
        %v1052 = vadd.f32 %v394, %v1002
        %v1053 = vadd.f32 %v395, %v1005
        %v1054 = vadd.f32 %v396, %v1010
        %v1055 = vadd.f32 %v397, %v1013
        %v1056 = vadd.f32 %v398, %v1018
        %v1057 = vadd.f32 %v399, %v1021
        %v1058 = vadd.f32 %v400, %v1026
        %v1059 = vadd.f32 %v401, %v1029
        %v1060 = vadd.f32 %v402, %v1034
        %v1061 = vadd.f32 %v403, %v1037
        %v1062 = vadd.f32 %v404, %v1042
        %v1063 = vadd.f32 %v405, %v1045
        %1064 = vst [vmem:[#allocation2] sm:$0xff] %v1048
        %1065 = vst [vmem:[#allocation2 + $0x8] sm:$0xff] %v1049
        %1066 = vst [vmem:[#allocation2 + $0x10] sm:$0xff] %v1050
        %1067 = vst [vmem:[#allocation2 + $0x18] sm:$0xff] %v1051
        %1068 = vst [vmem:[#allocation2 + $0x20] sm:$0xff] %v1052
        %1069 = vst [vmem:[#allocation2 + $0x28] sm:$0xff] %v1053
        %1070 = vst [vmem:[#allocation2 + $0x30] sm:$0xff] %v1054
        %1071 = vst [vmem:[#allocation2 + $0x38] sm:$0xff] %v1055
        %1072 = vst [vmem:[#allocation2 + $0x40] sm:$0xff] %v1056
        %1073 = vst [vmem:[#allocation2 + $0x48] sm:$0xff] %v1057
        %1074 = vst [vmem:[#allocation2 + $0x50] sm:$0xff] %v1058
        %1075 = vst [vmem:[#allocation2 + $0x58] sm:$0xff] %v1059
        %1076 = vst [vmem:[#allocation2 + $0x60] sm:$0xff] %v1060
        %1077 = vst [vmem:[#allocation2 + $0x68] sm:$0xff] %v1061
        %1078 = vst [vmem:[#allocation2 + $0x70] sm:$0xff] %v1062
        %1079 = vst [vmem:[#allocation2 + $0x78] sm:$0xff] %v1063
        %p1080 = scmp.eq.s32.totalorder %s24, 2
        // Predicated region
        $region68: #{gnn_forward.7} parent=58 // pred_check
          %p1081 = pneg %p1080
        $region69: #{gnn_forward.7} parent=58 // pred_check_branch
          %1083 = sbr.rel (%p1081) target = $region71
        $region70: #{gnn_forward.7} parent=58 // pred_region
          %v1084 = vld [vmem:[#allocation2] sm:$0xff]
          %v1085 = vld [vmem:[#allocation2 + $0x8] sm:$0xff]
          %v1086 = vld [vmem:[#allocation2 + $0x10] sm:$0xff]
          %v1087 = vld [vmem:[#allocation2 + $0x18] sm:$0xff]
          %v1088 = vld [vmem:[#allocation2 + $0x20] sm:$0xff]
          %v1089 = vld [vmem:[#allocation2 + $0x28] sm:$0xff]
          %v1090 = vld [vmem:[#allocation2 + $0x30] sm:$0xff]
          %v1091 = vld [vmem:[#allocation2 + $0x38] sm:$0xff]
          %v1092 = vld [vmem:[#allocation2 + $0x40] sm:$0xff]
          %v1093 = vld [vmem:[#allocation2 + $0x48] sm:$0xff]
          %v1094 = vld [vmem:[#allocation2 + $0x50] sm:$0xff]
          %v1095 = vld [vmem:[#allocation2 + $0x58] sm:$0xff]
          %v1096 = vld [vmem:[#allocation2 + $0x60] sm:$0xff]
          %v1097 = vld [vmem:[#allocation2 + $0x68] sm:$0xff]
          %v1098 = vld [vmem:[#allocation2 + $0x70] sm:$0xff]
          %v1099 = vld [vmem:[#allocation2 + $0x78] sm:$0xff]
          %v1100 = vld [vmem:[%s366] sm:$0xff]
          %v1101 = vld [vmem:[%s366 + $0x8] sm:$0xff]
          %v1102 = vld [vmem:[%s366 + $0x10] sm:$0xff]
          %v1103 = vld [vmem:[%s366 + $0x18] sm:$0xff]
          %v1104 = vld [vmem:[%s366 + $0x20] sm:$0xff]
          %v1105 = vld [vmem:[%s366 + $0x28] sm:$0xff]
          %v1106 = vld [vmem:[%s366 + $0x30] sm:$0xff]
          %v1107 = vld [vmem:[%s366 + $0x38] sm:$0xff]
          %v1108 = vld [vmem:[%s366 + $0x40] sm:$0xff]
          %v1109 = vld [vmem:[%s366 + $0x48] sm:$0xff]
          %v1110 = vld [vmem:[%s366 + $0x50] sm:$0xff]
          %v1111 = vld [vmem:[%s366 + $0x58] sm:$0xff]
          %v1112 = vld [vmem:[%s366 + $0x60] sm:$0xff]
          %v1113 = vld [vmem:[%s366 + $0x68] sm:$0xff]
          %v1114 = vld [vmem:[%s366 + $0x70] sm:$0xff]
          %v1115 = vld [vmem:[%s366 + $0x78] sm:$0xff]
          %1117 = vset.pattern.permute.xlu0 0
          %1118 = vperm.xlu0 %1117, %v1100
          %v1119 = vpop.permute.xlu0 %1118
          %1122 = vset.pattern.permute.xlu0 0
          %1123 = vperm.xlu0 %1122, %v1101
          %v1124 = vpop.permute.xlu0 %1123
          %1127 = vset.pattern.permute.xlu0 0
          %1128 = vperm.xlu0 %1127, %v1102
          %v1129 = vpop.permute.xlu0 %1128
          %1132 = vset.pattern.permute.xlu0 0
          %1133 = vperm.xlu0 %1132, %v1103
          %v1134 = vpop.permute.xlu0 %1133
          %1137 = vset.pattern.permute.xlu0 0
          %1138 = vperm.xlu0 %1137, %v1104
          %v1139 = vpop.permute.xlu0 %1138
          %1142 = vset.pattern.permute.xlu0 0
          %1143 = vperm.xlu0 %1142, %v1105
          %v1144 = vpop.permute.xlu0 %1143
          %1147 = vset.pattern.permute.xlu0 0
          %1148 = vperm.xlu0 %1147, %v1106
          %v1149 = vpop.permute.xlu0 %1148
          %1152 = vset.pattern.permute.xlu0 0
          %1153 = vperm.xlu0 %1152, %v1107
          %v1154 = vpop.permute.xlu0 %1153
          %1157 = vset.pattern.permute.xlu0 0
          %1158 = vperm.xlu0 %1157, %v1108
          %v1159 = vpop.permute.xlu0 %1158
          %1162 = vset.pattern.permute.xlu0 0
          %1163 = vperm.xlu0 %1162, %v1109
          %v1164 = vpop.permute.xlu0 %1163
          %1167 = vset.pattern.permute.xlu0 0
          %1168 = vperm.xlu0 %1167, %v1110
          %v1169 = vpop.permute.xlu0 %1168
          %1172 = vset.pattern.permute.xlu0 0
          %1173 = vperm.xlu0 %1172, %v1111
          %v1174 = vpop.permute.xlu0 %1173
          %1177 = vset.pattern.permute.xlu0 0
          %1178 = vperm.xlu0 %1177, %v1112
          %v1179 = vpop.permute.xlu0 %1178
          %1182 = vset.pattern.permute.xlu0 0
          %1183 = vperm.xlu0 %1182, %v1113
          %v1184 = vpop.permute.xlu0 %1183
          %1187 = vset.pattern.permute.xlu0 0
          %1188 = vperm.xlu0 %1187, %v1114
          %v1189 = vpop.permute.xlu0 %1188
          %1192 = vset.pattern.permute.xlu0 0
          %1193 = vperm.xlu0 %1192, %v1115
          %v1194 = vpop.permute.xlu0 %1193
          %v1196 = vmul.f32 %v1084, %v1119
          %v1197 = vmul.f32 %v1085, %v1124
          %v1198 = vmul.f32 %v1086, %v1129
          %v1199 = vmul.f32 %v1087, %v1134
          %v1200 = vmul.f32 %v1088, %v1139
          %v1201 = vmul.f32 %v1089, %v1144
          %v1202 = vmul.f32 %v1090, %v1149
          %v1203 = vmul.f32 %v1091, %v1154
          %v1204 = vmul.f32 %v1092, %v1159
          %v1205 = vmul.f32 %v1093, %v1164
          %v1206 = vmul.f32 %v1094, %v1169
          %v1207 = vmul.f32 %v1095, %v1174
          %v1208 = vmul.f32 %v1096, %v1179
          %v1209 = vmul.f32 %v1097, %v1184
          %v1210 = vmul.f32 %v1098, %v1189
          %v1211 = vmul.f32 %v1099, %v1194
          %v1212 = vpack.c.bf16 %v1197, %v1196
          %v1213 = vpack.c.bf16 %v1199, %v1198
          %v1214 = vpack.c.bf16 %v1201, %v1200
          %v1215 = vpack.c.bf16 %v1203, %v1202
          %v1216 = vpack.c.bf16 %v1205, %v1204
          %v1217 = vpack.c.bf16 %v1207, %v1206
          %v1218 = vpack.c.bf16 %v1209, %v1208
          %v1219 = vpack.c.bf16 %v1211, %v1210
          %v1220 = vld [vmem:[%s3] sm:$0xf]
          %v1221 = vld [vmem:[%s3 + $0x4] sm:$0xf]
          %v1222 = vld [vmem:[%s3 + $0x8] sm:$0xf]
          %v1223 = vld [vmem:[%s3 + $0xc] sm:$0xf]
          %v1224 = vld [vmem:[%s3 + $0x10] sm:$0xf]
          %v1225 = vld [vmem:[%s3 + $0x14] sm:$0xf]
          %v1226 = vld [vmem:[%s3 + $0x18] sm:$0xf]
          %v1227 = vld [vmem:[%s3 + $0x1c] sm:$0xf]
          %v1228 = vld [vmem:[%s3 + $0x20] sm:$0xf]
          %v1229 = vld [vmem:[%s3 + $0x24] sm:$0xf]
          %v1230 = vld [vmem:[%s3 + $0x28] sm:$0xf]
          %v1231 = vld [vmem:[%s3 + $0x2c] sm:$0xf]
          %v1232 = vld [vmem:[%s3 + $0x30] sm:$0xf]
          %v1233 = vld [vmem:[%s3 + $0x34] sm:$0xf]
          %v1234 = vld [vmem:[%s3 + $0x38] sm:$0xf]
          %v1235 = vld [vmem:[%s3 + $0x3c] sm:$0xf]
          %v1236 = vld [vmem:[%s4] sm:$0x1]
          %v1238 = vlaneseq
          %v1239 = vshrl.u32 %v1238, 7
          %v1240 = vsub.s32 0, %v1239
          %v1241 = vrot.slane %v1236, %v1240
          %v1259 = vunpack.c.l.b16 %v1220
          %v1260 = vunpack.c.l.b16 %v1221
          %v1261 = vunpack.c.l.b16 %v1222
          %v1262 = vunpack.c.l.b16 %v1223
          %v1263 = vunpack.c.l.b16 %v1224
          %v1264 = vunpack.c.l.b16 %v1225
          %v1265 = vunpack.c.l.b16 %v1226
          %v1266 = vunpack.c.l.b16 %v1227
          %v1267 = vunpack.c.l.b16 %v1228
          %v1268 = vunpack.c.l.b16 %v1229
          %v1269 = vunpack.c.l.b16 %v1230
          %v1270 = vunpack.c.l.b16 %v1231
          %v1271 = vunpack.c.l.b16 %v1232
          %v1272 = vunpack.c.l.b16 %v1233
          %v1273 = vunpack.c.l.b16 %v1234
          %v1274 = vunpack.c.l.b16 %v1235
          %v1275 = vpack.c.b16 %v1260, %v1259
          %v1276 = vpack.c.b16 %v1262, %v1261
          %v1277 = vpack.c.b16 %v1264, %v1263
          %v1278 = vpack.c.b16 %v1266, %v1265
          %v1279 = vpack.c.b16 %v1268, %v1267
          %v1280 = vpack.c.b16 %v1270, %v1269
          %v1281 = vpack.c.b16 %v1272, %v1271
          %v1282 = vpack.c.b16 %v1274, %v1273
          %1291 = vmatprep.subr.bf16.mxu0 0
          %1292 = vmatpush1.bf16.msra.mxu0 %v1282
          %1293 = vmatprep.subr.bf16.mxu0 0
          %1294 = vmatpush1.bf16.msra.mxu0 %v1281
          %1295 = vmatprep.subr.bf16.mxu0 0
          %1296 = vmatpush1.bf16.msra.mxu0 %v1280
          %1297 = vmatprep.subr.bf16.mxu0 0
          %1298 = vmatpush1.bf16.msra.mxu0 %v1279
          %1299 = vmatprep.subr.bf16.mxu0 0
          %1300 = vmatpush1.bf16.msra.mxu0 %v1278
          %1301 = vmatprep.subr.bf16.mxu0 0
          %1302 = vmatpush1.bf16.msra.mxu0 %v1277
          %1303 = vmatprep.subr.bf16.mxu0 0
          %1304 = vmatpush1.bf16.msra.mxu0 %v1276
          %1305 = vmatprep.subr.bf16.mxu0 0
          %1306 = vmatpush1.bf16.msra.mxu0 %v1275
          %1307 = vmatprep.subr.bf16.mxu0 0
          %1308 = vmatpush2.bf16.msra.mxu0 0
          %1309 = vmatprep.subr.bf16.mxu0 0
          %1310 = vmatpush2.bf16.msra.mxu0 0
          %1311 = vmatprep.subr.bf16.mxu0 0
          %1312 = vmatpush2.bf16.msra.mxu0 0
          %1313 = vmatprep.subr.bf16.mxu0 0
          %1314 = vmatpush2.bf16.msra.mxu0 0
          %1315 = vmatprep.subr.bf16.mxu0 0
          %1316 = vmatpush2.bf16.msra.mxu0 0
          %1317 = vmatprep.subr.bf16.mxu0 0
          %1318 = vmatpush2.bf16.msra.mxu0 0
          %1319 = vmatprep.subr.bf16.mxu0 0
          %1320 = vmatpush2.bf16.msra.mxu0 0
          %1321 = vmatprep.subr.bf16.mxu0 0
          %1322 = vmatpush2.bf16.msra.mxu0 0
          %1323 = vmatprep.mubr.bf16.mxu0 0
          %1324 = vmatmul.mubr.bf16.gmra.mxu0 %v1212
          %v1325 = vpop.f32.mrf.mxu0
          %v1326 = vadd.f32 %v1241, %v1325
          %v1327 = vpop.f32.mrf.mxu0
          %v1328 = vpop.f32.mrf.mxu0
          %v1329 = vadd.f32 %v1241, %v1328
          %v1330 = vpop.f32.mrf.mxu0
          %1331 = vmatprep.mubr.bf16.mxu0 0
          %1332 = vmatmul.mubr.bf16.gmra.mxu0 %v1213
          %v1333 = vpop.f32.mrf.mxu0
          %v1334 = vadd.f32 %v1241, %v1333
          %v1335 = vpop.f32.mrf.mxu0
          %v1336 = vpop.f32.mrf.mxu0
          %v1337 = vadd.f32 %v1241, %v1336
          %v1338 = vpop.f32.mrf.mxu0
          %1339 = vmatprep.mubr.bf16.mxu0 0
          %1340 = vmatmul.mubr.bf16.gmra.mxu0 %v1214
          %v1341 = vpop.f32.mrf.mxu0
          %v1342 = vadd.f32 %v1241, %v1341
          %v1343 = vpop.f32.mrf.mxu0
          %v1344 = vpop.f32.mrf.mxu0
          %v1345 = vadd.f32 %v1241, %v1344
          %v1346 = vpop.f32.mrf.mxu0
          %1347 = vmatprep.mubr.bf16.mxu0 0
          %1348 = vmatmul.mubr.bf16.gmra.mxu0 %v1215
          %v1349 = vpop.f32.mrf.mxu0
          %v1350 = vadd.f32 %v1241, %v1349
          %v1351 = vpop.f32.mrf.mxu0
          %v1352 = vpop.f32.mrf.mxu0
          %v1353 = vadd.f32 %v1241, %v1352
          %v1354 = vpop.f32.mrf.mxu0
          %1355 = vmatprep.mubr.bf16.mxu0 0
          %1356 = vmatmul.mubr.bf16.gmra.mxu0 %v1216
          %v1357 = vpop.f32.mrf.mxu0
          %v1358 = vadd.f32 %v1241, %v1357
          %v1359 = vpop.f32.mrf.mxu0
          %v1360 = vpop.f32.mrf.mxu0
          %v1361 = vadd.f32 %v1241, %v1360
          %v1362 = vpop.f32.mrf.mxu0
          %1363 = vmatprep.mubr.bf16.mxu0 0
          %1364 = vmatmul.mubr.bf16.gmra.mxu0 %v1217
          %v1365 = vpop.f32.mrf.mxu0
          %v1366 = vadd.f32 %v1241, %v1365
          %v1367 = vpop.f32.mrf.mxu0
          %v1368 = vpop.f32.mrf.mxu0
          %v1369 = vadd.f32 %v1241, %v1368
          %v1370 = vpop.f32.mrf.mxu0
          %1371 = vmatprep.mubr.bf16.mxu0 0
          %1372 = vmatmul.mubr.bf16.gmra.mxu0 %v1218
          %v1373 = vpop.f32.mrf.mxu0
          %v1374 = vadd.f32 %v1241, %v1373
          %v1375 = vpop.f32.mrf.mxu0
          %v1376 = vpop.f32.mrf.mxu0
          %v1377 = vadd.f32 %v1241, %v1376
          %v1378 = vpop.f32.mrf.mxu0
          %1379 = vmatprep.mubr.bf16.mxu0 0
          %1380 = vmatmul.mubr.bf16.gmra.mxu0 %v1219
          %v1381 = vpop.f32.mrf.mxu0
          %v1382 = vadd.f32 %v1241, %v1381
          %v1383 = vpop.f32.mrf.mxu0
          %v1384 = vpop.f32.mrf.mxu0
          %v1385 = vadd.f32 %v1241, %v1384
          %v1386 = vpop.f32.mrf.mxu0
          %1387 = vdwg.mxu0
          %v1388 = vmax.f32 %v1326, 0.0
          %v1389 = vmax.f32 %v1329, 0.0
          %v1390 = vmax.f32 %v1334, 0.0
          %v1391 = vmax.f32 %v1337, 0.0
          %v1392 = vmax.f32 %v1342, 0.0
          %v1393 = vmax.f32 %v1345, 0.0
          %v1394 = vmax.f32 %v1350, 0.0
          %v1395 = vmax.f32 %v1353, 0.0
          %v1396 = vmax.f32 %v1358, 0.0
          %v1397 = vmax.f32 %v1361, 0.0
          %v1398 = vmax.f32 %v1366, 0.0
          %v1399 = vmax.f32 %v1369, 0.0
          %v1400 = vmax.f32 %v1374, 0.0
          %v1401 = vmax.f32 %v1377, 0.0
          %v1402 = vmax.f32 %v1382, 0.0
          %v1403 = vmax.f32 %v1385, 0.0
          %1404 = vst [vmem:[%s353] sm:$0xff] %v1388
          %1405 = vst [vmem:[%s353 + $0x8] sm:$0xff] %v1389
          %1406 = vst [vmem:[%s353 + $0x10] sm:$0xff] %v1390
          %1407 = vst [vmem:[%s353 + $0x18] sm:$0xff] %v1391
          %1408 = vst [vmem:[%s353 + $0x20] sm:$0xff] %v1392
          %1409 = vst [vmem:[%s353 + $0x28] sm:$0xff] %v1393
          %1410 = vst [vmem:[%s353 + $0x30] sm:$0xff] %v1394
          %1411 = vst [vmem:[%s353 + $0x38] sm:$0xff] %v1395
          %1412 = vst [vmem:[%s353 + $0x40] sm:$0xff] %v1396
          %1413 = vst [vmem:[%s353 + $0x48] sm:$0xff] %v1397
          %1414 = vst [vmem:[%s353 + $0x50] sm:$0xff] %v1398
          %1415 = vst [vmem:[%s353 + $0x58] sm:$0xff] %v1399
          %1416 = vst [vmem:[%s353 + $0x60] sm:$0xff] %v1400
          %1417 = vst [vmem:[%s353 + $0x68] sm:$0xff] %v1401
          %1418 = vst [vmem:[%s353 + $0x70] sm:$0xff] %v1402
          %1419 = vst [vmem:[%s353 + $0x78] sm:$0xff] %v1403
        $region71: #{gnn_forward.7} parent=58 // pred_fallthru
          _
        %s1420 = sand.u32 %s161, 1
        %s1421 = scalar_lea.sflag [#allocation5], %s1420
        %s1422 = sand.u32 %s161, 1
        %s1423 = smul.addr %s1422, 128
        %s1424 = scalar_lea.vmem [#allocation4], %s1423
        // Predicated region
        $region72: #{gnn_forward.7} parent=58 // pred_check
          %p1425 = pneg %p171
        $region73: #{gnn_forward.7} parent=58 // pred_check_branch
          %1427 = sbr.rel (%p1425) target = $region75
        $region74: #{gnn_forward.7} parent=58 // pred_region
          %s1428 = smul.u32 16, %s23
          %s1430 = ssub.s32 2048, 2048
          %1431 = vsyncadd %s1421, %s1430
          %s1432 = smul.addr %s1428, 128
          %s1433 = scalar_lea.hbm %s5, %s1432
          %s1434 = sshll.u32 %s1424, 4
          %s1435 = int_to_ptr.vmem [resolvable:$true] %s1434
          %1440 = dma.vmem_to_hbm [thread:$0]  %s1435, 2048, %s1433, %s1421, 128, 128, 8
        $region75: #{gnn_forward.7} parent=58 // pred_fallthru
          _
      $region59: #{gnn_forward.7} parent=5 // pred_fallthru
        _
      %p1441 = scmp.le.s32.totalorder 2, %s14
      // Predicated region
      $region76: #{gnn_forward.7} parent=5 // pred_check
        %p1442 = pneg %p1441
      $region77: #{gnn_forward.7} parent=5 // pred_check_branch
        %1444 = sbr.rel (%p1442) target = $region79
      $region78: #{gnn_forward.7} parent=5 // pred_region
        %s1445 = ssub.s32 %s14, 2
        // Predicated region
        $region80: #{gnn_forward.7} parent=78 // pred_check
          %p1446 = pneg %p177
        $region81: #{gnn_forward.7} parent=78 // pred_check_branch
          %1448 = sbr.rel (%p1446) target = $region83
        $region82: #{gnn_forward.7} parent=78 // pred_region
          %s1449 = sand.u32 %s162, 1
          %s1450 = scalar_lea.sflag [#allocation5], %s1449
          %s1451 = sand.u32 %s162, 1
          %s1452 = smul.addr %s1451, 128
          %s1453 = scalar_lea.vmem [#allocation4], %s1452
          %1454 = dma.done %s1450, 2048
        $region83: #{gnn_forward.7} parent=78 // pred_fallthru
          _
      $region79: #{gnn_forward.7} parent=5 // pred_fallthru
        _
    $region6: #{gnn_forward.7} parent=1 // loop_footer
      %s18 = sadd.s32 1, %s14
    $region7: #{gnn_forward.7} parent=1 // loop_footer_branch
      %13 = sbr.rel target = $region3
    $region8: #{gnn_forward.7} parent=1 // loop_exit
      _
    %1455 = vsyncpa [#allocation5], 1
    %s1456 = scalar_lea.sflag [#allocation5], 1
    %1457 = vsyncpa %s1456, 1

</llo_original>
